<compile_context>
chip_gen: v5e
topology: v5e:2x2
jax: 0.10.0
libtpu: 0.0.40
codegen_flags: <defaults>
</compile_context>

<pallas_src>
import jax
import jax.numpy as jnp
from jax.experimental import pallas as pl
from jax.experimental.pallas import tpu as pltpu

HIDDEN = 512
LATENT = 256          # HIDDEN // 2
LN_EPS = 1e-5
LRELU_SLOPE = 0.01    # nn.LeakyReLU default
LANE = 128

# rows of the packed (8, 512) f32 bias/scale slab
ROW_B1, ROW_GAMMA, ROW_BETA, ROW_B2, ROW_BD1, ROW_BD2 = 0, 1, 2, 3, 4, 5


def _leaky_relu(x):
    return jnp.where(x > 0, x, LRELU_SLOPE * x)


def _round_up(x, m):
    return (x + m - 1) // m * m


# ----------------------------------------------------------------------------- kernel
def tsynth_kernel(zc_ref, eps_ref,
                  wf_ref, slab_ref, w2_ref, wd1b_ref, wd2_ref, wd3_ref, bd3_ref,
                  out_ref):
    zc = zc_ref[...]                                   # bf16, cast in the wrapper

    # Fused first stage: columns [0:512) -> prior Linear1, [512:1024) -> decoder
    # Linear1 (zc part).  concat(zc, sample) is never materialized.
    h_all = jnp.dot(zc, wf_ref[...], preferred_element_type=jnp.float32)

    b1 = slab_ref[ROW_B1:ROW_B1 + 1, :]
    gamma = slab_ref[ROW_GAMMA:ROW_GAMMA + 1, :]
    beta = slab_ref[ROW_BETA:ROW_BETA + 1, :]
    b2 = slab_ref[ROW_B2:ROW_B2 + 1, :]
    bd1 = slab_ref[ROW_BD1:ROW_BD1 + 1, :]
    bd2 = slab_ref[ROW_BD2:ROW_BD2 + 1, :]

    h = h_all[:, :HIDDEN] + b1                         # prior L1 pre-activation (f32)
    d_zc = h_all[:, HIDDEN:]                           # decoder L1 zc contribution (f32)

    # ---- LayerNorm (f32, biased variance, two-pass like PyTorch) ----
    mean = jnp.mean(h, axis=-1, keepdims=True)
    diff = h - mean
    var = jnp.mean(diff * diff, axis=-1, keepdims=True)
    h = diff * jax.lax.rsqrt(var + LN_EPS)
    h = h * gamma + beta
    h = _leaky_relu(h)

    p = jnp.dot(h.astype(jnp.bfloat16), w2_ref[...],
                preferred_element_type=jnp.float32) + b2

    # ---- chunk, exp-std, reparameterized sample (f32) ----
    mu = p[:, :LATENT]
    logstd = p[:, LATENT:]
    std = jnp.exp(logstd) * 1.001 + 1e-5
    sample = mu + std * eps_ref[...]

    # ---- decoder: Linear -> LeakyReLU -> Linear -> LeakyReLU -> Linear ----
    d = (d_zc
         + jnp.dot(sample.astype(jnp.bfloat16), wd1b_ref[...],
                   preferred_element_type=jnp.float32)
         + bd1)
    d = _leaky_relu(d)
    d = jnp.dot(d.astype(jnp.bfloat16), wd2_ref[...],
                preferred_element_type=jnp.float32) + bd2
    d = _leaky_relu(d)
    z = jnp.dot(d.astype(jnp.bfloat16), wd3_ref[...],
                preferred_element_type=jnp.float32) + bd3_ref[...]

    out_ref[...] = z.astype(out_ref.dtype)


# ----------------------------------------------------------------------------- params
def _linear_params(key, fan_in, fan_out):
    # deterministic PyTorch-style U(-1/sqrt(fan_in), 1/sqrt(fan_in)) init
    kw, kb = jax.random.split(key)
    bound = 1.0 / jnp.sqrt(jnp.float32(fan_in))
    w = jax.random.uniform(kw, (fan_in, fan_out), jnp.float32, -bound, bound)
    b = jax.random.uniform(kb, (1, fan_out), jnp.float32, -bound, bound)
    return w, b


def init_tsynth_params(dim, k, key):
    ks = jax.random.split(key, 5)
    # prior
    w1, b1 = _linear_params(ks[0], dim * 2, HIDDEN)
    gamma = jnp.ones((1, HIDDEN), jnp.float32)
    beta = jnp.zeros((1, HIDDEN), jnp.float32)
    w2, b2 = _linear_params(ks[1], HIDDEN, HIDDEN)
    # decoder; L1 weight split into zc rows ([:2*dim]) and sample rows ([2*dim:])
    wd1, bd1 = _linear_params(ks[2], dim * 2 + LATENT, HIDDEN)
    wd1a, wd1b = wd1[: dim * 2, :], wd1[dim * 2:, :]
    wd2, bd2 = _linear_params(ks[3], HIDDEN, HIDDEN)
    wd3, bd3 = _linear_params(ks[4], HIDDEN, dim * k)

    # Fuse prior-L1 and decoder-L1(zc) along the output axis -> (2*dim, 1024).
    wfused = jnp.concatenate([w1, wd1a], axis=1)

    # Pack the six (1,512) f32 vectors into one (8,512) slab (rows 6-7 unused).
    bias_slab = jnp.concatenate(
        [b1, gamma, beta, b2, bd1, bd2, jnp.zeros((2, HIDDEN), jnp.float32)], axis=0)

    # Pad the output projection to a lane-dense width (multiple of 128).
    n_out = dim * k
    n_pad = _round_up(n_out, LANE)
    wd3p = jnp.pad(wd3, ((0, 0), (0, n_pad - n_out)))
    bd3p = jnp.pad(bd3, ((0, 0), (0, n_pad - n_out)))

    bf16 = jnp.bfloat16
    return {
        "wf": wfused.astype(bf16),
        "bias_slab": bias_slab,                 # f32
        "w2": w2.astype(bf16),
        "wd1b": wd1b.astype(bf16),
        "wd2": wd2.astype(bf16),
        "wd3": wd3p.astype(bf16),
        "bd3": bd3p,                            # f32
    }


# ----------------------------------------------------------------------------- wrapper
def _vmem_capacity_bytes():
    try:
        return int(pltpu.get_tpu_info().vmem_capacity_bytes)
    except Exception:
        return 64 * 1024 * 1024                 # conservative (v7x per-TC)


def _per_row_bytes(dim, n_pad):
    # double-buffered activation/output tiles + generous f32-intermediate estimate
    return 2 * (2 * dim * 2 + LATENT * 4 + n_pad * 4) + 20 * 1024


def _max_tile_rows(cap_bytes, dim, n_pad, weight_bytes):
    budget = min(cap_bytes // 2, 48 << 20)
    avail = budget - 2 * weight_bytes - (2 << 20)
    per_row = _per_row_bytes(dim, n_pad)
    return max(16, (avail // per_row) // 16 * 16)


def _vmem_limit_bytes(cap_bytes, dim, n_pad, weight_bytes, tm):
    est = 2 * weight_bytes + tm * _per_row_bytes(dim, n_pad) + (4 << 20)
    ceiling = max(32 << 20, cap_bytes - (8 << 20))
    return int(min(max(32 << 20, est), ceiling))


def _pallas_tsynth(zc, eps, weights, tm, b_pad, n_pad, single_buffered, vmem_limit):
    zc_cols = zc.shape[1]

    def act_spec(cols):
        return pl.BlockSpec((tm, cols), lambda i: (i, 0))

    # Constant index_map -> weights are DMA'd once and stay VMEM-resident across
    # batch tiles; single-buffering avoids allocating a useless second copy.
    if single_buffered:
        w_specs = [pl.BlockSpec(w.shape, lambda i: (0, 0),
                                pipeline_mode=pl.Buffered(1)) for w in weights]
    else:
        w_specs = [pl.BlockSpec(w.shape, lambda i: (0, 0)) for w in weights]

    return pl.pallas_call(
        tsynth_kernel,
        out_shape=jax.ShapeDtypeStruct((b_pad, n_pad), jnp.float32),
        grid=(b_pad // tm,),
        in_specs=[act_spec(zc_cols), act_spec(LATENT)] + w_specs,
        out_specs=pl.BlockSpec((tm, n_pad), lambda i: (i, 0)),
        compiler_params=pltpu.CompilerParams(
            dimension_semantics=("parallel",),      # shards batch tiles over v7x TCs
            vmem_limit_bytes=vmem_limit),
    )(zc, eps, *weights)


def tsynth_forward(st, stk, eps, params, dim, k, block_m=256):
    """st: (B, dim...), stk: (B, dim...), eps: (B, 256) standard-normal noise.

    Callers invoking TSynth per timestep should fold timesteps into the batch
    axis (B = T * b) so the grid has >= 2 tiles and the weight DMA amortizes.
    """
    B = st.shape[0]
    # wrapper-side concat + bf16 cast of the tiny inputs (halves their DMA bytes,
    # removes in-kernel casts); eps stays f32 for the f32 reparameterization.
    zc = jnp.concatenate(
        [st.reshape(B, -1), stk.reshape(B, -1)], axis=1).astype(jnp.bfloat16)
    eps = eps.astype(jnp.float32)

    weight_names = ("wf", "bias_slab", "w2", "wd1b", "wd2", "wd3", "bd3")
    weights = [params[n] for n in weight_names]
    n_pad = params["wd3"].shape[1]
    weight_bytes = sum(int(w.size) * w.dtype.itemsize for w in weights)

    cap = _vmem_capacity_bytes()
    # batch tile: multiple of 16 (bf16 sublane packing), capped by per-chip VMEM.
    tm = min(block_m, _round_up(B, 16), _max_tile_rows(cap, dim, n_pad, weight_bytes))
    tm = max(16, tm // 16 * 16)
    b_pad = _round_up(B, tm)
    if b_pad != B:
        pad = ((0, b_pad - B), (0, 0))
        zc = jnp.pad(zc, pad)
        eps = jnp.pad(eps, pad)

    vmem_limit = _vmem_limit_bytes(cap, dim, n_pad, weight_bytes, tm)

    try:
        zpred_pad = _pallas_tsynth(zc, eps, weights, tm, b_pad, n_pad,
                                   single_buffered=True, vmem_limit=vmem_limit)
    except Exception:
        # Fallback for builds where pipeline_mode=pl.Buffered(1) is unsupported.
        zpred_pad = _pallas_tsynth(zc, eps, weights, tm, b_pad, n_pad,
                                   single_buffered=False, vmem_limit=vmem_limit)

    return zpred_pad[:B, :dim * k]


if __name__ == "__main__":
    dim, k, B = 16, 4, 8
    key = jax.random.PRNGKey(0)
    k_st, k_stk, k_eps, k_params = jax.random.split(key, 4)

    st = jax.random.normal(k_st, (B, dim), jnp.float32)
    stk = jax.random.normal(k_stk, (B, dim), jnp.float32)
    # reparameterization noise for prior.rsample() (kept as an explicit input)
    eps = jax.random.normal(k_eps, (B, LATENT), jnp.float32)

    params = init_tsynth_params(dim, k, k_params)

    zpred = tsynth_forward(st, stk, eps, params, dim, k)
    jax.block_until_ready(zpred)
    assert zpred.shape == (B, dim * k)
    assert bool(jnp.all(jnp.isfinite(zpred)))
    print("KERNEL_OK")
</pallas_src>

<mosaic_0001>
module attributes {stable_mosaic.version = 11 : i64} {
  func.func @tsynth_kernel(%arg0: i32, %arg1: memref<16x32xbf16, #tpu.memory_space<vmem>>, %arg2: memref<16x256xf32, #tpu.memory_space<vmem>>, %arg3: memref<32x1024xbf16, #tpu.memory_space<vmem>>, %arg4: memref<8x512xf32, #tpu.memory_space<vmem>>, %arg5: memref<512x512xbf16, #tpu.memory_space<vmem>>, %arg6: memref<256x512xbf16, #tpu.memory_space<vmem>>, %arg7: memref<512x512xbf16, #tpu.memory_space<vmem>>, %arg8: memref<512x128xbf16, #tpu.memory_space<vmem>>, %arg9: memref<1x128xf32, #tpu.memory_space<vmem>>, %arg10: memref<16x128xf32, #tpu.memory_space<vmem>>) attributes {dimension_semantics = [#tpu.dimension_semantics<parallel>], iteration_bounds = array<i64: 1>, scalar_prefetch = 0 : i64, scratch_operands = 0 : i64, tpu.core_type = #tpu.core_type<tc>, window_params = [{transform_indices = @transform_0, window_bounds = array<i64: 16, 32>}, {transform_indices = @transform_1, window_bounds = array<i64: 16, 256>}, {pipeline_mode = #tpu.pipeline_mode<synchronous>, transform_indices = @transform_2, window_bounds = array<i64: 32, 1024>}, {pipeline_mode = #tpu.pipeline_mode<synchronous>, transform_indices = @transform_3, window_bounds = array<i64: 8, 512>}, {pipeline_mode = #tpu.pipeline_mode<synchronous>, transform_indices = @transform_4, window_bounds = array<i64: 512, 512>}, {pipeline_mode = #tpu.pipeline_mode<synchronous>, transform_indices = @transform_5, window_bounds = array<i64: 256, 512>}, {pipeline_mode = #tpu.pipeline_mode<synchronous>, transform_indices = @transform_6, window_bounds = array<i64: 512, 512>}, {pipeline_mode = #tpu.pipeline_mode<synchronous>, transform_indices = @transform_7, window_bounds = array<i64: 512, 128>}, {pipeline_mode = #tpu.pipeline_mode<synchronous>, transform_indices = @transform_8, window_bounds = array<i64: 1, 128>}, {transform_indices = @transform_9, window_bounds = array<i64: 16, 128>}]} {
    %c0 = arith.constant 0 : index
    %c0_0 = arith.constant 0 : index
    %0 = vector.load %arg1[%c0, %c0_0] : memref<16x32xbf16, #tpu.memory_space<vmem>>, vector<16x32xbf16>
    %c0_1 = arith.constant 0 : index
    %c0_2 = arith.constant 0 : index
    %1 = vector.load %arg3[%c0_1, %c0_2] : memref<32x1024xbf16, #tpu.memory_space<vmem>>, vector<32x1024xbf16>
    %cst = arith.constant dense<0.000000e+00> : vector<16x1024xf32>
    %2 = tpu.matmul %0, %1, %cst {dimension_numbers = #tpu.dot_dimension_numbers<[1], [0], [0], [1], [0, 0, 1, 1], [], []>} : vector<16x32xbf16>, vector<32x1024xbf16>, vector<16x1024xf32> -> vector<16x1024xf32>
    %c0_3 = arith.constant 0 : index
    %c0_4 = arith.constant 0 : index
    %3 = vector.load %arg4[%c0_3, %c0_4] : memref<8x512xf32, #tpu.memory_space<vmem>>, vector<1x512xf32>
    %c1 = arith.constant 1 : index
    %c0_5 = arith.constant 0 : index
    %4 = vector.load %arg4[%c1, %c0_5] : memref<8x512xf32, #tpu.memory_space<vmem>>, vector<1x512xf32>
    %c2 = arith.constant 2 : index
    %c0_6 = arith.constant 0 : index
    %5 = vector.load %arg4[%c2, %c0_6] : memref<8x512xf32, #tpu.memory_space<vmem>>, vector<1x512xf32>
    %c3 = arith.constant 3 : index
    %c0_7 = arith.constant 0 : index
    %6 = vector.load %arg4[%c3, %c0_7] : memref<8x512xf32, #tpu.memory_space<vmem>>, vector<1x512xf32>
    %c4 = arith.constant 4 : index
    %c0_8 = arith.constant 0 : index
    %7 = vector.load %arg4[%c4, %c0_8] : memref<8x512xf32, #tpu.memory_space<vmem>>, vector<1x512xf32>
    %c5 = arith.constant 5 : index
    %c0_9 = arith.constant 0 : index
    %8 = vector.load %arg4[%c5, %c0_9] : memref<8x512xf32, #tpu.memory_space<vmem>>, vector<1x512xf32>
    %9 = vector.extract_strided_slice %2 {offsets = [0, 0], sizes = [16, 512], strides = [1, 1]} : vector<16x1024xf32> to vector<16x512xf32>
    %10 = vector.broadcast %3 : vector<1x512xf32> to vector<16x512xf32>
    %11 = arith.addf %9, %10 : vector<16x512xf32>
    %12 = vector.extract_strided_slice %2 {offsets = [0, 512], sizes = [16, 512], strides = [1, 1]} : vector<16x1024xf32> to vector<16x512xf32>
    %cst_10 = arith.constant dense<0.000000e+00> : vector<16xf32>
    %13 = vector.multi_reduction <add>, %11, %cst_10 [1] : vector<16x512xf32> to vector<16xf32>
    %14 = vector.shape_cast %13 : vector<16xf32> to vector<16x1xf32>
    %cst_11 = arith.constant 5.120000e+02 : f32
    %15 = vector.broadcast %cst_11 : f32 to vector<16x1xf32>
    %16 = arith.divf %14, %15 : vector<16x1xf32>
    %17 = vector.broadcast %16 : vector<16x1xf32> to vector<16x512xf32>
    %18 = arith.subf %11, %17 : vector<16x512xf32>
    %19 = arith.mulf %18, %18 : vector<16x512xf32>
    %cst_12 = arith.constant dense<0.000000e+00> : vector<16xf32>
    %20 = vector.multi_reduction <add>, %19, %cst_12 [1] : vector<16x512xf32> to vector<16xf32>
    %21 = vector.shape_cast %20 : vector<16xf32> to vector<16x1xf32>
    %cst_13 = arith.constant 5.120000e+02 : f32
    %22 = vector.broadcast %cst_13 : f32 to vector<16x1xf32>
    %23 = arith.divf %21, %22 : vector<16x1xf32>
    %cst_14 = arith.constant 9.99999974E-6 : f32
    %24 = vector.broadcast %cst_14 : f32 to vector<16x1xf32>
    %25 = arith.addf %23, %24 : vector<16x1xf32>
    %26 = math.rsqrt %25 : vector<16x1xf32>
    %27 = vector.broadcast %26 : vector<16x1xf32> to vector<16x512xf32>
    %28 = arith.mulf %18, %27 : vector<16x512xf32>
    %29 = vector.broadcast %4 : vector<1x512xf32> to vector<16x512xf32>
    %30 = arith.mulf %28, %29 : vector<16x512xf32>
    %31 = vector.broadcast %5 : vector<1x512xf32> to vector<16x512xf32>
    %32 = arith.addf %30, %31 : vector<16x512xf32>
    %cst_15 = arith.constant 0.000000e+00 : f32
    %33 = vector.broadcast %cst_15 : f32 to vector<16x512xf32>
    %34 = arith.cmpf ogt, %32, %33 : vector<16x512xf32>
    %cst_16 = arith.constant 0.00999999977 : f32
    %35 = vector.broadcast %cst_16 : f32 to vector<16x512xf32>
    %36 = arith.mulf %35, %32 : vector<16x512xf32>
    %37 = arith.select %34, %32, %36 : vector<16x512xi1>, vector<16x512xf32>
    %38 = arith.truncf %37 : vector<16x512xf32> to vector<16x512xbf16>
    %c0_17 = arith.constant 0 : index
    %c0_18 = arith.constant 0 : index
    %39 = vector.load %arg5[%c0_17, %c0_18] : memref<512x512xbf16, #tpu.memory_space<vmem>>, vector<512x512xbf16>
    %cst_19 = arith.constant dense<0.000000e+00> : vector<16x512xf32>
    %40 = tpu.matmul %38, %39, %cst_19 {dimension_numbers = #tpu.dot_dimension_numbers<[1], [0], [0], [1], [0, 0, 1, 1], [], []>} : vector<16x512xbf16>, vector<512x512xbf16>, vector<16x512xf32> -> vector<16x512xf32>
    %41 = vector.broadcast %6 : vector<1x512xf32> to vector<16x512xf32>
    %42 = arith.addf %40, %41 : vector<16x512xf32>
    %43 = vector.extract_strided_slice %42 {offsets = [0, 0], sizes = [16, 256], strides = [1, 1]} : vector<16x512xf32> to vector<16x256xf32>
    %44 = vector.extract_strided_slice %42 {offsets = [0, 256], sizes = [16, 256], strides = [1, 1]} : vector<16x512xf32> to vector<16x256xf32>
    %45 = math.exp %44 : vector<16x256xf32>
    %cst_20 = arith.constant 1.001000e+00 : f32
    %46 = vector.broadcast %cst_20 : f32 to vector<16x256xf32>
    %47 = arith.mulf %45, %46 : vector<16x256xf32>
    %cst_21 = arith.constant 9.99999974E-6 : f32
    %48 = vector.broadcast %cst_21 : f32 to vector<16x256xf32>
    %49 = arith.addf %47, %48 : vector<16x256xf32>
    %c0_22 = arith.constant 0 : index
    %c0_23 = arith.constant 0 : index
    %50 = vector.load %arg2[%c0_22, %c0_23] : memref<16x256xf32, #tpu.memory_space<vmem>>, vector<16x256xf32>
    %51 = arith.mulf %49, %50 : vector<16x256xf32>
    %52 = arith.addf %43, %51 : vector<16x256xf32>
    %53 = arith.truncf %52 : vector<16x256xf32> to vector<16x256xbf16>
    %c0_24 = arith.constant 0 : index
    %c0_25 = arith.constant 0 : index
    %54 = vector.load %arg6[%c0_24, %c0_25] : memref<256x512xbf16, #tpu.memory_space<vmem>>, vector<256x512xbf16>
    %cst_26 = arith.constant dense<0.000000e+00> : vector<16x512xf32>
    %55 = tpu.matmul %53, %54, %cst_26 {dimension_numbers = #tpu.dot_dimension_numbers<[1], [0], [0], [1], [0, 0, 1, 1], [], []>} : vector<16x256xbf16>, vector<256x512xbf16>, vector<16x512xf32> -> vector<16x512xf32>
    %56 = arith.addf %12, %55 : vector<16x512xf32>
    %57 = vector.broadcast %7 : vector<1x512xf32> to vector<16x512xf32>
    %58 = arith.addf %56, %57 : vector<16x512xf32>
    %cst_27 = arith.constant 0.000000e+00 : f32
    %59 = vector.broadcast %cst_27 : f32 to vector<16x512xf32>
    %60 = arith.cmpf ogt, %58, %59 : vector<16x512xf32>
    %cst_28 = arith.constant 0.00999999977 : f32
    %61 = vector.broadcast %cst_28 : f32 to vector<16x512xf32>
    %62 = arith.mulf %61, %58 : vector<16x512xf32>
    %63 = arith.select %60, %58, %62 : vector<16x512xi1>, vector<16x512xf32>
    %64 = arith.truncf %63 : vector<16x512xf32> to vector<16x512xbf16>
    %c0_29 = arith.constant 0 : index
    %c0_30 = arith.constant 0 : index
    %65 = vector.load %arg7[%c0_29, %c0_30] : memref<512x512xbf16, #tpu.memory_space<vmem>>, vector<512x512xbf16>
    %cst_31 = arith.constant dense<0.000000e+00> : vector<16x512xf32>
    %66 = tpu.matmul %64, %65, %cst_31 {dimension_numbers = #tpu.dot_dimension_numbers<[1], [0], [0], [1], [0, 0, 1, 1], [], []>} : vector<16x512xbf16>, vector<512x512xbf16>, vector<16x512xf32> -> vector<16x512xf32>
    %67 = vector.broadcast %8 : vector<1x512xf32> to vector<16x512xf32>
    %68 = arith.addf %66, %67 : vector<16x512xf32>
    %cst_32 = arith.constant 0.000000e+00 : f32
    %69 = vector.broadcast %cst_32 : f32 to vector<16x512xf32>
    %70 = arith.cmpf ogt, %68, %69 : vector<16x512xf32>
    %cst_33 = arith.constant 0.00999999977 : f32
    %71 = vector.broadcast %cst_33 : f32 to vector<16x512xf32>
    %72 = arith.mulf %71, %68 : vector<16x512xf32>
    %73 = arith.select %70, %68, %72 : vector<16x512xi1>, vector<16x512xf32>
    %74 = arith.truncf %73 : vector<16x512xf32> to vector<16x512xbf16>
    %c0_34 = arith.constant 0 : index
    %c0_35 = arith.constant 0 : index
    %75 = vector.load %arg8[%c0_34, %c0_35] : memref<512x128xbf16, #tpu.memory_space<vmem>>, vector<512x128xbf16>
    %cst_36 = arith.constant dense<0.000000e+00> : vector<16x128xf32>
    %76 = tpu.matmul %74, %75, %cst_36 {dimension_numbers = #tpu.dot_dimension_numbers<[1], [0], [0], [1], [0, 0, 1, 1], [], []>} : vector<16x512xbf16>, vector<512x128xbf16>, vector<16x128xf32> -> vector<16x128xf32>
    %c0_37 = arith.constant 0 : index
    %c0_38 = arith.constant 0 : index
    %77 = vector.load %arg9[%c0_37, %c0_38] : memref<1x128xf32, #tpu.memory_space<vmem>>, vector<1x128xf32>
    %78 = vector.broadcast %77 : vector<1x128xf32> to vector<16x128xf32>
    %79 = arith.addf %76, %78 : vector<16x128xf32>
    %c0_39 = arith.constant 0 : index
    %c0_40 = arith.constant 0 : index
    %80 = vector.load %arg10[%c0_39, %c0_40] : memref<16x128xf32, #tpu.memory_space<vmem>>, vector<16x128xf32>
    tpu.vector_store %arg10[%c0_39, %c0_40], %79 {strides = array<i32>} : memref<16x128xf32, #tpu.memory_space<vmem>>, vector<16x128xf32>,
    return
  }
  func.func @transform_0(%arg0: i32) -> (i32, i32) {
    %c0_i32 = arith.constant 0 : i32
    %c0_i32_0 = arith.constant 0 : i32
    return %arg0, %c0_i32 : i32, i32
  }
  func.func @transform_1(%arg0: i32) -> (i32, i32) {
    %c0_i32 = arith.constant 0 : i32
    %c0_i32_0 = arith.constant 0 : i32
    return %arg0, %c0_i32 : i32, i32
  }
  func.func @transform_2(%arg0: i32) -> (i32, i32) {
    %c0_i32 = arith.constant 0 : i32
    %c0_i32_0 = arith.constant 0 : i32
    %c0_i32_1 = arith.constant 0 : i32
    return %c0_i32, %c0_i32_0 : i32, i32
  }
  func.func @transform_3(%arg0: i32) -> (i32, i32) {
    %c0_i32 = arith.constant 0 : i32
    %c0_i32_0 = arith.constant 0 : i32
    %c0_i32_1 = arith.constant 0 : i32
    return %c0_i32, %c0_i32_0 : i32, i32
  }
  func.func @transform_4(%arg0: i32) -> (i32, i32) {
    %c0_i32 = arith.constant 0 : i32
    %c0_i32_0 = arith.constant 0 : i32
    %c0_i32_1 = arith.constant 0 : i32
    return %c0_i32, %c0_i32_0 : i32, i32
  }
  func.func @transform_5(%arg0: i32) -> (i32, i32) {
    %c0_i32 = arith.constant 0 : i32
    %c0_i32_0 = arith.constant 0 : i32
    %c0_i32_1 = arith.constant 0 : i32
    return %c0_i32, %c0_i32_0 : i32, i32
  }
  func.func @transform_6(%arg0: i32) -> (i32, i32) {
    %c0_i32 = arith.constant 0 : i32
    %c0_i32_0 = arith.constant 0 : i32
    %c0_i32_1 = arith.constant 0 : i32
    return %c0_i32, %c0_i32_0 : i32, i32
  }
  func.func @transform_7(%arg0: i32) -> (i32, i32) {
    %c0_i32 = arith.constant 0 : i32
    %c0_i32_0 = arith.constant 0 : i32
    %c0_i32_1 = arith.constant 0 : i32
    return %c0_i32, %c0_i32_0 : i32, i32
  }
  func.func @transform_8(%arg0: i32) -> (i32, i32) {
    %c0_i32 = arith.constant 0 : i32
    %c0_i32_0 = arith.constant 0 : i32
    %c0_i32_1 = arith.constant 0 : i32
    return %c0_i32, %c0_i32_0 : i32, i32
  }
  func.func @transform_9(%arg0: i32) -> (i32, i32) {
    %c0_i32 = arith.constant 0 : i32
    %c0_i32_0 = arith.constant 0 : i32
    return %arg0, %c0_i32 : i32, i32
  }
}

module attributes {stable_mosaic.version = 11 : i64} {
  func.func @tsynth_kernel(%arg0: i32, %arg1: memref<16x32xbf16, #tpu.memory_space<vmem>>, %arg2: memref<16x256xf32, #tpu.memory_space<vmem>>, %arg3: memref<32x1024xbf16, #tpu.memory_space<vmem>>, %arg4: memref<8x512xf32, #tpu.memory_space<vmem>>, %arg5: memref<512x512xbf16, #tpu.memory_space<vmem>>, %arg6: memref<256x512xbf16, #tpu.memory_space<vmem>>, %arg7: memref<512x512xbf16, #tpu.memory_space<vmem>>, %arg8: memref<512x128xbf16, #tpu.memory_space<vmem>>, %arg9: memref<1x128xf32, #tpu.memory_space<vmem>>, %arg10: memref<16x128xf32, #tpu.memory_space<vmem>>) attributes {dimension_semantics = [#tpu.dimension_semantics<parallel>], iteration_bounds = array<i64: 1>, scalar_prefetch = 0 : i64, scratch_operands = 0 : i64, tpu.core_type = #tpu.core_type<tc>, window_params = [{transform_indices = @transform_0, window_bounds = array<i64: 16, 32>}, {transform_indices = @transform_1, window_bounds = array<i64: 16, 256>}, {pipeline_mode = #tpu.pipeline_mode<synchronous>, transform_indices = @transform_2, window_bounds = array<i64: 32, 1024>}, {pipeline_mode = #tpu.pipeline_mode<synchronous>, transform_indices = @transform_3, window_bounds = array<i64: 8, 512>}, {pipeline_mode = #tpu.pipeline_mode<synchronous>, transform_indices = @transform_4, window_bounds = array<i64: 512, 512>}, {pipeline_mode = #tpu.pipeline_mode<synchronous>, transform_indices = @transform_5, window_bounds = array<i64: 256, 512>}, {pipeline_mode = #tpu.pipeline_mode<synchronous>, transform_indices = @transform_6, window_bounds = array<i64: 512, 512>}, {pipeline_mode = #tpu.pipeline_mode<synchronous>, transform_indices = @transform_7, window_bounds = array<i64: 512, 128>}, {pipeline_mode = #tpu.pipeline_mode<synchronous>, transform_indices = @transform_8, window_bounds = array<i64: 1, 128>}, {transform_indices = @transform_9, window_bounds = array<i64: 16, 128>}]} {
    %c0 = arith.constant 0 : index
    %c0_0 = arith.constant 0 : index
    %0 = vector.load %arg1[%c0, %c0_0] : memref<16x32xbf16, #tpu.memory_space<vmem>>, vector<16x32xbf16>
    %c0_1 = arith.constant 0 : index
    %c0_2 = arith.constant 0 : index
    %1 = vector.load %arg3[%c0_1, %c0_2] : memref<32x1024xbf16, #tpu.memory_space<vmem>>, vector<32x1024xbf16>
    %cst = arith.constant dense<0.000000e+00> : vector<16x1024xf32>
    %2 = tpu.matmul %0, %1, %cst {dimension_numbers = #tpu.dot_dimension_numbers<[1], [0], [0], [1], [0, 0, 1, 1], [], []>} : vector<16x32xbf16>, vector<32x1024xbf16>, vector<16x1024xf32> -> vector<16x1024xf32>
    %c0_3 = arith.constant 0 : index
    %c0_4 = arith.constant 0 : index
    %3 = vector.load %arg4[%c0_3, %c0_4] : memref<8x512xf32, #tpu.memory_space<vmem>>, vector<1x512xf32>
    %c1 = arith.constant 1 : index
    %c0_5 = arith.constant 0 : index
    %4 = vector.load %arg4[%c1, %c0_5] : memref<8x512xf32, #tpu.memory_space<vmem>>, vector<1x512xf32>
    %c2 = arith.constant 2 : index
    %c0_6 = arith.constant 0 : index
    %5 = vector.load %arg4[%c2, %c0_6] : memref<8x512xf32, #tpu.memory_space<vmem>>, vector<1x512xf32>
    %c3 = arith.constant 3 : index
    %c0_7 = arith.constant 0 : index
    %6 = vector.load %arg4[%c3, %c0_7] : memref<8x512xf32, #tpu.memory_space<vmem>>, vector<1x512xf32>
    %c4 = arith.constant 4 : index
    %c0_8 = arith.constant 0 : index
    %7 = vector.load %arg4[%c4, %c0_8] : memref<8x512xf32, #tpu.memory_space<vmem>>, vector<1x512xf32>
    %c5 = arith.constant 5 : index
    %c0_9 = arith.constant 0 : index
    %8 = vector.load %arg4[%c5, %c0_9] : memref<8x512xf32, #tpu.memory_space<vmem>>, vector<1x512xf32>
    %9 = vector.extract_strided_slice %2 {offsets = [0, 0], sizes = [16, 512], strides = [1, 1]} : vector<16x1024xf32> to vector<16x512xf32>
    %10 = vector.broadcast %3 : vector<1x512xf32> to vector<16x512xf32>
    %11 = arith.addf %9, %10 : vector<16x512xf32>
    %12 = vector.extract_strided_slice %2 {offsets = [0, 512], sizes = [16, 512], strides = [1, 1]} : vector<16x1024xf32> to vector<16x512xf32>
    %cst_10 = arith.constant dense<0.000000e+00> : vector<16xf32>
    %13 = vector.multi_reduction <add>, %11, %cst_10 [1] : vector<16x512xf32> to vector<16xf32>
    %14 = vector.shape_cast %13 : vector<16xf32> to vector<16x1xf32>
    %cst_11 = arith.constant 5.120000e+02 : f32
    %15 = vector.broadcast %cst_11 : f32 to vector<16x1xf32>
    %16 = arith.divf %14, %15 : vector<16x1xf32>
    %17 = vector.broadcast %16 : vector<16x1xf32> to vector<16x512xf32>
    %18 = arith.subf %11, %17 : vector<16x512xf32>
    %19 = arith.mulf %18, %18 : vector<16x512xf32>
    %cst_12 = arith.constant dense<0.000000e+00> : vector<16xf32>
    %20 = vector.multi_reduction <add>, %19, %cst_12 [1] : vector<16x512xf32> to vector<16xf32>
    %21 = vector.shape_cast %20 : vector<16xf32> to vector<16x1xf32>
    %cst_13 = arith.constant 5.120000e+02 : f32
    %22 = vector.broadcast %cst_13 : f32 to vector<16x1xf32>
    %23 = arith.divf %21, %22 : vector<16x1xf32>
    %cst_14 = arith.constant 9.99999974E-6 : f32
    %24 = vector.broadcast %cst_14 : f32 to vector<16x1xf32>
    %25 = arith.addf %23, %24 : vector<16x1xf32>
    %26 = math.rsqrt %25 : vector<16x1xf32>
    %27 = vector.broadcast %26 : vector<16x1xf32> to vector<16x512xf32>
    %28 = arith.mulf %18, %27 : vector<16x512xf32>
    %29 = vector.broadcast %4 : vector<1x512xf32> to vector<16x512xf32>
    %30 = arith.mulf %28, %29 : vector<16x512xf32>
    %31 = vector.broadcast %5 : vector<1x512xf32> to vector<16x512xf32>
    %32 = arith.addf %30, %31 : vector<16x512xf32>
    %cst_15 = arith.constant 0.000000e+00 : f32
    %33 = vector.broadcast %cst_15 : f32 to vector<16x512xf32>
    %34 = arith.cmpf ogt, %32, %33 : vector<16x512xf32>
    %cst_16 = arith.constant 0.00999999977 : f32
    %35 = vector.broadcast %cst_16 : f32 to vector<16x512xf32>
    %36 = arith.mulf %35, %32 : vector<16x512xf32>
    %37 = arith.select %34, %32, %36 : vector<16x512xi1>, vector<16x512xf32>
    %38 = arith.truncf %37 : vector<16x512xf32> to vector<16x512xbf16>
    %c0_17 = arith.constant 0 : index
    %c0_18 = arith.constant 0 : index
    %39 = vector.load %arg5[%c0_17, %c0_18] : memref<512x512xbf16, #tpu.memory_space<vmem>>, vector<512x512xbf16>
    %cst_19 = arith.constant dense<0.000000e+00> : vector<16x512xf32>
    %40 = tpu.matmul %38, %39, %cst_19 {dimension_numbers = #tpu.dot_dimension_numbers<[1], [0], [0], [1], [0, 0, 1, 1], [], []>} : vector<16x512xbf16>, vector<512x512xbf16>, vector<16x512xf32> -> vector<16x512xf32>
    %41 = vector.broadcast %6 : vector<1x512xf32> to vector<16x512xf32>
    %42 = arith.addf %40, %41 : vector<16x512xf32>
    %43 = vector.extract_strided_slice %42 {offsets = [0, 0], sizes = [16, 256], strides = [1, 1]} : vector<16x512xf32> to vector<16x256xf32>
    %44 = vector.extract_strided_slice %42 {offsets = [0, 256], sizes = [16, 256], strides = [1, 1]} : vector<16x512xf32> to vector<16x256xf32>
    %45 = math.exp %44 : vector<16x256xf32>
    %cst_20 = arith.constant 1.001000e+00 : f32
    %46 = vector.broadcast %cst_20 : f32 to vector<16x256xf32>
    %47 = arith.mulf %45, %46 : vector<16x256xf32>
    %cst_21 = arith.constant 9.99999974E-6 : f32
    %48 = vector.broadcast %cst_21 : f32 to vector<16x256xf32>
    %49 = arith.addf %47, %48 : vector<16x256xf32>
    %c0_22 = arith.constant 0 : index
    %c0_23 = arith.constant 0 : index
    %50 = vector.load %arg2[%c0_22, %c0_23] : memref<16x256xf32, #tpu.memory_space<vmem>>, vector<16x256xf32>
    %51 = arith.mulf %49, %50 : vector<16x256xf32>
    %52 = arith.addf %43, %51 : vector<16x256xf32>
    %53 = arith.truncf %52 : vector<16x256xf32> to vector<16x256xbf16>
    %c0_24 = arith.constant 0 : index
    %c0_25 = arith.constant 0 : index
    %54 = vector.load %arg6[%c0_24, %c0_25] : memref<256x512xbf16, #tpu.memory_space<vmem>>, vector<256x512xbf16>
    %cst_26 = arith.constant dense<0.000000e+00> : vector<16x512xf32>
    %55 = tpu.matmul %53, %54, %cst_26 {dimension_numbers = #tpu.dot_dimension_numbers<[1], [0], [0], [1], [0, 0, 1, 1], [], []>} : vector<16x256xbf16>, vector<256x512xbf16>, vector<16x512xf32> -> vector<16x512xf32>
    %56 = arith.addf %12, %55 : vector<16x512xf32>
    %57 = vector.broadcast %7 : vector<1x512xf32> to vector<16x512xf32>
    %58 = arith.addf %56, %57 : vector<16x512xf32>
    %cst_27 = arith.constant 0.000000e+00 : f32
    %59 = vector.broadcast %cst_27 : f32 to vector<16x512xf32>
    %60 = arith.cmpf ogt, %58, %59 : vector<16x512xf32>
    %cst_28 = arith.constant 0.00999999977 : f32
    %61 = vector.broadcast %cst_28 : f32 to vector<16x512xf32>
    %62 = arith.mulf %61, %58 : vector<16x512xf32>
    %63 = arith.select %60, %58, %62 : vector<16x512xi1>, vector<16x512xf32>
    %64 = arith.truncf %63 : vector<16x512xf32> to vector<16x512xbf16>
    %c0_29 = arith.constant 0 : index
    %c0_30 = arith.constant 0 : index
    %65 = vector.load %arg7[%c0_29, %c0_30] : memref<512x512xbf16, #tpu.memory_space<vmem>>, vector<512x512xbf16>
    %cst_31 = arith.constant dense<0.000000e+00> : vector<16x512xf32>
    %66 = tpu.matmul %64, %65, %cst_31 {dimension_numbers = #tpu.dot_dimension_numbers<[1], [0], [0], [1], [0, 0, 1, 1], [], []>} : vector<16x512xbf16>, vector<512x512xbf16>, vector<16x512xf32> -> vector<16x512xf32>
    %67 = vector.broadcast %8 : vector<1x512xf32> to vector<16x512xf32>
    %68 = arith.addf %66, %67 : vector<16x512xf32>
    %cst_32 = arith.constant 0.000000e+00 : f32
    %69 = vector.broadcast %cst_32 : f32 to vector<16x512xf32>
    %70 = arith.cmpf ogt, %68, %69 : vector<16x512xf32>
    %cst_33 = arith.constant 0.00999999977 : f32
    %71 = vector.broadcast %cst_33 : f32 to vector<16x512xf32>
    %72 = arith.mulf %71, %68 : vector<16x512xf32>
    %73 = arith.select %70, %68, %72 : vector<16x512xi1>, vector<16x512xf32>
    %74 = arith.truncf %73 : vector<16x512xf32> to vector<16x512xbf16>
    %c0_34 = arith.constant 0 : index
    %c0_35 = arith.constant 0 : index
    %75 = vector.load %arg8[%c0_34, %c0_35] : memref<512x128xbf16, #tpu.memory_space<vmem>>, vector<512x128xbf16>
    %cst_36 = arith.constant dense<0.000000e+00> : vector<16x128xf32>
    %76 = tpu.matmul %74, %75, %cst_36 {dimension_numbers = #tpu.dot_dimension_numbers<[1], [0], [0], [1], [0, 0, 1, 1], [], []>} : vector<16x512xbf16>, vector<512x128xbf16>, vector<16x128xf32> -> vector<16x128xf32>
    %c0_37 = arith.constant 0 : index
    %c0_38 = arith.constant 0 : index
    %77 = vector.load %arg9[%c0_37, %c0_38] : memref<1x128xf32, #tpu.memory_space<vmem>>, vector<1x128xf32>
    %78 = vector.broadcast %77 : vector<1x128xf32> to vector<16x128xf32>
    %79 = arith.addf %76, %78 : vector<16x128xf32>
    %c0_39 = arith.constant 0 : index
    %c0_40 = arith.constant 0 : index
    %80 = vector.load %arg10[%c0_39, %c0_40] : memref<16x128xf32, #tpu.memory_space<vmem>>, vector<16x128xf32>
    tpu.vector_store %arg10[%c0_39, %c0_40], %79 {strides = array<i32>} : memref<16x128xf32, #tpu.memory_space<vmem>>, vector<16x128xf32>,
    return
  }
  func.func @transform_0(%arg0: i32) -> (i32, i32) {
    %c0_i32 = arith.constant 0 : i32
    %c0_i32_0 = arith.constant 0 : i32
    return %arg0, %c0_i32 : i32, i32
  }
  func.func @transform_1(%arg0: i32) -> (i32, i32) {
    %c0_i32 = arith.constant 0 : i32
    %c0_i32_0 = arith.constant 0 : i32
    return %arg0, %c0_i32 : i32, i32
  }
  func.func @transform_2(%arg0: i32) -> (i32, i32) {
    %c0_i32 = arith.constant 0 : i32
    %c0_i32_0 = arith.constant 0 : i32
    %c0_i32_1 = arith.constant 0 : i32
    return %c0_i32, %c0_i32_0 : i32, i32
  }
  func.func @transform_3(%arg0: i32) -> (i32, i32) {
    %c0_i32 = arith.constant 0 : i32
    %c0_i32_0 = arith.constant 0 : i32
    %c0_i32_1 = arith.constant 0 : i32
    return %c0_i32, %c0_i32_0 : i32, i32
  }
  func.func @transform_4(%arg0: i32) -> (i32, i32) {
    %c0_i32 = arith.constant 0 : i32
    %c0_i32_0 = arith.constant 0 : i32
    %c0_i32_1 = arith.constant 0 : i32
    return %c0_i32, %c0_i32_0 : i32, i32
  }
  func.func @transform_5(%arg0: i32) -> (i32, i32) {
    %c0_i32 = arith.constant 0 : i32
    %c0_i32_0 = arith.constant 0 : i32
    %c0_i32_1 = arith.constant 0 : i32
    return %c0_i32, %c0_i32_0 : i32, i32
  }
  func.func @transform_6(%arg0: i32) -> (i32, i32) {
    %c0_i32 = arith.constant 0 : i32
    %c0_i32_0 = arith.constant 0 : i32
    %c0_i32_1 = arith.constant 0 : i32
    return %c0_i32, %c0_i32_0 : i32, i32
  }
  func.func @transform_7(%arg0: i32) -> (i32, i32) {
    %c0_i32 = arith.constant 0 : i32
    %c0_i32_0 = arith.constant 0 : i32
    %c0_i32_1 = arith.constant 0 : i32
    return %c0_i32, %c0_i32_0 : i32, i32
  }
  func.func @transform_8(%arg0: i32) -> (i32, i32) {
    %c0_i32 = arith.constant 0 : i32
    %c0_i32_0 = arith.constant 0 : i32
    %c0_i32_1 = arith.constant 0 : i32
    return %c0_i32, %c0_i32_0 : i32, i32
  }
  func.func @transform_9(%arg0: i32) -> (i32, i32) {
    %c0_i32 = arith.constant 0 : i32
    %c0_i32_0 = arith.constant 0 : i32
    return %arg0, %c0_i32 : i32, i32
  }
}

</mosaic_0001>

<llo_original>
// kernel: tpu_custom_call.1
$region0: #{tpu_custom_call.1}
  #allocation0 [shape = 'u32[]', space=smem, size = 0x4, offset = 0x4, fixed_abs, tag = 'smem constant byte address 0x4 - core index']
  #allocation1 [shape = 'u32[72,128]{1,0:T(1,128)}', space=vmem, size = 0x9000, scoped, tag = 'internal scratch']
  %s0 = inlined_call_operand.hbm [shape: bf16[16,32], index: 0, kind: input, shape index: {}]
  %s1 = inlined_call_operand.hbm [shape: f32[16,256], index: 1, kind: input, shape index: {}]
  %s2 = inlined_call_operand.hbm [shape: bf16[32,1024], index: 2, kind: input, shape index: {}]
  %s3 = inlined_call_operand.hbm [shape: f32[8,512], index: 3, kind: input, shape index: {}]
  %s4 = inlined_call_operand.hbm [shape: bf16[512,512], index: 4, kind: input, shape index: {}]
  %s5 = inlined_call_operand.hbm [shape: bf16[256,512], index: 5, kind: input, shape index: {}]
  %s6 = inlined_call_operand.hbm [shape: bf16[512,512], index: 6, kind: input, shape index: {}]
  %s7 = inlined_call_operand.hbm [shape: bf16[512,128], index: 7, kind: input, shape index: {}]
  %s8 = inlined_call_operand.vmem [shape: f32[1,128], index: 8, kind: input, shape index: {}]
  %s9 = inlined_call_operand.hbm [shape: f32[16,128], index: 9, kind: output, shape index: {}]
  %s10 = sld [smem:[#allocation0]]
  $region78: #{tpu_custom_call.1} parent=0
    _
  %s12 = ssub.s32 1, %s10
  %s13 = scalar_select 0, %s12, %s10
  $region1: #{tpu_custom_call.1} parent=0
    #allocation2 [shape = 'u8[4096]{0}', space=vmem, size = 0x1000, scoped, tag = 'input window, operand 0, single buffered']
    #allocation3 [shape = 's32[1]{0}', space=sflag, size = 0x4, scoped, tag = 'scoped memory for tpu_custom_call.1']
    #allocation4 [shape = 's32[1]{0}', space=sflag, size = 0x4, scoped, tag = 'scoped memory for tpu_custom_call.1']
    #allocation5 [shape = 'u8[16384]{0}', space=vmem, size = 0x4000, scoped, tag = 'input window, operand 1, single buffered']
    #allocation6 [shape = 's32[1]{0}', space=sflag, size = 0x4, scoped, tag = 'scoped memory for tpu_custom_call.1']
    #allocation7 [shape = 'u8[65536]{0}', space=vmem, size = 0x10000, scoped, tag = 'input window, operand 2, single buffered']
    #allocation8 [shape = 'u8[16384]{0}', space=vmem, size = 0x4000, scoped, tag = 'input window, operand 3, single buffered']
    #allocation9 [shape = 's32[1]{0}', space=sflag, size = 0x4, scoped, tag = 'scoped memory for tpu_custom_call.1']
    #allocation10 [shape = 'u8[524288]{0}', space=vmem, size = 0x80000, scoped, tag = 'input window, operand 4, single buffered']
    #allocation11 [shape = 'u8[262144]{0}', space=vmem, size = 0x40000, scoped, tag = 'input window, operand 5, single buffered']
    #allocation12 [shape = 's32[1]{0}', space=sflag, size = 0x4, scoped, tag = 'scoped memory for tpu_custom_call.1']
    #allocation13 [shape = 'u8[524288]{0}', space=vmem, size = 0x80000, scoped, tag = 'input window, operand 6, single buffered']
    #allocation14 [shape = 'u8[131072]{0}', space=vmem, size = 0x20000, scoped, tag = 'input window, operand 7, single buffered']
    #allocation15 [shape = 's32[1]{0}', space=sflag, size = 0x4, scoped, tag = 'scoped memory for tpu_custom_call.1']
    #allocation16 [shape = 'u8[8192]{0}', space=vmem, size = 0x2000, scoped, tag = 'output window, operand 0, single buffered']
    %14 = vsyncpa [#allocation3], 0
    %15 = vsyncpa [#allocation6], 0
    %16 = vsyncpa [#allocation9], 0
    %17 = vsyncpa [#allocation12], 0
    %18 = vsyncpa [#allocation15], 0
    %19 = vsyncpa [#allocation4], 0
    // Predicated region
    $region2: #{tpu_custom_call.1} parent=1 // pred_check
      _
    $region3: #{tpu_custom_call.1} parent=1 // pred_check_branch
      %21 = sbr.rel (0) target = $region5
    $region4: #{tpu_custom_call.1} parent=1 // pred_region
      %23 = vsyncadd [#allocation3], 0
      %s24 = sshll.u32 %s0, 4
      %s25 = int_to_ptr.hbm [resolvable:$true] %s24
      %s26 = sshll.u32 [#allocation2], 4
      %s27 = int_to_ptr.vmem [resolvable:$true] %s26
      %32 = dma.hbm_to_vmem [thread:$0]  %s25, 128, %s27, [#allocation3], 64, 64, 4
    $region5: #{tpu_custom_call.1} parent=1 // pred_fallthru
      _
    // Predicated region
    $region6: #{tpu_custom_call.1} parent=1 // pred_check
      _
    $region7: #{tpu_custom_call.1} parent=1 // pred_check_branch
      %34 = sbr.rel (0) target = $region9
    $region8: #{tpu_custom_call.1} parent=1 // pred_region
      %36 = vsyncadd [#allocation6], 0
      %s37 = sshll.u32 %s1, 4
      %s38 = int_to_ptr.hbm [resolvable:$true] %s37
      %s39 = sshll.u32 [#allocation5], 4
      %s40 = int_to_ptr.vmem [resolvable:$true] %s39
      %45 = dma.hbm_to_vmem [thread:$0]  %s38, 512, %s40, [#allocation6], 256, 256, 16
    $region9: #{tpu_custom_call.1} parent=1 // pred_fallthru
      _
    // Predicated region
    $region10: #{tpu_custom_call.1} parent=1 // pred_check
      _
    $region11: #{tpu_custom_call.1} parent=1 // pred_check_branch
      %47 = sbr.rel (0) target = $region13
    $region12: #{tpu_custom_call.1} parent=1 // pred_region
      %49 = vsyncadd [#allocation6], 0
      %s50 = sshll.u32 %s2, 4
      %s51 = int_to_ptr.hbm [resolvable:$true] %s50
      %s52 = sshll.u32 [#allocation7], 4
      %s53 = int_to_ptr.vmem [resolvable:$true] %s52
      %58 = dma.hbm_to_vmem [thread:$0]  %s51, 2048, %s53, [#allocation6], 512, 512, 32
    $region13: #{tpu_custom_call.1} parent=1 // pred_fallthru
      _
    // Predicated region
    $region14: #{tpu_custom_call.1} parent=1 // pred_check
      _
    $region15: #{tpu_custom_call.1} parent=1 // pred_check_branch
      %60 = sbr.rel (0) target = $region17
    $region16: #{tpu_custom_call.1} parent=1 // pred_region
      %62 = vsyncadd [#allocation9], 0
      %s64 = sshll.u32 %s3, 4
      %s65 = int_to_ptr.hbm [resolvable:$true] %s64
      %s66 = sshll.u32 [#allocation8], 4
      %s67 = int_to_ptr.vmem [resolvable:$true] %s66
      %69 = dma.hbm_to_vmem [thread:$0]  %s65, 512, %s67, [#allocation9]
    $region17: #{tpu_custom_call.1} parent=1 // pred_fallthru
      _
    // Predicated region
    $region18: #{tpu_custom_call.1} parent=1 // pred_check
      _
    $region19: #{tpu_custom_call.1} parent=1 // pred_check_branch
      %71 = sbr.rel (0) target = $region21
    $region20: #{tpu_custom_call.1} parent=1 // pred_region
      %73 = vsyncadd [#allocation9], 0
      %s74 = sshll.u32 %s4, 4
      %s75 = int_to_ptr.hbm [resolvable:$true] %s74
      %s76 = sshll.u32 [#allocation10], 4
      %s77 = int_to_ptr.vmem [resolvable:$true] %s76
      %82 = dma.hbm_to_vmem [thread:$0]  %s75, 16384, %s77, [#allocation9], 256, 256, 16
    $region21: #{tpu_custom_call.1} parent=1 // pred_fallthru
      _
    // Predicated region
    $region22: #{tpu_custom_call.1} parent=1 // pred_check
      _
    $region23: #{tpu_custom_call.1} parent=1 // pred_check_branch
      %84 = sbr.rel (0) target = $region25
    $region24: #{tpu_custom_call.1} parent=1 // pred_region
      %86 = vsyncadd [#allocation12], 0
      %s87 = sshll.u32 %s5, 4
      %s88 = int_to_ptr.hbm [resolvable:$true] %s87
      %s89 = sshll.u32 [#allocation11], 4
      %s90 = int_to_ptr.vmem [resolvable:$true] %s89
      %95 = dma.hbm_to_vmem [thread:$0]  %s88, 8192, %s90, [#allocation12], 256, 256, 16
    $region25: #{tpu_custom_call.1} parent=1 // pred_fallthru
      _
    // Predicated region
    $region26: #{tpu_custom_call.1} parent=1 // pred_check
      _
    $region27: #{tpu_custom_call.1} parent=1 // pred_check_branch
      %97 = sbr.rel (0) target = $region29
    $region28: #{tpu_custom_call.1} parent=1 // pred_region
      %99 = vsyncadd [#allocation12], 0
      %s100 = sshll.u32 %s6, 4
      %s101 = int_to_ptr.hbm [resolvable:$true] %s100
      %s102 = sshll.u32 [#allocation13], 4
      %s103 = int_to_ptr.vmem [resolvable:$true] %s102
      %108 = dma.hbm_to_vmem [thread:$0]  %s101, 16384, %s103, [#allocation12], 256, 256, 16
    $region29: #{tpu_custom_call.1} parent=1 // pred_fallthru
      _
    // Predicated region
    $region30: #{tpu_custom_call.1} parent=1 // pred_check
      _
    $region31: #{tpu_custom_call.1} parent=1 // pred_check_branch
      %110 = sbr.rel (0) target = $region33
    $region32: #{tpu_custom_call.1} parent=1 // pred_region
      %112 = vsyncadd [#allocation15], 0
      %s113 = sshll.u32 %s7, 4
      %s114 = int_to_ptr.hbm [resolvable:$true] %s113
      %s115 = sshll.u32 [#allocation14], 4
      %s116 = int_to_ptr.vmem [resolvable:$true] %s115
      %121 = dma.hbm_to_vmem [thread:$0]  %s114, 4096, %s116, [#allocation15], 64, 64, 4
    $region33: #{tpu_custom_call.1} parent=1 // pred_fallthru
      _
    // Predicated region
    $region34: #{tpu_custom_call.1} parent=1 // pred_check
      _
    $region35: #{tpu_custom_call.1} parent=1 // pred_check_branch
      %123 = sbr.rel (0) target = $region37
    $region36: #{tpu_custom_call.1} parent=1 // pred_region
      _
    $region37: #{tpu_custom_call.1} parent=1 // pred_fallthru
      _
    // Predicated region
    $region38: #{tpu_custom_call.1} parent=1 // pred_check
      _
    $region39: #{tpu_custom_call.1} parent=1 // pred_check_branch
      %125 = sbr.rel (0) target = $region41
    $region40: #{tpu_custom_call.1} parent=1 // pred_region
      %127 = dma.done [#allocation3], 128
    $region41: #{tpu_custom_call.1} parent=1 // pred_fallthru
      _
    // Predicated region
    $region42: #{tpu_custom_call.1} parent=1 // pred_check
      _
    $region43: #{tpu_custom_call.1} parent=1 // pred_check_branch
      %129 = sbr.rel (0) target = $region45
    $region44: #{tpu_custom_call.1} parent=1 // pred_region
      %131 = dma.done [#allocation6], 512
    $region45: #{tpu_custom_call.1} parent=1 // pred_fallthru
      _
    // Predicated region
    $region46: #{tpu_custom_call.1} parent=1 // pred_check
      _
    $region47: #{tpu_custom_call.1} parent=1 // pred_check_branch
      %133 = sbr.rel (0) target = $region49
    $region48: #{tpu_custom_call.1} parent=1 // pred_region
      %135 = dma.done [#allocation6], 2048
    $region49: #{tpu_custom_call.1} parent=1 // pred_fallthru
      _
    // Predicated region
    $region50: #{tpu_custom_call.1} parent=1 // pred_check
      _
    $region51: #{tpu_custom_call.1} parent=1 // pred_check_branch
      %137 = sbr.rel (0) target = $region53
    $region52: #{tpu_custom_call.1} parent=1 // pred_region
      %139 = dma.done [#allocation9], 512
    $region53: #{tpu_custom_call.1} parent=1 // pred_fallthru
      _
    // Predicated region
    $region54: #{tpu_custom_call.1} parent=1 // pred_check
      _
    $region55: #{tpu_custom_call.1} parent=1 // pred_check_branch
      %141 = sbr.rel (0) target = $region57
    $region56: #{tpu_custom_call.1} parent=1 // pred_region
      %143 = dma.done [#allocation9], 16384
    $region57: #{tpu_custom_call.1} parent=1 // pred_fallthru
      _
    // Predicated region
    $region58: #{tpu_custom_call.1} parent=1 // pred_check
      _
    $region59: #{tpu_custom_call.1} parent=1 // pred_check_branch
      %145 = sbr.rel (0) target = $region61
    $region60: #{tpu_custom_call.1} parent=1 // pred_region
      %147 = dma.done [#allocation12], 8192
    $region61: #{tpu_custom_call.1} parent=1 // pred_fallthru
      _
    // Predicated region
    $region62: #{tpu_custom_call.1} parent=1 // pred_check
      _
    $region63: #{tpu_custom_call.1} parent=1 // pred_check_branch
      %149 = sbr.rel (0) target = $region65
    $region64: #{tpu_custom_call.1} parent=1 // pred_region
      %151 = dma.done [#allocation12], 16384
    $region65: #{tpu_custom_call.1} parent=1 // pred_fallthru
      _
    // Predicated region
    $region66: #{tpu_custom_call.1} parent=1 // pred_check
      _
    $region67: #{tpu_custom_call.1} parent=1 // pred_check_branch
      %153 = sbr.rel (0) target = $region69
    $region68: #{tpu_custom_call.1} parent=1 // pred_region
      %155 = dma.done [#allocation15], 4096
    $region69: #{tpu_custom_call.1} parent=1 // pred_fallthru
      _
    %v157 = vld [vmem:[#allocation2] sm:$0xf]
    %v158 = vld [vmem:[#allocation2 + $0x4] sm:$0xf]
    %v159 = vld [vmem:[#allocation7] sm:$0xff]
    %v160 = vld [vmem:[#allocation7 + $0x8] sm:$0xff]
    %v161 = vld [vmem:[#allocation7 + $0x10] sm:$0xff]
    %v162 = vld [vmem:[#allocation7 + $0x18] sm:$0xff]
    %v163 = vld [vmem:[#allocation7 + $0x20] sm:$0xff]
    %v164 = vld [vmem:[#allocation7 + $0x28] sm:$0xff]
    %v165 = vld [vmem:[#allocation7 + $0x30] sm:$0xff]
    %v166 = vld [vmem:[#allocation7 + $0x38] sm:$0xff]
    %v167 = vld [vmem:[#allocation7 + $0x40] sm:$0xff]
    %v168 = vld [vmem:[#allocation7 + $0x48] sm:$0xff]
    %v169 = vld [vmem:[#allocation7 + $0x50] sm:$0xff]
    %v170 = vld [vmem:[#allocation7 + $0x58] sm:$0xff]
    %v171 = vld [vmem:[#allocation7 + $0x60] sm:$0xff]
    %v172 = vld [vmem:[#allocation7 + $0x68] sm:$0xff]
    %v173 = vld [vmem:[#allocation7 + $0x70] sm:$0xff]
    %v174 = vld [vmem:[#allocation7 + $0x78] sm:$0xff]
    %v177 = vunpack.c.l.b16 %v157
    %v178 = vunpack.c.l.b16 %v158
    %v179 = vpack.c.b16 %v178, %v177
    %v196 = vunpack.c.l.b16 %v159
    %v197 = vunpack.c.h.b16 %v159
    %v198 = vunpack.c.l.b16 %v160
    %v199 = vunpack.c.h.b16 %v160
    %v200 = vunpack.c.l.b16 %v161
    %v201 = vunpack.c.h.b16 %v161
    %v202 = vunpack.c.l.b16 %v162
    %v203 = vunpack.c.h.b16 %v162
    %v204 = vunpack.c.l.b16 %v163
    %v205 = vunpack.c.h.b16 %v163
    %v206 = vunpack.c.l.b16 %v164
    %v207 = vunpack.c.h.b16 %v164
    %v208 = vunpack.c.l.b16 %v165
    %v209 = vunpack.c.h.b16 %v165
    %v210 = vunpack.c.l.b16 %v166
    %v211 = vunpack.c.h.b16 %v166
    %v212 = vunpack.c.l.b16 %v167
    %v213 = vunpack.c.h.b16 %v167
    %v214 = vunpack.c.l.b16 %v168
    %v215 = vunpack.c.h.b16 %v168
    %v216 = vunpack.c.l.b16 %v169
    %v217 = vunpack.c.h.b16 %v169
    %v218 = vunpack.c.l.b16 %v170
    %v219 = vunpack.c.h.b16 %v170
    %v220 = vunpack.c.l.b16 %v171
    %v221 = vunpack.c.h.b16 %v171
    %v222 = vunpack.c.l.b16 %v172
    %v223 = vunpack.c.h.b16 %v172
    %v224 = vunpack.c.l.b16 %v173
    %v225 = vunpack.c.h.b16 %v173
    %v226 = vunpack.c.l.b16 %v174
    %v227 = vunpack.c.h.b16 %v174
    %v228 = vpack.c.b16 %v204, %v196
    %v229 = vpack.c.b16 %v205, %v197
    %v230 = vpack.c.b16 %v206, %v198
    %v231 = vpack.c.b16 %v207, %v199
    %v232 = vpack.c.b16 %v208, %v200
    %v233 = vpack.c.b16 %v209, %v201
    %v234 = vpack.c.b16 %v210, %v202
    %v235 = vpack.c.b16 %v211, %v203
    %v236 = vpack.c.b16 %v220, %v212
    %v237 = vpack.c.b16 %v221, %v213
    %v238 = vpack.c.b16 %v222, %v214
    %v239 = vpack.c.b16 %v223, %v215
    %v240 = vpack.c.b16 %v224, %v216
    %v241 = vpack.c.b16 %v225, %v217
    %v242 = vpack.c.b16 %v226, %v218
    %v243 = vpack.c.b16 %v227, %v219
    %vm260 = vcmask 261120
    %v262 = vsel %vm260, %v179, 0
    %264 = vmatpush.bf16.msra.mxu0 0
    %265 = vmatpush.bf16.msra.mxu0 0
    %266 = vmatpush.bf16.msra.mxu0 0
    %267 = vmatpush.bf16.msra.mxu0 0
    %268 = vmatpush.bf16.msra.mxu0 0
    %269 = vmatpush.bf16.msra.mxu0 0
    %270 = vmatpush.bf16.msra.mxu0 %v236
    %271 = vmatpush.bf16.msra.mxu0 %v228
    %272 = vmatmul.bf16.gmra.mxu0 %v262
    %v273 = vpop.f32.mrf.mxu0
    %v274 = vadd.f32 0.0, %v273
    %v275 = vpop.f32.mrf.mxu0
    %v276 = vadd.f32 0.0, %v275
    %277 = vdwg.mxu0
    %278 = vmatpush.bf16.msra.mxu0 0
    %279 = vmatpush.bf16.msra.mxu0 0
    %280 = vmatpush.bf16.msra.mxu0 0
    %281 = vmatpush.bf16.msra.mxu0 0
    %282 = vmatpush.bf16.msra.mxu0 0
    %283 = vmatpush.bf16.msra.mxu0 0
    %284 = vmatpush.bf16.msra.mxu0 %v237
    %285 = vmatpush.bf16.msra.mxu0 %v229
    %286 = vmatmul.bf16.gmra.mxu0 %v262
    %v287 = vpop.f32.mrf.mxu0
    %v288 = vadd.f32 0.0, %v287
    %v289 = vpop.f32.mrf.mxu0
    %v290 = vadd.f32 0.0, %v289
    %291 = vdwg.mxu0
    %292 = vmatpush.bf16.msra.mxu0 0
    %293 = vmatpush.bf16.msra.mxu0 0
    %294 = vmatpush.bf16.msra.mxu0 0
    %295 = vmatpush.bf16.msra.mxu0 0
    %296 = vmatpush.bf16.msra.mxu0 0
    %297 = vmatpush.bf16.msra.mxu0 0
    %298 = vmatpush.bf16.msra.mxu0 %v238
    %299 = vmatpush.bf16.msra.mxu0 %v230
    %300 = vmatmul.bf16.gmra.mxu0 %v262
    %v301 = vpop.f32.mrf.mxu0
    %v302 = vadd.f32 0.0, %v301
    %v303 = vpop.f32.mrf.mxu0
    %v304 = vadd.f32 0.0, %v303
    %305 = vdwg.mxu0
    %306 = vmatpush.bf16.msra.mxu0 0
    %307 = vmatpush.bf16.msra.mxu0 0
    %308 = vmatpush.bf16.msra.mxu0 0
    %309 = vmatpush.bf16.msra.mxu0 0
    %310 = vmatpush.bf16.msra.mxu0 0
    %311 = vmatpush.bf16.msra.mxu0 0
    %312 = vmatpush.bf16.msra.mxu0 %v239
    %313 = vmatpush.bf16.msra.mxu0 %v231
    %314 = vmatmul.bf16.gmra.mxu0 %v262
    %v315 = vpop.f32.mrf.mxu0
    %v316 = vadd.f32 0.0, %v315
    %v317 = vpop.f32.mrf.mxu0
    %v318 = vadd.f32 0.0, %v317
    %319 = vdwg.mxu0
    %320 = vmatpush.bf16.msra.mxu0 0
    %321 = vmatpush.bf16.msra.mxu0 0
    %322 = vmatpush.bf16.msra.mxu0 0
    %323 = vmatpush.bf16.msra.mxu0 0
    %324 = vmatpush.bf16.msra.mxu0 0
    %325 = vmatpush.bf16.msra.mxu0 0
    %326 = vmatpush.bf16.msra.mxu0 %v240
    %327 = vmatpush.bf16.msra.mxu0 %v232
    %328 = vmatmul.bf16.gmra.mxu0 %v262
    %v329 = vpop.f32.mrf.mxu0
    %v330 = vadd.f32 0.0, %v329
    %v331 = vpop.f32.mrf.mxu0
    %v332 = vadd.f32 0.0, %v331
    %333 = vdwg.mxu0
    %334 = vmatpush.bf16.msra.mxu0 0
    %335 = vmatpush.bf16.msra.mxu0 0
    %336 = vmatpush.bf16.msra.mxu0 0
    %337 = vmatpush.bf16.msra.mxu0 0
    %338 = vmatpush.bf16.msra.mxu0 0
    %339 = vmatpush.bf16.msra.mxu0 0
    %340 = vmatpush.bf16.msra.mxu0 %v241
    %341 = vmatpush.bf16.msra.mxu0 %v233
    %342 = vmatmul.bf16.gmra.mxu0 %v262
    %v343 = vpop.f32.mrf.mxu0
    %v344 = vadd.f32 0.0, %v343
    %v345 = vpop.f32.mrf.mxu0
    %v346 = vadd.f32 0.0, %v345
    %347 = vdwg.mxu0
    %348 = vmatpush.bf16.msra.mxu0 0
    %349 = vmatpush.bf16.msra.mxu0 0
    %350 = vmatpush.bf16.msra.mxu0 0
    %351 = vmatpush.bf16.msra.mxu0 0
    %352 = vmatpush.bf16.msra.mxu0 0
    %353 = vmatpush.bf16.msra.mxu0 0
    %354 = vmatpush.bf16.msra.mxu0 %v242
    %355 = vmatpush.bf16.msra.mxu0 %v234
    %356 = vmatmul.bf16.gmra.mxu0 %v262
    %v357 = vpop.f32.mrf.mxu0
    %v358 = vadd.f32 0.0, %v357
    %v359 = vpop.f32.mrf.mxu0
    %v360 = vadd.f32 0.0, %v359
    %361 = vdwg.mxu0
    %362 = vmatpush.bf16.msra.mxu0 0
    %363 = vmatpush.bf16.msra.mxu0 0
    %364 = vmatpush.bf16.msra.mxu0 0
    %365 = vmatpush.bf16.msra.mxu0 0
    %366 = vmatpush.bf16.msra.mxu0 0
    %367 = vmatpush.bf16.msra.mxu0 0
    %368 = vmatpush.bf16.msra.mxu0 %v243
    %369 = vmatpush.bf16.msra.mxu0 %v235
    %370 = vmatmul.bf16.gmra.mxu0 %v262
    %v371 = vpop.f32.mrf.mxu0
    %v372 = vadd.f32 0.0, %v371
    %v373 = vpop.f32.mrf.mxu0
    %v374 = vadd.f32 0.0, %v373
    %375 = vdwg.mxu0
    %v376 = vld [vmem:[#allocation8] ss:$8 sm:$0xf]
    %s377 = scalar_lea.vmem [#allocation8], 1
    %v378 = vld [vmem:[%s377] ss:$8 sm:$0xf]
    %s379 = scalar_lea.vmem [#allocation8], 2
    %v380 = vld [vmem:[%s379] ss:$8 sm:$0xf]
    %s381 = scalar_lea.vmem [#allocation8], 3
    %v382 = vld [vmem:[%s381] ss:$8 sm:$0xf]
    %s383 = scalar_lea.vmem [#allocation8], 4
    %v384 = vld [vmem:[%s383] ss:$8 sm:$0xf]
    %s385 = scalar_lea.vmem [#allocation8], 5
    %v386 = vld [vmem:[%s385] ss:$8 sm:$0xf]
    %v388 = vperm.slane %v376, 0
    %v389 = vperm.slane %v376, 1
    %v390 = vperm.slane %v376, 2
    %v391 = vperm.slane %v376, 3
    %v396 = vadd.f32 %v274, %v388
    %v397 = vadd.f32 %v288, %v389
    %v398 = vadd.f32 %v302, %v390
    %v399 = vadd.f32 %v316, %v391
    %v400 = vadd.f32 %v276, %v388
    %v401 = vadd.f32 %v290, %v389
    %v402 = vadd.f32 %v304, %v390
    %v403 = vadd.f32 %v318, %v391
    %v404 = vadd.f32 %v396, %v397
    %v405 = vadd.f32 %v404, %v398
    %v406 = vadd.f32 %v405, %v399
    %407 = vadd.xlane.f32.xlu0 %v406
    %v408 = vpop.xlane.xlu0 %407
    %v409 = vadd.f32 %v400, %v401
    %v410 = vadd.f32 %v409, %v402
    %v411 = vadd.f32 %v410, %v403
    %412 = vadd.xlane.f32.xlu0 %v411
    %v413 = vpop.xlane.xlu0 %412
    %v414 = vrcp.pop 512.0
    %v415 = vmul.f32 512.0, %v414
    %v416 = vsub.f32 1.0, %v415
    %v417 = vmul.f32 %v414, %v416
    %v418 = vadd.f32 %v414, %v417
    %vm419 = vweird.f32 %v414
    %v420 = vsel %vm419, %v414, %v418
    %v421 = vmul.f32 %v408, %v420
    %v422 = vmul.f32 %v413, %v420
    %v423 = vsub.f32 %v396, %v421
    %v424 = vsub.f32 %v397, %v421
    %v425 = vsub.f32 %v398, %v421
    %v426 = vsub.f32 %v399, %v421
    %v427 = vsub.f32 %v400, %v422
    %v428 = vsub.f32 %v401, %v422
    %v429 = vsub.f32 %v402, %v422
    %v430 = vsub.f32 %v403, %v422
    %v431 = vmul.f32 %v423, %v423
    %v432 = vmul.f32 %v424, %v424
    %v433 = vmul.f32 %v425, %v425
    %v434 = vmul.f32 %v426, %v426
    %v435 = vmul.f32 %v427, %v427
    %v436 = vmul.f32 %v428, %v428
    %v437 = vmul.f32 %v429, %v429
    %v438 = vmul.f32 %v430, %v430
    %v439 = vadd.f32 %v431, %v432
    %v440 = vadd.f32 %v439, %v433
    %v441 = vadd.f32 %v440, %v434
    %442 = vadd.xlane.f32.xlu0 %v441
    %v443 = vpop.xlane.xlu0 %442
    %v444 = vadd.f32 %v435, %v436
    %v445 = vadd.f32 %v444, %v437
    %v446 = vadd.f32 %v445, %v438
    %447 = vadd.xlane.f32.xlu0 %v446
    %v448 = vpop.xlane.xlu0 %447
    %v449 = vmul.f32 %v443, %v420
    %v450 = vmul.f32 %v448, %v420
    %v451 = vadd.f32 %v449, 1e-05
    %v452 = vadd.f32 %v450, 1e-05
    %v453 = vrsqrt.pop %v451
    %v454 = vmul.f32 %v453, %v451
    %v455 = vmul.f32 %v454, %v453
    %v456 = vmul.f32 0.5, %v455
    %v457 = vsub.f32 1.5, %v456
    %v458 = vmul.f32 %v453, %v457
    %vm459 = vweird.f32 %v451
    %vm460 = vweird.f32 %v453
    %vm461 = vmor %vm459, %vm460
    %v462 = vsel %vm461, %v453, %v458
    %v463 = vrsqrt.pop %v452
    %v464 = vmul.f32 %v463, %v452
    %v465 = vmul.f32 %v464, %v463
    %v466 = vmul.f32 0.5, %v465
    %v467 = vsub.f32 1.5, %v466
    %v468 = vmul.f32 %v463, %v467
    %vm469 = vweird.f32 %v452
    %vm470 = vweird.f32 %v463
    %vm471 = vmor %vm469, %vm470
    %v472 = vsel %vm471, %v463, %v468
    %v473 = vmul.f32 %v423, %v462
    %v474 = vmul.f32 %v424, %v462
    %v475 = vmul.f32 %v425, %v462
    %v476 = vmul.f32 %v426, %v462
    %v477 = vmul.f32 %v427, %v472
    %v478 = vmul.f32 %v428, %v472
    %v479 = vmul.f32 %v429, %v472
    %v480 = vmul.f32 %v430, %v472
    %v482 = vperm.slane %v378, 0
    %v483 = vperm.slane %v378, 1
    %v484 = vperm.slane %v378, 2
    %v485 = vperm.slane %v378, 3
    %v490 = vmul.f32 %v473, %v482
    %v491 = vmul.f32 %v474, %v483
    %v492 = vmul.f32 %v475, %v484
    %v493 = vmul.f32 %v476, %v485
    %v494 = vmul.f32 %v477, %v482
    %v495 = vmul.f32 %v478, %v483
    %v496 = vmul.f32 %v479, %v484
    %v497 = vmul.f32 %v480, %v485
    %v499 = vperm.slane %v380, 0
    %v500 = vperm.slane %v380, 1
    %v501 = vperm.slane %v380, 2
    %v502 = vperm.slane %v380, 3
    %v507 = vadd.f32 %v490, %v499
    %v508 = vadd.f32 %v491, %v500
    %v509 = vadd.f32 %v492, %v501
    %v510 = vadd.f32 %v493, %v502
    %v511 = vadd.f32 %v494, %v499
    %v512 = vadd.f32 %v495, %v500
    %v513 = vadd.f32 %v496, %v501
    %v514 = vadd.f32 %v497, %v502
    %vm515 = vcmp.gt.f32.partialorder %v507, 0.0
    %vm516 = vcmp.gt.f32.partialorder %v508, 0.0
    %vm517 = vcmp.gt.f32.partialorder %v509, 0.0
    %vm518 = vcmp.gt.f32.partialorder %v510, 0.0
    %vm519 = vcmp.gt.f32.partialorder %v511, 0.0
    %vm520 = vcmp.gt.f32.partialorder %v512, 0.0
    %vm521 = vcmp.gt.f32.partialorder %v513, 0.0
    %vm522 = vcmp.gt.f32.partialorder %v514, 0.0
    %v523 = vmul.f32 %v507, 0.01
    %v524 = vmul.f32 %v508, 0.01
    %v525 = vmul.f32 %v509, 0.01
    %v526 = vmul.f32 %v510, 0.01
    %v527 = vmul.f32 %v511, 0.01
    %v528 = vmul.f32 %v512, 0.01
    %v529 = vmul.f32 %v513, 0.01
    %v530 = vmul.f32 %v514, 0.01
    %v531 = vsel %vm515, %v507, %v523
    %v532 = vsel %vm516, %v508, %v524
    %v533 = vsel %vm517, %v509, %v525
    %v534 = vsel %vm518, %v510, %v526
    %v535 = vsel %vm519, %v511, %v527
    %v536 = vsel %vm520, %v512, %v528
    %v537 = vsel %vm521, %v513, %v529
    %v538 = vsel %vm522, %v514, %v530
    %v539 = vpack.c.bf16 %v535, %v531
    %v540 = vpack.c.bf16 %v536, %v532
    %v541 = vpack.c.bf16 %v537, %v533
    %v542 = vpack.c.bf16 %v538, %v534
    %v543 = vld [vmem:[#allocation10] sm:$0xff]
    %v544 = vld [vmem:[#allocation10 + $0x8] sm:$0xff]
    %v545 = vld [vmem:[#allocation10 + $0x10] sm:$0xff]
    %v546 = vld [vmem:[#allocation10 + $0x18] sm:$0xff]
    %v547 = vld [vmem:[#allocation10 + $0x20] sm:$0xff]
    %v548 = vld [vmem:[#allocation10 + $0x28] sm:$0xff]
    %v549 = vld [vmem:[#allocation10 + $0x30] sm:$0xff]
    %v550 = vld [vmem:[#allocation10 + $0x38] sm:$0xff]
    %v551 = vld [vmem:[#allocation10 + $0x40] sm:$0xff]
    %v552 = vld [vmem:[#allocation10 + $0x48] sm:$0xff]
    %v553 = vld [vmem:[#allocation10 + $0x50] sm:$0xff]
    %v554 = vld [vmem:[#allocation10 + $0x58] sm:$0xff]
    %v555 = vld [vmem:[#allocation10 + $0x60] sm:$0xff]
    %v556 = vld [vmem:[#allocation10 + $0x68] sm:$0xff]
    %v557 = vld [vmem:[#allocation10 + $0x70] sm:$0xff]
    %v558 = vld [vmem:[#allocation10 + $0x78] sm:$0xff]
    %v559 = vld [vmem:[#allocation10 + $0x80] sm:$0xff]
    %v560 = vld [vmem:[#allocation10 + $0x88] sm:$0xff]
    %v561 = vld [vmem:[#allocation10 + $0x90] sm:$0xff]
    %v562 = vld [vmem:[#allocation10 + $0x98] sm:$0xff]
    %v563 = vld [vmem:[#allocation10 + $0xa0] sm:$0xff]
    %v564 = vld [vmem:[#allocation10 + $0xa8] sm:$0xff]
    %v565 = vld [vmem:[#allocation10 + $0xb0] sm:$0xff]
    %v566 = vld [vmem:[#allocation10 + $0xb8] sm:$0xff]
    %v567 = vld [vmem:[#allocation10 + $0xc0] sm:$0xff]
    %v568 = vld [vmem:[#allocation10 + $0xc8] sm:$0xff]
    %v569 = vld [vmem:[#allocation10 + $0xd0] sm:$0xff]
    %v570 = vld [vmem:[#allocation10 + $0xd8] sm:$0xff]
    %v571 = vld [vmem:[#allocation10 + $0xe0] sm:$0xff]
    %v572 = vld [vmem:[#allocation10 + $0xe8] sm:$0xff]
    %v573 = vld [vmem:[#allocation10 + $0xf0] sm:$0xff]
    %v574 = vld [vmem:[#allocation10 + $0xf8] sm:$0xff]
    %v575 = vld [vmem:[#allocation10 + $0x100] sm:$0xff]
    %v576 = vld [vmem:[#allocation10 + $0x108] sm:$0xff]
    %v577 = vld [vmem:[#allocation10 + $0x110] sm:$0xff]
    %v578 = vld [vmem:[#allocation10 + $0x118] sm:$0xff]
    %v579 = vld [vmem:[#allocation10 + $0x120] sm:$0xff]
    %v580 = vld [vmem:[#allocation10 + $0x128] sm:$0xff]
    %v581 = vld [vmem:[#allocation10 + $0x130] sm:$0xff]
    %v582 = vld [vmem:[#allocation10 + $0x138] sm:$0xff]
    %v583 = vld [vmem:[#allocation10 + $0x140] sm:$0xff]
    %v584 = vld [vmem:[#allocation10 + $0x148] sm:$0xff]
    %v585 = vld [vmem:[#allocation10 + $0x150] sm:$0xff]
    %v586 = vld [vmem:[#allocation10 + $0x158] sm:$0xff]
    %v587 = vld [vmem:[#allocation10 + $0x160] sm:$0xff]
    %v588 = vld [vmem:[#allocation10 + $0x168] sm:$0xff]
    %v589 = vld [vmem:[#allocation10 + $0x170] sm:$0xff]
    %v590 = vld [vmem:[#allocation10 + $0x178] sm:$0xff]
    %v591 = vld [vmem:[#allocation10 + $0x180] sm:$0xff]
    %v592 = vld [vmem:[#allocation10 + $0x188] sm:$0xff]
    %v593 = vld [vmem:[#allocation10 + $0x190] sm:$0xff]
    %v594 = vld [vmem:[#allocation10 + $0x198] sm:$0xff]
    %v595 = vld [vmem:[#allocation10 + $0x1a0] sm:$0xff]
    %v596 = vld [vmem:[#allocation10 + $0x1a8] sm:$0xff]
    %v597 = vld [vmem:[#allocation10 + $0x1b0] sm:$0xff]
    %v598 = vld [vmem:[#allocation10 + $0x1b8] sm:$0xff]
    %v599 = vld [vmem:[#allocation10 + $0x1c0] sm:$0xff]
    %v600 = vld [vmem:[#allocation10 + $0x1c8] sm:$0xff]
    %v601 = vld [vmem:[#allocation10 + $0x1d0] sm:$0xff]
    %v602 = vld [vmem:[#allocation10 + $0x1d8] sm:$0xff]
    %v603 = vld [vmem:[#allocation10 + $0x1e0] sm:$0xff]
    %v604 = vld [vmem:[#allocation10 + $0x1e8] sm:$0xff]
    %v605 = vld [vmem:[#allocation10 + $0x1f0] sm:$0xff]
    %v606 = vld [vmem:[#allocation10 + $0x1f8] sm:$0xff]
    %v607 = vld [vmem:[#allocation10 + $0x200] sm:$0xff]
    %v608 = vld [vmem:[#allocation10 + $0x208] sm:$0xff]
    %v609 = vld [vmem:[#allocation10 + $0x210] sm:$0xff]
    %v610 = vld [vmem:[#allocation10 + $0x218] sm:$0xff]
    %v611 = vld [vmem:[#allocation10 + $0x220] sm:$0xff]
    %v612 = vld [vmem:[#allocation10 + $0x228] sm:$0xff]
    %v613 = vld [vmem:[#allocation10 + $0x230] sm:$0xff]
    %v614 = vld [vmem:[#allocation10 + $0x238] sm:$0xff]
    %v615 = vld [vmem:[#allocation10 + $0x240] sm:$0xff]
    %v616 = vld [vmem:[#allocation10 + $0x248] sm:$0xff]
    %v617 = vld [vmem:[#allocation10 + $0x250] sm:$0xff]
    %v618 = vld [vmem:[#allocation10 + $0x258] sm:$0xff]
    %v619 = vld [vmem:[#allocation10 + $0x260] sm:$0xff]
    %v620 = vld [vmem:[#allocation10 + $0x268] sm:$0xff]
    %v621 = vld [vmem:[#allocation10 + $0x270] sm:$0xff]
    %v622 = vld [vmem:[#allocation10 + $0x278] sm:$0xff]
    %v623 = vld [vmem:[#allocation10 + $0x280] sm:$0xff]
    %v624 = vld [vmem:[#allocation10 + $0x288] sm:$0xff]
    %v625 = vld [vmem:[#allocation10 + $0x290] sm:$0xff]
    %v626 = vld [vmem:[#allocation10 + $0x298] sm:$0xff]
    %v627 = vld [vmem:[#allocation10 + $0x2a0] sm:$0xff]
    %v628 = vld [vmem:[#allocation10 + $0x2a8] sm:$0xff]
    %v629 = vld [vmem:[#allocation10 + $0x2b0] sm:$0xff]
    %v630 = vld [vmem:[#allocation10 + $0x2b8] sm:$0xff]
    %v631 = vld [vmem:[#allocation10 + $0x2c0] sm:$0xff]
    %v632 = vld [vmem:[#allocation10 + $0x2c8] sm:$0xff]
    %v633 = vld [vmem:[#allocation10 + $0x2d0] sm:$0xff]
    %v634 = vld [vmem:[#allocation10 + $0x2d8] sm:$0xff]
    %v635 = vld [vmem:[#allocation10 + $0x2e0] sm:$0xff]
    %v636 = vld [vmem:[#allocation10 + $0x2e8] sm:$0xff]
    %v637 = vld [vmem:[#allocation10 + $0x2f0] sm:$0xff]
    %v638 = vld [vmem:[#allocation10 + $0x2f8] sm:$0xff]
    %v639 = vld [vmem:[#allocation10 + $0x300] sm:$0xff]
    %v640 = vld [vmem:[#allocation10 + $0x308] sm:$0xff]
    %v641 = vld [vmem:[#allocation10 + $0x310] sm:$0xff]
    %v642 = vld [vmem:[#allocation10 + $0x318] sm:$0xff]
    %v643 = vld [vmem:[#allocation10 + $0x320] sm:$0xff]
    %v644 = vld [vmem:[#allocation10 + $0x328] sm:$0xff]
    %v645 = vld [vmem:[#allocation10 + $0x330] sm:$0xff]
    %v646 = vld [vmem:[#allocation10 + $0x338] sm:$0xff]
    %v647 = vld [vmem:[#allocation10 + $0x340] sm:$0xff]
    %v648 = vld [vmem:[#allocation10 + $0x348] sm:$0xff]
    %v649 = vld [vmem:[#allocation10 + $0x350] sm:$0xff]
    %v650 = vld [vmem:[#allocation10 + $0x358] sm:$0xff]
    %v651 = vld [vmem:[#allocation10 + $0x360] sm:$0xff]
    %v652 = vld [vmem:[#allocation10 + $0x368] sm:$0xff]
    %v653 = vld [vmem:[#allocation10 + $0x370] sm:$0xff]
    %v654 = vld [vmem:[#allocation10 + $0x378] sm:$0xff]
    %v655 = vld [vmem:[#allocation10 + $0x380] sm:$0xff]
    %v656 = vld [vmem:[#allocation10 + $0x388] sm:$0xff]
    %v657 = vld [vmem:[#allocation10 + $0x390] sm:$0xff]
    %v658 = vld [vmem:[#allocation10 + $0x398] sm:$0xff]
    %v659 = vld [vmem:[#allocation10 + $0x3a0] sm:$0xff]
    %v660 = vld [vmem:[#allocation10 + $0x3a8] sm:$0xff]
    %v661 = vld [vmem:[#allocation10 + $0x3b0] sm:$0xff]
    %v662 = vld [vmem:[#allocation10 + $0x3b8] sm:$0xff]
    %v663 = vld [vmem:[#allocation10 + $0x3c0] sm:$0xff]
    %v664 = vld [vmem:[#allocation10 + $0x3c8] sm:$0xff]
    %v665 = vld [vmem:[#allocation10 + $0x3d0] sm:$0xff]
    %v666 = vld [vmem:[#allocation10 + $0x3d8] sm:$0xff]
    %v667 = vld [vmem:[#allocation10 + $0x3e0] sm:$0xff]
    %v668 = vld [vmem:[#allocation10 + $0x3e8] sm:$0xff]
    %v669 = vld [vmem:[#allocation10 + $0x3f0] sm:$0xff]
    %v670 = vld [vmem:[#allocation10 + $0x3f8] sm:$0xff]
    %v672 = vperm.slane %v382, 0
    %v673 = vperm.slane %v382, 1
    %v674 = vperm.slane %v382, 2
    %v675 = vperm.slane %v382, 3
    %v808 = vunpack.c.l.b16 %v543
    %v809 = vunpack.c.h.b16 %v543
    %v810 = vunpack.c.l.b16 %v544
    %v811 = vunpack.c.h.b16 %v544
    %v812 = vunpack.c.l.b16 %v545
    %v813 = vunpack.c.h.b16 %v545
    %v814 = vunpack.c.l.b16 %v546
    %v815 = vunpack.c.h.b16 %v546
    %v816 = vunpack.c.l.b16 %v547
    %v817 = vunpack.c.h.b16 %v547
    %v818 = vunpack.c.l.b16 %v548
    %v819 = vunpack.c.h.b16 %v548
    %v820 = vunpack.c.l.b16 %v549
    %v821 = vunpack.c.h.b16 %v549
    %v822 = vunpack.c.l.b16 %v550
    %v823 = vunpack.c.h.b16 %v550
    %v824 = vunpack.c.l.b16 %v551
    %v825 = vunpack.c.h.b16 %v551
    %v826 = vunpack.c.l.b16 %v552
    %v827 = vunpack.c.h.b16 %v552
    %v828 = vunpack.c.l.b16 %v553
    %v829 = vunpack.c.h.b16 %v553
    %v830 = vunpack.c.l.b16 %v554
    %v831 = vunpack.c.h.b16 %v554
    %v832 = vunpack.c.l.b16 %v555
    %v833 = vunpack.c.h.b16 %v555
    %v834 = vunpack.c.l.b16 %v556
    %v835 = vunpack.c.h.b16 %v556
    %v836 = vunpack.c.l.b16 %v557
    %v837 = vunpack.c.h.b16 %v557
    %v838 = vunpack.c.l.b16 %v558
    %v839 = vunpack.c.h.b16 %v558
    %v840 = vunpack.c.l.b16 %v559
    %v841 = vunpack.c.h.b16 %v559
    %v842 = vunpack.c.l.b16 %v560
    %v843 = vunpack.c.h.b16 %v560
    %v844 = vunpack.c.l.b16 %v561
    %v845 = vunpack.c.h.b16 %v561
    %v846 = vunpack.c.l.b16 %v562
    %v847 = vunpack.c.h.b16 %v562
    %v848 = vunpack.c.l.b16 %v563
    %v849 = vunpack.c.h.b16 %v563
    %v850 = vunpack.c.l.b16 %v564
    %v851 = vunpack.c.h.b16 %v564
    %v852 = vunpack.c.l.b16 %v565
    %v853 = vunpack.c.h.b16 %v565
    %v854 = vunpack.c.l.b16 %v566
    %v855 = vunpack.c.h.b16 %v566
    %v856 = vunpack.c.l.b16 %v567
    %v857 = vunpack.c.h.b16 %v567
    %v858 = vunpack.c.l.b16 %v568
    %v859 = vunpack.c.h.b16 %v568
    %v860 = vunpack.c.l.b16 %v569
    %v861 = vunpack.c.h.b16 %v569
    %v862 = vunpack.c.l.b16 %v570
    %v863 = vunpack.c.h.b16 %v570
    %v864 = vunpack.c.l.b16 %v571
    %v865 = vunpack.c.h.b16 %v571
    %v866 = vunpack.c.l.b16 %v572
    %v867 = vunpack.c.h.b16 %v572
    %v868 = vunpack.c.l.b16 %v573
    %v869 = vunpack.c.h.b16 %v573
    %v870 = vunpack.c.l.b16 %v574
    %v871 = vunpack.c.h.b16 %v574
    %v872 = vunpack.c.l.b16 %v575
    %v873 = vunpack.c.h.b16 %v575
    %v874 = vunpack.c.l.b16 %v576
    %v875 = vunpack.c.h.b16 %v576
    %v876 = vunpack.c.l.b16 %v577
    %v877 = vunpack.c.h.b16 %v577
    %v878 = vunpack.c.l.b16 %v578
    %v879 = vunpack.c.h.b16 %v578
    %v880 = vunpack.c.l.b16 %v579
    %v881 = vunpack.c.h.b16 %v579
    %v882 = vunpack.c.l.b16 %v580
    %v883 = vunpack.c.h.b16 %v580
    %v884 = vunpack.c.l.b16 %v581
    %v885 = vunpack.c.h.b16 %v581
    %v886 = vunpack.c.l.b16 %v582
    %v887 = vunpack.c.h.b16 %v582
    %v888 = vunpack.c.l.b16 %v583
    %v889 = vunpack.c.h.b16 %v583
    %v890 = vunpack.c.l.b16 %v584
    %v891 = vunpack.c.h.b16 %v584
    %v892 = vunpack.c.l.b16 %v585
    %v893 = vunpack.c.h.b16 %v585
    %v894 = vunpack.c.l.b16 %v586
    %v895 = vunpack.c.h.b16 %v586
    %v896 = vunpack.c.l.b16 %v587
    %v897 = vunpack.c.h.b16 %v587
    %v898 = vunpack.c.l.b16 %v588
    %v899 = vunpack.c.h.b16 %v588
    %v900 = vunpack.c.l.b16 %v589
    %v901 = vunpack.c.h.b16 %v589
    %v902 = vunpack.c.l.b16 %v590
    %v903 = vunpack.c.h.b16 %v590
    %v904 = vunpack.c.l.b16 %v591
    %v905 = vunpack.c.h.b16 %v591
    %v906 = vunpack.c.l.b16 %v592
    %v907 = vunpack.c.h.b16 %v592
    %v908 = vunpack.c.l.b16 %v593
    %v909 = vunpack.c.h.b16 %v593
    %v910 = vunpack.c.l.b16 %v594
    %v911 = vunpack.c.h.b16 %v594
    %v912 = vunpack.c.l.b16 %v595
    %v913 = vunpack.c.h.b16 %v595
    %v914 = vunpack.c.l.b16 %v596
    %v915 = vunpack.c.h.b16 %v596
    %v916 = vunpack.c.l.b16 %v597
    %v917 = vunpack.c.h.b16 %v597
    %v918 = vunpack.c.l.b16 %v598
    %v919 = vunpack.c.h.b16 %v598
    %v920 = vunpack.c.l.b16 %v599
    %v921 = vunpack.c.h.b16 %v599
    %v922 = vunpack.c.l.b16 %v600
    %v923 = vunpack.c.h.b16 %v600
    %v924 = vunpack.c.l.b16 %v601
    %v925 = vunpack.c.h.b16 %v601
    %v926 = vunpack.c.l.b16 %v602
    %v927 = vunpack.c.h.b16 %v602
    %v928 = vunpack.c.l.b16 %v603
    %v929 = vunpack.c.h.b16 %v603
    %v930 = vunpack.c.l.b16 %v604
    %v931 = vunpack.c.h.b16 %v604
    %v932 = vunpack.c.l.b16 %v605
    %v933 = vunpack.c.h.b16 %v605
    %v934 = vunpack.c.l.b16 %v606
    %v935 = vunpack.c.h.b16 %v606
    %v936 = vunpack.c.l.b16 %v607
    %v937 = vunpack.c.h.b16 %v607
    %v938 = vunpack.c.l.b16 %v608
    %v939 = vunpack.c.h.b16 %v608
    %v940 = vunpack.c.l.b16 %v609
    %v941 = vunpack.c.h.b16 %v609
    %v942 = vunpack.c.l.b16 %v610
    %v943 = vunpack.c.h.b16 %v610
    %v944 = vunpack.c.l.b16 %v611
    %v945 = vunpack.c.h.b16 %v611
    %v946 = vunpack.c.l.b16 %v612
    %v947 = vunpack.c.h.b16 %v612
    %v948 = vunpack.c.l.b16 %v613
    %v949 = vunpack.c.h.b16 %v613
    %v950 = vunpack.c.l.b16 %v614
    %v951 = vunpack.c.h.b16 %v614
    %v952 = vunpack.c.l.b16 %v615
    %v953 = vunpack.c.h.b16 %v615
    %v954 = vunpack.c.l.b16 %v616
    %v955 = vunpack.c.h.b16 %v616
    %v956 = vunpack.c.l.b16 %v617
    %v957 = vunpack.c.h.b16 %v617
    %v958 = vunpack.c.l.b16 %v618
    %v959 = vunpack.c.h.b16 %v618
    %v960 = vunpack.c.l.b16 %v619
    %v961 = vunpack.c.h.b16 %v619
    %v962 = vunpack.c.l.b16 %v620
    %v963 = vunpack.c.h.b16 %v620
    %v964 = vunpack.c.l.b16 %v621
    %v965 = vunpack.c.h.b16 %v621
    %v966 = vunpack.c.l.b16 %v622
    %v967 = vunpack.c.h.b16 %v622
    %v968 = vunpack.c.l.b16 %v623
    %v969 = vunpack.c.h.b16 %v623
    %v970 = vunpack.c.l.b16 %v624
    %v971 = vunpack.c.h.b16 %v624
    %v972 = vunpack.c.l.b16 %v625
    %v973 = vunpack.c.h.b16 %v625
    %v974 = vunpack.c.l.b16 %v626
    %v975 = vunpack.c.h.b16 %v626
    %v976 = vunpack.c.l.b16 %v627
    %v977 = vunpack.c.h.b16 %v627
    %v978 = vunpack.c.l.b16 %v628
    %v979 = vunpack.c.h.b16 %v628
    %v980 = vunpack.c.l.b16 %v629
    %v981 = vunpack.c.h.b16 %v629
    %v982 = vunpack.c.l.b16 %v630
    %v983 = vunpack.c.h.b16 %v630
    %v984 = vunpack.c.l.b16 %v631
    %v985 = vunpack.c.h.b16 %v631
    %v986 = vunpack.c.l.b16 %v632
    %v987 = vunpack.c.h.b16 %v632
    %v988 = vunpack.c.l.b16 %v633
    %v989 = vunpack.c.h.b16 %v633
    %v990 = vunpack.c.l.b16 %v634
    %v991 = vunpack.c.h.b16 %v634
    %v992 = vunpack.c.l.b16 %v635
    %v993 = vunpack.c.h.b16 %v635
    %v994 = vunpack.c.l.b16 %v636
    %v995 = vunpack.c.h.b16 %v636
    %v996 = vunpack.c.l.b16 %v637
    %v997 = vunpack.c.h.b16 %v637
    %v998 = vunpack.c.l.b16 %v638
    %v999 = vunpack.c.h.b16 %v638
    %v1000 = vunpack.c.l.b16 %v639
    %v1001 = vunpack.c.h.b16 %v639
    %v1002 = vunpack.c.l.b16 %v640
    %v1003 = vunpack.c.h.b16 %v640
    %v1004 = vunpack.c.l.b16 %v641
    %v1005 = vunpack.c.h.b16 %v641
    %v1006 = vunpack.c.l.b16 %v642
    %v1007 = vunpack.c.h.b16 %v642
    %v1008 = vunpack.c.l.b16 %v643
    %v1009 = vunpack.c.h.b16 %v643
    %v1010 = vunpack.c.l.b16 %v644
    %v1011 = vunpack.c.h.b16 %v644
    %v1012 = vunpack.c.l.b16 %v645
    %v1013 = vunpack.c.h.b16 %v645
    %v1014 = vunpack.c.l.b16 %v646
    %v1015 = vunpack.c.h.b16 %v646
    %v1016 = vunpack.c.l.b16 %v647
    %v1017 = vunpack.c.h.b16 %v647
    %v1018 = vunpack.c.l.b16 %v648
    %v1019 = vunpack.c.h.b16 %v648
    %v1020 = vunpack.c.l.b16 %v649
    %v1021 = vunpack.c.h.b16 %v649
    %v1022 = vunpack.c.l.b16 %v650
    %v1023 = vunpack.c.h.b16 %v650
    %v1024 = vunpack.c.l.b16 %v651
    %v1025 = vunpack.c.h.b16 %v651
    %v1026 = vunpack.c.l.b16 %v652
    %v1027 = vunpack.c.h.b16 %v652
    %v1028 = vunpack.c.l.b16 %v653
    %v1029 = vunpack.c.h.b16 %v653
    %v1030 = vunpack.c.l.b16 %v654
    %v1031 = vunpack.c.h.b16 %v654
    %v1032 = vunpack.c.l.b16 %v655
    %v1033 = vunpack.c.h.b16 %v655
    %v1034 = vunpack.c.l.b16 %v656
    %v1035 = vunpack.c.h.b16 %v656
    %v1036 = vunpack.c.l.b16 %v657
    %v1037 = vunpack.c.h.b16 %v657
    %v1038 = vunpack.c.l.b16 %v658
    %v1039 = vunpack.c.h.b16 %v658
    %v1040 = vunpack.c.l.b16 %v659
    %v1041 = vunpack.c.h.b16 %v659
    %v1042 = vunpack.c.l.b16 %v660
    %v1043 = vunpack.c.h.b16 %v660
    %v1044 = vunpack.c.l.b16 %v661
    %v1045 = vunpack.c.h.b16 %v661
    %v1046 = vunpack.c.l.b16 %v662
    %v1047 = vunpack.c.h.b16 %v662
    %v1048 = vunpack.c.l.b16 %v663
    %v1049 = vunpack.c.h.b16 %v663
    %v1050 = vunpack.c.l.b16 %v664
    %v1051 = vunpack.c.h.b16 %v664
    %v1052 = vunpack.c.l.b16 %v665
    %v1053 = vunpack.c.h.b16 %v665
    %v1054 = vunpack.c.l.b16 %v666
    %v1055 = vunpack.c.h.b16 %v666
    %v1056 = vunpack.c.l.b16 %v667
    %v1057 = vunpack.c.h.b16 %v667
    %v1058 = vunpack.c.l.b16 %v668
    %v1059 = vunpack.c.h.b16 %v668
    %v1060 = vunpack.c.l.b16 %v669
    %v1061 = vunpack.c.h.b16 %v669
    %v1062 = vunpack.c.l.b16 %v670
    %v1063 = vunpack.c.h.b16 %v670
    %v1064 = vpack.c.b16 %v812, %v808
    %v1065 = vpack.c.b16 %v813, %v809
    %v1066 = vpack.c.b16 %v814, %v810
    %v1067 = vpack.c.b16 %v815, %v811
    %v1068 = vpack.c.b16 %v820, %v816
    %v1069 = vpack.c.b16 %v821, %v817
    %v1070 = vpack.c.b16 %v822, %v818
    %v1071 = vpack.c.b16 %v823, %v819
    %v1072 = vpack.c.b16 %v828, %v824
    %v1073 = vpack.c.b16 %v829, %v825
    %v1074 = vpack.c.b16 %v830, %v826
    %v1075 = vpack.c.b16 %v831, %v827
    %v1076 = vpack.c.b16 %v836, %v832
    %v1077 = vpack.c.b16 %v837, %v833
    %v1078 = vpack.c.b16 %v838, %v834
    %v1079 = vpack.c.b16 %v839, %v835
    %v1080 = vpack.c.b16 %v844, %v840
    %v1081 = vpack.c.b16 %v845, %v841
    %v1082 = vpack.c.b16 %v846, %v842
    %v1083 = vpack.c.b16 %v847, %v843
    %v1084 = vpack.c.b16 %v852, %v848
    %v1085 = vpack.c.b16 %v853, %v849
    %v1086 = vpack.c.b16 %v854, %v850
    %v1087 = vpack.c.b16 %v855, %v851
    %v1088 = vpack.c.b16 %v860, %v856
    %v1089 = vpack.c.b16 %v861, %v857
    %v1090 = vpack.c.b16 %v862, %v858
    %v1091 = vpack.c.b16 %v863, %v859
    %v1092 = vpack.c.b16 %v868, %v864
    %v1093 = vpack.c.b16 %v869, %v865
    %v1094 = vpack.c.b16 %v870, %v866
    %v1095 = vpack.c.b16 %v871, %v867
    %v1096 = vpack.c.b16 %v876, %v872
    %v1097 = vpack.c.b16 %v877, %v873
    %v1098 = vpack.c.b16 %v878, %v874
    %v1099 = vpack.c.b16 %v879, %v875
    %v1100 = vpack.c.b16 %v884, %v880
    %v1101 = vpack.c.b16 %v885, %v881
    %v1102 = vpack.c.b16 %v886, %v882
    %v1103 = vpack.c.b16 %v887, %v883
    %v1104 = vpack.c.b16 %v892, %v888
    %v1105 = vpack.c.b16 %v893, %v889
    %v1106 = vpack.c.b16 %v894, %v890
    %v1107 = vpack.c.b16 %v895, %v891
    %v1108 = vpack.c.b16 %v900, %v896
    %v1109 = vpack.c.b16 %v901, %v897
    %v1110 = vpack.c.b16 %v902, %v898
    %v1111 = vpack.c.b16 %v903, %v899
    %v1112 = vpack.c.b16 %v908, %v904
    %v1113 = vpack.c.b16 %v909, %v905
    %v1114 = vpack.c.b16 %v910, %v906
    %v1115 = vpack.c.b16 %v911, %v907
    %v1116 = vpack.c.b16 %v916, %v912
    %v1117 = vpack.c.b16 %v917, %v913
    %v1118 = vpack.c.b16 %v918, %v914
    %v1119 = vpack.c.b16 %v919, %v915
    %v1120 = vpack.c.b16 %v924, %v920
    %v1121 = vpack.c.b16 %v925, %v921
    %v1122 = vpack.c.b16 %v926, %v922
    %v1123 = vpack.c.b16 %v927, %v923
    %v1124 = vpack.c.b16 %v932, %v928
    %v1125 = vpack.c.b16 %v933, %v929
    %v1126 = vpack.c.b16 %v934, %v930
    %v1127 = vpack.c.b16 %v935, %v931
    %v1128 = vpack.c.b16 %v940, %v936
    %v1129 = vpack.c.b16 %v941, %v937
    %v1130 = vpack.c.b16 %v942, %v938
    %v1131 = vpack.c.b16 %v943, %v939
    %v1132 = vpack.c.b16 %v948, %v944
    %v1133 = vpack.c.b16 %v949, %v945
    %v1134 = vpack.c.b16 %v950, %v946
    %v1135 = vpack.c.b16 %v951, %v947
    %v1136 = vpack.c.b16 %v956, %v952
    %v1137 = vpack.c.b16 %v957, %v953
    %v1138 = vpack.c.b16 %v958, %v954
    %v1139 = vpack.c.b16 %v959, %v955
    %v1140 = vpack.c.b16 %v964, %v960
    %v1141 = vpack.c.b16 %v965, %v961
    %v1142 = vpack.c.b16 %v966, %v962
    %v1143 = vpack.c.b16 %v967, %v963
    %v1144 = vpack.c.b16 %v972, %v968
    %v1145 = vpack.c.b16 %v973, %v969
    %v1146 = vpack.c.b16 %v974, %v970
    %v1147 = vpack.c.b16 %v975, %v971
    %v1148 = vpack.c.b16 %v980, %v976
    %v1149 = vpack.c.b16 %v981, %v977
    %v1150 = vpack.c.b16 %v982, %v978
    %v1151 = vpack.c.b16 %v983, %v979
    %v1152 = vpack.c.b16 %v988, %v984
    %v1153 = vpack.c.b16 %v989, %v985
    %v1154 = vpack.c.b16 %v990, %v986
    %v1155 = vpack.c.b16 %v991, %v987
    %v1156 = vpack.c.b16 %v996, %v992
    %v1157 = vpack.c.b16 %v997, %v993
    %v1158 = vpack.c.b16 %v998, %v994
    %v1159 = vpack.c.b16 %v999, %v995
    %v1160 = vpack.c.b16 %v1004, %v1000
    %v1161 = vpack.c.b16 %v1005, %v1001
    %v1162 = vpack.c.b16 %v1006, %v1002
    %v1163 = vpack.c.b16 %v1007, %v1003
    %v1164 = vpack.c.b16 %v1012, %v1008
    %v1165 = vpack.c.b16 %v1013, %v1009
    %v1166 = vpack.c.b16 %v1014, %v1010
    %v1167 = vpack.c.b16 %v1015, %v1011
    %v1168 = vpack.c.b16 %v1020, %v1016
    %v1169 = vpack.c.b16 %v1021, %v1017
    %v1170 = vpack.c.b16 %v1022, %v1018
    %v1171 = vpack.c.b16 %v1023, %v1019
    %v1172 = vpack.c.b16 %v1028, %v1024
    %v1173 = vpack.c.b16 %v1029, %v1025
    %v1174 = vpack.c.b16 %v1030, %v1026
    %v1175 = vpack.c.b16 %v1031, %v1027
    %v1176 = vpack.c.b16 %v1036, %v1032
    %v1177 = vpack.c.b16 %v1037, %v1033
    %v1178 = vpack.c.b16 %v1038, %v1034
    %v1179 = vpack.c.b16 %v1039, %v1035
    %v1180 = vpack.c.b16 %v1044, %v1040
    %v1181 = vpack.c.b16 %v1045, %v1041
    %v1182 = vpack.c.b16 %v1046, %v1042
    %v1183 = vpack.c.b16 %v1047, %v1043
    %v1184 = vpack.c.b16 %v1052, %v1048
    %v1185 = vpack.c.b16 %v1053, %v1049
    %v1186 = vpack.c.b16 %v1054, %v1050
    %v1187 = vpack.c.b16 %v1055, %v1051
    %v1188 = vpack.c.b16 %v1060, %v1056
    %v1189 = vpack.c.b16 %v1061, %v1057
    %v1190 = vpack.c.b16 %v1062, %v1058
    %v1191 = vpack.c.b16 %v1063, %v1059
    %1320 = vmatpush.bf16.msra.mxu0 %v1092
    %1321 = vmatpush.bf16.msra.mxu0 %v1088
    %1322 = vmatpush.bf16.msra.mxu0 %v1084
    %1323 = vmatpush.bf16.msra.mxu0 %v1080
    %1324 = vmatpush.bf16.msra.mxu0 %v1076
    %1325 = vmatpush.bf16.msra.mxu0 %v1072
    %1326 = vmatpush.bf16.msra.mxu0 %v1068
    %1327 = vmatpush.bf16.msra.mxu0 %v1064
    %1328 = vmatmul.bf16.gmra.mxu0 %v539
    %v1329 = vpop.f32.mrf.mxu0
    %v1330 = vadd.f32 %v672, %v1329
    %v1331 = vpop.f32.mrf.mxu0
    %v1332 = vadd.f32 %v672, %v1331
    %1333 = vdwg.mxu0
    %1334 = vmatpush.bf16.msra.mxu0 %v1124
    %1335 = vmatpush.bf16.msra.mxu0 %v1120
    %1336 = vmatpush.bf16.msra.mxu0 %v1116
    %1337 = vmatpush.bf16.msra.mxu0 %v1112
    %1338 = vmatpush.bf16.msra.mxu0 %v1108
    %1339 = vmatpush.bf16.msra.mxu0 %v1104
    %1340 = vmatpush.bf16.msra.mxu0 %v1100
    %1341 = vmatpush.bf16.msra.mxu0 %v1096
    %1342 = vmatmul.bf16.gmra.mxu0 %v540
    %v1343 = vpop.f32.mrf.mxu0
    %v1344 = vadd.f32 %v1330, %v1343
    %v1345 = vpop.f32.mrf.mxu0
    %v1346 = vadd.f32 %v1332, %v1345
    %1347 = vdwg.mxu0
    %1348 = vmatpush.bf16.msra.mxu0 %v1156
    %1349 = vmatpush.bf16.msra.mxu0 %v1152
    %1350 = vmatpush.bf16.msra.mxu0 %v1148
    %1351 = vmatpush.bf16.msra.mxu0 %v1144
    %1352 = vmatpush.bf16.msra.mxu0 %v1140
    %1353 = vmatpush.bf16.msra.mxu0 %v1136
    %1354 = vmatpush.bf16.msra.mxu0 %v1132
    %1355 = vmatpush.bf16.msra.mxu0 %v1128
    %1356 = vmatmul.bf16.gmra.mxu0 %v541
    %v1357 = vpop.f32.mrf.mxu0
    %v1358 = vadd.f32 %v1344, %v1357
    %v1359 = vpop.f32.mrf.mxu0
    %v1360 = vadd.f32 %v1346, %v1359
    %1361 = vdwg.mxu0
    %1362 = vmatpush.bf16.msra.mxu0 %v1188
    %1363 = vmatpush.bf16.msra.mxu0 %v1184
    %1364 = vmatpush.bf16.msra.mxu0 %v1180
    %1365 = vmatpush.bf16.msra.mxu0 %v1176
    %1366 = vmatpush.bf16.msra.mxu0 %v1172
    %1367 = vmatpush.bf16.msra.mxu0 %v1168
    %1368 = vmatpush.bf16.msra.mxu0 %v1164
    %1369 = vmatpush.bf16.msra.mxu0 %v1160
    %1370 = vmatmul.bf16.gmra.mxu0 %v542
    %v1371 = vpop.f32.mrf.mxu0
    %v1372 = vadd.f32 %v1358, %v1371
    %v1373 = vpop.f32.mrf.mxu0
    %v1374 = vadd.f32 %v1360, %v1373
    %1375 = vdwg.mxu0
    %1376 = vmatpush.bf16.msra.mxu0 %v1093
    %1377 = vmatpush.bf16.msra.mxu0 %v1089
    %1378 = vmatpush.bf16.msra.mxu0 %v1085
    %1379 = vmatpush.bf16.msra.mxu0 %v1081
    %1380 = vmatpush.bf16.msra.mxu0 %v1077
    %1381 = vmatpush.bf16.msra.mxu0 %v1073
    %1382 = vmatpush.bf16.msra.mxu0 %v1069
    %1383 = vmatpush.bf16.msra.mxu0 %v1065
    %1384 = vmatmul.bf16.gmra.mxu0 %v539
    %v1385 = vpop.f32.mrf.mxu0
    %v1386 = vadd.f32 %v673, %v1385
    %v1387 = vpop.f32.mrf.mxu0
    %v1388 = vadd.f32 %v673, %v1387
    %1389 = vdwg.mxu0
    %1390 = vmatpush.bf16.msra.mxu0 %v1125
    %1391 = vmatpush.bf16.msra.mxu0 %v1121
    %1392 = vmatpush.bf16.msra.mxu0 %v1117
    %1393 = vmatpush.bf16.msra.mxu0 %v1113
    %1394 = vmatpush.bf16.msra.mxu0 %v1109
    %1395 = vmatpush.bf16.msra.mxu0 %v1105
    %1396 = vmatpush.bf16.msra.mxu0 %v1101
    %1397 = vmatpush.bf16.msra.mxu0 %v1097
    %1398 = vmatmul.bf16.gmra.mxu0 %v540
    %v1399 = vpop.f32.mrf.mxu0
    %v1400 = vadd.f32 %v1386, %v1399
    %v1401 = vpop.f32.mrf.mxu0
    %v1402 = vadd.f32 %v1388, %v1401
    %1403 = vdwg.mxu0
    %1404 = vmatpush.bf16.msra.mxu0 %v1157
    %1405 = vmatpush.bf16.msra.mxu0 %v1153
    %1406 = vmatpush.bf16.msra.mxu0 %v1149
    %1407 = vmatpush.bf16.msra.mxu0 %v1145
    %1408 = vmatpush.bf16.msra.mxu0 %v1141
    %1409 = vmatpush.bf16.msra.mxu0 %v1137
    %1410 = vmatpush.bf16.msra.mxu0 %v1133
    %1411 = vmatpush.bf16.msra.mxu0 %v1129
    %1412 = vmatmul.bf16.gmra.mxu0 %v541
    %v1413 = vpop.f32.mrf.mxu0
    %v1414 = vadd.f32 %v1400, %v1413
    %v1415 = vpop.f32.mrf.mxu0
    %v1416 = vadd.f32 %v1402, %v1415
    %1417 = vdwg.mxu0
    %1418 = vmatpush.bf16.msra.mxu0 %v1189
    %1419 = vmatpush.bf16.msra.mxu0 %v1185
    %1420 = vmatpush.bf16.msra.mxu0 %v1181
    %1421 = vmatpush.bf16.msra.mxu0 %v1177
    %1422 = vmatpush.bf16.msra.mxu0 %v1173
    %1423 = vmatpush.bf16.msra.mxu0 %v1169
    %1424 = vmatpush.bf16.msra.mxu0 %v1165
    %1425 = vmatpush.bf16.msra.mxu0 %v1161
    %1426 = vmatmul.bf16.gmra.mxu0 %v542
    %v1427 = vpop.f32.mrf.mxu0
    %v1428 = vadd.f32 %v1414, %v1427
    %v1429 = vpop.f32.mrf.mxu0
    %v1430 = vadd.f32 %v1416, %v1429
    %1431 = vdwg.mxu0
    %1432 = vmatpush.bf16.msra.mxu0 %v1094
    %1433 = vmatpush.bf16.msra.mxu0 %v1090
    %1434 = vmatpush.bf16.msra.mxu0 %v1086
    %1435 = vmatpush.bf16.msra.mxu0 %v1082
    %1436 = vmatpush.bf16.msra.mxu0 %v1078
    %1437 = vmatpush.bf16.msra.mxu0 %v1074
    %1438 = vmatpush.bf16.msra.mxu0 %v1070
    %1439 = vmatpush.bf16.msra.mxu0 %v1066
    %1440 = vmatmul.bf16.gmra.mxu0 %v539
    %v1441 = vpop.f32.mrf.mxu0
    %v1442 = vadd.f32 %v674, %v1441
    %v1443 = vpop.f32.mrf.mxu0
    %v1444 = vadd.f32 %v674, %v1443
    %1445 = vdwg.mxu0
    %1446 = vmatpush.bf16.msra.mxu0 %v1126
    %1447 = vmatpush.bf16.msra.mxu0 %v1122
    %1448 = vmatpush.bf16.msra.mxu0 %v1118
    %1449 = vmatpush.bf16.msra.mxu0 %v1114
    %1450 = vmatpush.bf16.msra.mxu0 %v1110
    %1451 = vmatpush.bf16.msra.mxu0 %v1106
    %1452 = vmatpush.bf16.msra.mxu0 %v1102
    %1453 = vmatpush.bf16.msra.mxu0 %v1098
    %1454 = vmatmul.bf16.gmra.mxu0 %v540
    %v1455 = vpop.f32.mrf.mxu0
    %v1456 = vadd.f32 %v1442, %v1455
    %v1457 = vpop.f32.mrf.mxu0
    %v1458 = vadd.f32 %v1444, %v1457
    %1459 = vdwg.mxu0
    %1460 = vmatpush.bf16.msra.mxu0 %v1158
    %1461 = vmatpush.bf16.msra.mxu0 %v1154
    %1462 = vmatpush.bf16.msra.mxu0 %v1150
    %1463 = vmatpush.bf16.msra.mxu0 %v1146
    %1464 = vmatpush.bf16.msra.mxu0 %v1142
    %1465 = vmatpush.bf16.msra.mxu0 %v1138
    %1466 = vmatpush.bf16.msra.mxu0 %v1134
    %1467 = vmatpush.bf16.msra.mxu0 %v1130
    %1468 = vmatmul.bf16.gmra.mxu0 %v541
    %v1469 = vpop.f32.mrf.mxu0
    %v1470 = vadd.f32 %v1456, %v1469
    %v1471 = vpop.f32.mrf.mxu0
    %v1472 = vadd.f32 %v1458, %v1471
    %1473 = vdwg.mxu0
    %1474 = vmatpush.bf16.msra.mxu0 %v1190
    %1475 = vmatpush.bf16.msra.mxu0 %v1186
    %1476 = vmatpush.bf16.msra.mxu0 %v1182
    %1477 = vmatpush.bf16.msra.mxu0 %v1178
    %1478 = vmatpush.bf16.msra.mxu0 %v1174
    %1479 = vmatpush.bf16.msra.mxu0 %v1170
    %1480 = vmatpush.bf16.msra.mxu0 %v1166
    %1481 = vmatpush.bf16.msra.mxu0 %v1162
    %1482 = vmatmul.bf16.gmra.mxu0 %v542
    %v1483 = vpop.f32.mrf.mxu0
    %v1484 = vadd.f32 %v1470, %v1483
    %v1485 = vpop.f32.mrf.mxu0
    %v1486 = vadd.f32 %v1472, %v1485
    %1487 = vdwg.mxu0
    %1488 = vmatpush.bf16.msra.mxu0 %v1095
    %1489 = vmatpush.bf16.msra.mxu0 %v1091
    %1490 = vmatpush.bf16.msra.mxu0 %v1087
    %1491 = vmatpush.bf16.msra.mxu0 %v1083
    %1492 = vmatpush.bf16.msra.mxu0 %v1079
    %1493 = vmatpush.bf16.msra.mxu0 %v1075
    %1494 = vmatpush.bf16.msra.mxu0 %v1071
    %1495 = vmatpush.bf16.msra.mxu0 %v1067
    %1496 = vmatmul.bf16.gmra.mxu0 %v539
    %v1497 = vpop.f32.mrf.mxu0
    %v1498 = vadd.f32 %v675, %v1497
    %v1499 = vpop.f32.mrf.mxu0
    %v1500 = vadd.f32 %v675, %v1499
    %1501 = vdwg.mxu0
    %1502 = vmatpush.bf16.msra.mxu0 %v1127
    %1503 = vmatpush.bf16.msra.mxu0 %v1123
    %1504 = vmatpush.bf16.msra.mxu0 %v1119
    %1505 = vmatpush.bf16.msra.mxu0 %v1115
    %1506 = vmatpush.bf16.msra.mxu0 %v1111
    %1507 = vmatpush.bf16.msra.mxu0 %v1107
    %1508 = vmatpush.bf16.msra.mxu0 %v1103
    %1509 = vmatpush.bf16.msra.mxu0 %v1099
    %1510 = vmatmul.bf16.gmra.mxu0 %v540
    %v1511 = vpop.f32.mrf.mxu0
    %v1512 = vadd.f32 %v1498, %v1511
    %v1513 = vpop.f32.mrf.mxu0
    %v1514 = vadd.f32 %v1500, %v1513
    %1515 = vdwg.mxu0
    %1516 = vmatpush.bf16.msra.mxu0 %v1159
    %1517 = vmatpush.bf16.msra.mxu0 %v1155
    %1518 = vmatpush.bf16.msra.mxu0 %v1151
    %1519 = vmatpush.bf16.msra.mxu0 %v1147
    %1520 = vmatpush.bf16.msra.mxu0 %v1143
    %1521 = vmatpush.bf16.msra.mxu0 %v1139
    %1522 = vmatpush.bf16.msra.mxu0 %v1135
    %1523 = vmatpush.bf16.msra.mxu0 %v1131
    %1524 = vmatmul.bf16.gmra.mxu0 %v541
    %v1525 = vpop.f32.mrf.mxu0
    %v1526 = vadd.f32 %v1512, %v1525
    %v1527 = vpop.f32.mrf.mxu0
    %v1528 = vadd.f32 %v1514, %v1527
    %1529 = vdwg.mxu0
    %1530 = vmatpush.bf16.msra.mxu0 %v1191
    %1531 = vmatpush.bf16.msra.mxu0 %v1187
    %1532 = vmatpush.bf16.msra.mxu0 %v1183
    %1533 = vmatpush.bf16.msra.mxu0 %v1179
    %1534 = vmatpush.bf16.msra.mxu0 %v1175
    %1535 = vmatpush.bf16.msra.mxu0 %v1171
    %1536 = vmatpush.bf16.msra.mxu0 %v1167
    %1537 = vmatpush.bf16.msra.mxu0 %v1163
    %1538 = vmatmul.bf16.gmra.mxu0 %v542
    %v1539 = vpop.f32.mrf.mxu0
    %v1540 = vadd.f32 %v1526, %v1539
    %v1541 = vpop.f32.mrf.mxu0
    %v1542 = vadd.f32 %v1528, %v1541
    %1543 = vdwg.mxu0
    %v1544 = vmul.f32 %v1484, 1.442695
    %v1545 = vpow.pop %v1544
    %v1546 = vmul.f32 %v1540, 1.442695
    %v1547 = vpow.pop %v1546
    %v1548 = vmul.f32 %v1486, 1.442695
    %v1549 = vpow.pop %v1548
    %v1550 = vmul.f32 %v1542, 1.442695
    %v1551 = vpow.pop %v1550
    %v1552 = vmul.f32 %v1545, 1.001
    %v1553 = vmul.f32 %v1547, 1.001
    %v1554 = vmul.f32 %v1549, 1.001
    %v1555 = vmul.f32 %v1551, 1.001
    %v1556 = vadd.f32 %v1552, 1e-05
    %v1557 = vadd.f32 %v1553, 1e-05
    %v1558 = vadd.f32 %v1554, 1e-05
    %v1559 = vadd.f32 %v1555, 1e-05
    %v1560 = vld [vmem:[#allocation5] sm:$0xff]
    %v1561 = vld [vmem:[#allocation5 + $0x8] sm:$0xff]
    %v1562 = vld [vmem:[#allocation5 + $0x10] sm:$0xff]
    %v1563 = vld [vmem:[#allocation5 + $0x18] sm:$0xff]
    %v1564 = vmul.f32 %v1556, %v1560
    %v1565 = vmul.f32 %v1557, %v1561
    %v1566 = vmul.f32 %v1558, %v1562
    %v1567 = vmul.f32 %v1559, %v1563
    %v1568 = vadd.f32 %v1372, %v1564
    %v1569 = vadd.f32 %v1428, %v1565
    %v1570 = vadd.f32 %v1374, %v1566
    %v1571 = vadd.f32 %v1430, %v1567
    %v1572 = vpack.c.bf16 %v1570, %v1568
    %v1573 = vpack.c.bf16 %v1571, %v1569
    %v1574 = vld [vmem:[#allocation11] sm:$0xff]
    %v1575 = vld [vmem:[#allocation11 + $0x8] sm:$0xff]
    %v1576 = vld [vmem:[#allocation11 + $0x10] sm:$0xff]
    %v1577 = vld [vmem:[#allocation11 + $0x18] sm:$0xff]
    %v1578 = vld [vmem:[#allocation11 + $0x20] sm:$0xff]
    %v1579 = vld [vmem:[#allocation11 + $0x28] sm:$0xff]
    %v1580 = vld [vmem:[#allocation11 + $0x30] sm:$0xff]
    %v1581 = vld [vmem:[#allocation11 + $0x38] sm:$0xff]
    %v1582 = vld [vmem:[#allocation11 + $0x40] sm:$0xff]
    %v1583 = vld [vmem:[#allocation11 + $0x48] sm:$0xff]
    %v1584 = vld [vmem:[#allocation11 + $0x50] sm:$0xff]
    %v1585 = vld [vmem:[#allocation11 + $0x58] sm:$0xff]
    %v1586 = vld [vmem:[#allocation11 + $0x60] sm:$0xff]
    %v1587 = vld [vmem:[#allocation11 + $0x68] sm:$0xff]
    %v1588 = vld [vmem:[#allocation11 + $0x70] sm:$0xff]
    %v1589 = vld [vmem:[#allocation11 + $0x78] sm:$0xff]
    %v1590 = vld [vmem:[#allocation11 + $0x80] sm:$0xff]
    %v1591 = vld [vmem:[#allocation11 + $0x88] sm:$0xff]
    %v1592 = vld [vmem:[#allocation11 + $0x90] sm:$0xff]
    %v1593 = vld [vmem:[#allocation11 + $0x98] sm:$0xff]
    %v1594 = vld [vmem:[#allocation11 + $0xa0] sm:$0xff]
    %v1595 = vld [vmem:[#allocation11 + $0xa8] sm:$0xff]
    %v1596 = vld [vmem:[#allocation11 + $0xb0] sm:$0xff]
    %v1597 = vld [vmem:[#allocation11 + $0xb8] sm:$0xff]
    %v1598 = vld [vmem:[#allocation11 + $0xc0] sm:$0xff]
    %v1599 = vld [vmem:[#allocation11 + $0xc8] sm:$0xff]
    %v1600 = vld [vmem:[#allocation11 + $0xd0] sm:$0xff]
    %v1601 = vld [vmem:[#allocation11 + $0xd8] sm:$0xff]
    %v1602 = vld [vmem:[#allocation11 + $0xe0] sm:$0xff]
    %v1603 = vld [vmem:[#allocation11 + $0xe8] sm:$0xff]
    %v1604 = vld [vmem:[#allocation11 + $0xf0] sm:$0xff]
    %v1605 = vld [vmem:[#allocation11 + $0xf8] sm:$0xff]
    %v1606 = vld [vmem:[#allocation11 + $0x100] sm:$0xff]
    %v1607 = vld [vmem:[#allocation11 + $0x108] sm:$0xff]
    %v1608 = vld [vmem:[#allocation11 + $0x110] sm:$0xff]
    %v1609 = vld [vmem:[#allocation11 + $0x118] sm:$0xff]
    %v1610 = vld [vmem:[#allocation11 + $0x120] sm:$0xff]
    %v1611 = vld [vmem:[#allocation11 + $0x128] sm:$0xff]
    %v1612 = vld [vmem:[#allocation11 + $0x130] sm:$0xff]
    %v1613 = vld [vmem:[#allocation11 + $0x138] sm:$0xff]
    %v1614 = vld [vmem:[#allocation11 + $0x140] sm:$0xff]
    %v1615 = vld [vmem:[#allocation11 + $0x148] sm:$0xff]
    %v1616 = vld [vmem:[#allocation11 + $0x150] sm:$0xff]
    %v1617 = vld [vmem:[#allocation11 + $0x158] sm:$0xff]
    %v1618 = vld [vmem:[#allocation11 + $0x160] sm:$0xff]
    %v1619 = vld [vmem:[#allocation11 + $0x168] sm:$0xff]
    %v1620 = vld [vmem:[#allocation11 + $0x170] sm:$0xff]
    %v1621 = vld [vmem:[#allocation11 + $0x178] sm:$0xff]
    %v1622 = vld [vmem:[#allocation11 + $0x180] sm:$0xff]
    %v1623 = vld [vmem:[#allocation11 + $0x188] sm:$0xff]
    %v1624 = vld [vmem:[#allocation11 + $0x190] sm:$0xff]
    %v1625 = vld [vmem:[#allocation11 + $0x198] sm:$0xff]
    %v1626 = vld [vmem:[#allocation11 + $0x1a0] sm:$0xff]
    %v1627 = vld [vmem:[#allocation11 + $0x1a8] sm:$0xff]
    %v1628 = vld [vmem:[#allocation11 + $0x1b0] sm:$0xff]
    %v1629 = vld [vmem:[#allocation11 + $0x1b8] sm:$0xff]
    %v1630 = vld [vmem:[#allocation11 + $0x1c0] sm:$0xff]
    %v1631 = vld [vmem:[#allocation11 + $0x1c8] sm:$0xff]
    %v1632 = vld [vmem:[#allocation11 + $0x1d0] sm:$0xff]
    %v1633 = vld [vmem:[#allocation11 + $0x1d8] sm:$0xff]
    %v1634 = vld [vmem:[#allocation11 + $0x1e0] sm:$0xff]
    %v1635 = vld [vmem:[#allocation11 + $0x1e8] sm:$0xff]
    %v1636 = vld [vmem:[#allocation11 + $0x1f0] sm:$0xff]
    %v1637 = vld [vmem:[#allocation11 + $0x1f8] sm:$0xff]
    %v1702 = vunpack.c.l.b16 %v1574
    %v1703 = vunpack.c.h.b16 %v1574
    %v1704 = vunpack.c.l.b16 %v1575
    %v1705 = vunpack.c.h.b16 %v1575
    %v1706 = vunpack.c.l.b16 %v1576
    %v1707 = vunpack.c.h.b16 %v1576
    %v1708 = vunpack.c.l.b16 %v1577
    %v1709 = vunpack.c.h.b16 %v1577
    %v1710 = vunpack.c.l.b16 %v1578
    %v1711 = vunpack.c.h.b16 %v1578
    %v1712 = vunpack.c.l.b16 %v1579
    %v1713 = vunpack.c.h.b16 %v1579
    %v1714 = vunpack.c.l.b16 %v1580
    %v1715 = vunpack.c.h.b16 %v1580
    %v1716 = vunpack.c.l.b16 %v1581
    %v1717 = vunpack.c.h.b16 %v1581
    %v1718 = vunpack.c.l.b16 %v1582
    %v1719 = vunpack.c.h.b16 %v1582
    %v1720 = vunpack.c.l.b16 %v1583
    %v1721 = vunpack.c.h.b16 %v1583
    %v1722 = vunpack.c.l.b16 %v1584
    %v1723 = vunpack.c.h.b16 %v1584
    %v1724 = vunpack.c.l.b16 %v1585
    %v1725 = vunpack.c.h.b16 %v1585
    %v1726 = vunpack.c.l.b16 %v1586
    %v1727 = vunpack.c.h.b16 %v1586
    %v1728 = vunpack.c.l.b16 %v1587
    %v1729 = vunpack.c.h.b16 %v1587
    %v1730 = vunpack.c.l.b16 %v1588
    %v1731 = vunpack.c.h.b16 %v1588
    %v1732 = vunpack.c.l.b16 %v1589
    %v1733 = vunpack.c.h.b16 %v1589
    %v1734 = vunpack.c.l.b16 %v1590
    %v1735 = vunpack.c.h.b16 %v1590
    %v1736 = vunpack.c.l.b16 %v1591
    %v1737 = vunpack.c.h.b16 %v1591
    %v1738 = vunpack.c.l.b16 %v1592
    %v1739 = vunpack.c.h.b16 %v1592
    %v1740 = vunpack.c.l.b16 %v1593
    %v1741 = vunpack.c.h.b16 %v1593
    %v1742 = vunpack.c.l.b16 %v1594
    %v1743 = vunpack.c.h.b16 %v1594
    %v1744 = vunpack.c.l.b16 %v1595
    %v1745 = vunpack.c.h.b16 %v1595
    %v1746 = vunpack.c.l.b16 %v1596
    %v1747 = vunpack.c.h.b16 %v1596
    %v1748 = vunpack.c.l.b16 %v1597
    %v1749 = vunpack.c.h.b16 %v1597
    %v1750 = vunpack.c.l.b16 %v1598
    %v1751 = vunpack.c.h.b16 %v1598
    %v1752 = vunpack.c.l.b16 %v1599
    %v1753 = vunpack.c.h.b16 %v1599
    %v1754 = vunpack.c.l.b16 %v1600
    %v1755 = vunpack.c.h.b16 %v1600
    %v1756 = vunpack.c.l.b16 %v1601
    %v1757 = vunpack.c.h.b16 %v1601
    %v1758 = vunpack.c.l.b16 %v1602
    %v1759 = vunpack.c.h.b16 %v1602
    %v1760 = vunpack.c.l.b16 %v1603
    %v1761 = vunpack.c.h.b16 %v1603
    %v1762 = vunpack.c.l.b16 %v1604
    %v1763 = vunpack.c.h.b16 %v1604
    %v1764 = vunpack.c.l.b16 %v1605
    %v1765 = vunpack.c.h.b16 %v1605
    %v1766 = vunpack.c.l.b16 %v1606
    %v1767 = vunpack.c.h.b16 %v1606
    %v1768 = vunpack.c.l.b16 %v1607
    %v1769 = vunpack.c.h.b16 %v1607
    %v1770 = vunpack.c.l.b16 %v1608
    %v1771 = vunpack.c.h.b16 %v1608
    %v1772 = vunpack.c.l.b16 %v1609
    %v1773 = vunpack.c.h.b16 %v1609
    %v1774 = vunpack.c.l.b16 %v1610
    %v1775 = vunpack.c.h.b16 %v1610
    %v1776 = vunpack.c.l.b16 %v1611
    %v1777 = vunpack.c.h.b16 %v1611
    %v1778 = vunpack.c.l.b16 %v1612
    %v1779 = vunpack.c.h.b16 %v1612
    %v1780 = vunpack.c.l.b16 %v1613
    %v1781 = vunpack.c.h.b16 %v1613
    %v1782 = vunpack.c.l.b16 %v1614
    %v1783 = vunpack.c.h.b16 %v1614
    %v1784 = vunpack.c.l.b16 %v1615
    %v1785 = vunpack.c.h.b16 %v1615
    %v1786 = vunpack.c.l.b16 %v1616
    %v1787 = vunpack.c.h.b16 %v1616
    %v1788 = vunpack.c.l.b16 %v1617
    %v1789 = vunpack.c.h.b16 %v1617
    %v1790 = vunpack.c.l.b16 %v1618
    %v1791 = vunpack.c.h.b16 %v1618
    %v1792 = vunpack.c.l.b16 %v1619
    %v1793 = vunpack.c.h.b16 %v1619
    %v1794 = vunpack.c.l.b16 %v1620
    %v1795 = vunpack.c.h.b16 %v1620
    %v1796 = vunpack.c.l.b16 %v1621
    %v1797 = vunpack.c.h.b16 %v1621
    %v1798 = vunpack.c.l.b16 %v1622
    %v1799 = vunpack.c.h.b16 %v1622
    %v1800 = vunpack.c.l.b16 %v1623
    %v1801 = vunpack.c.h.b16 %v1623
    %v1802 = vunpack.c.l.b16 %v1624
    %v1803 = vunpack.c.h.b16 %v1624
    %v1804 = vunpack.c.l.b16 %v1625
    %v1805 = vunpack.c.h.b16 %v1625
    %v1806 = vunpack.c.l.b16 %v1626
    %v1807 = vunpack.c.h.b16 %v1626
    %v1808 = vunpack.c.l.b16 %v1627
    %v1809 = vunpack.c.h.b16 %v1627
    %v1810 = vunpack.c.l.b16 %v1628
    %v1811 = vunpack.c.h.b16 %v1628
    %v1812 = vunpack.c.l.b16 %v1629
    %v1813 = vunpack.c.h.b16 %v1629
    %v1814 = vunpack.c.l.b16 %v1630
    %v1815 = vunpack.c.h.b16 %v1630
    %v1816 = vunpack.c.l.b16 %v1631
    %v1817 = vunpack.c.h.b16 %v1631
    %v1818 = vunpack.c.l.b16 %v1632
    %v1819 = vunpack.c.h.b16 %v1632
    %v1820 = vunpack.c.l.b16 %v1633
    %v1821 = vunpack.c.h.b16 %v1633
    %v1822 = vunpack.c.l.b16 %v1634
    %v1823 = vunpack.c.h.b16 %v1634
    %v1824 = vunpack.c.l.b16 %v1635
    %v1825 = vunpack.c.h.b16 %v1635
    %v1826 = vunpack.c.l.b16 %v1636
    %v1827 = vunpack.c.h.b16 %v1636
    %v1828 = vunpack.c.l.b16 %v1637
    %v1829 = vunpack.c.h.b16 %v1637
    %v1830 = vpack.c.b16 %v1706, %v1702
    %v1831 = vpack.c.b16 %v1707, %v1703
    %v1832 = vpack.c.b16 %v1708, %v1704
    %v1833 = vpack.c.b16 %v1709, %v1705
    %v1834 = vpack.c.b16 %v1714, %v1710
    %v1835 = vpack.c.b16 %v1715, %v1711
    %v1836 = vpack.c.b16 %v1716, %v1712
    %v1837 = vpack.c.b16 %v1717, %v1713
    %v1838 = vpack.c.b16 %v1722, %v1718
    %v1839 = vpack.c.b16 %v1723, %v1719
    %v1840 = vpack.c.b16 %v1724, %v1720
    %v1841 = vpack.c.b16 %v1725, %v1721
    %v1842 = vpack.c.b16 %v1730, %v1726
    %v1843 = vpack.c.b16 %v1731, %v1727
    %v1844 = vpack.c.b16 %v1732, %v1728
    %v1845 = vpack.c.b16 %v1733, %v1729
    %v1846 = vpack.c.b16 %v1738, %v1734
    %v1847 = vpack.c.b16 %v1739, %v1735
    %v1848 = vpack.c.b16 %v1740, %v1736
    %v1849 = vpack.c.b16 %v1741, %v1737
    %v1850 = vpack.c.b16 %v1746, %v1742
    %v1851 = vpack.c.b16 %v1747, %v1743
    %v1852 = vpack.c.b16 %v1748, %v1744
    %v1853 = vpack.c.b16 %v1749, %v1745
    %v1854 = vpack.c.b16 %v1754, %v1750
    %v1855 = vpack.c.b16 %v1755, %v1751
    %v1856 = vpack.c.b16 %v1756, %v1752
    %v1857 = vpack.c.b16 %v1757, %v1753
    %v1858 = vpack.c.b16 %v1762, %v1758
    %v1859 = vpack.c.b16 %v1763, %v1759
    %v1860 = vpack.c.b16 %v1764, %v1760
    %v1861 = vpack.c.b16 %v1765, %v1761
    %v1862 = vpack.c.b16 %v1770, %v1766
    %v1863 = vpack.c.b16 %v1771, %v1767
    %v1864 = vpack.c.b16 %v1772, %v1768
    %v1865 = vpack.c.b16 %v1773, %v1769
    %v1866 = vpack.c.b16 %v1778, %v1774
    %v1867 = vpack.c.b16 %v1779, %v1775
    %v1868 = vpack.c.b16 %v1780, %v1776
    %v1869 = vpack.c.b16 %v1781, %v1777
    %v1870 = vpack.c.b16 %v1786, %v1782
    %v1871 = vpack.c.b16 %v1787, %v1783
    %v1872 = vpack.c.b16 %v1788, %v1784
    %v1873 = vpack.c.b16 %v1789, %v1785
    %v1874 = vpack.c.b16 %v1794, %v1790
    %v1875 = vpack.c.b16 %v1795, %v1791
    %v1876 = vpack.c.b16 %v1796, %v1792
    %v1877 = vpack.c.b16 %v1797, %v1793
    %v1878 = vpack.c.b16 %v1802, %v1798
    %v1879 = vpack.c.b16 %v1803, %v1799
    %v1880 = vpack.c.b16 %v1804, %v1800
    %v1881 = vpack.c.b16 %v1805, %v1801
    %v1882 = vpack.c.b16 %v1810, %v1806
    %v1883 = vpack.c.b16 %v1811, %v1807
    %v1884 = vpack.c.b16 %v1812, %v1808
    %v1885 = vpack.c.b16 %v1813, %v1809
    %v1886 = vpack.c.b16 %v1818, %v1814
    %v1887 = vpack.c.b16 %v1819, %v1815
    %v1888 = vpack.c.b16 %v1820, %v1816
    %v1889 = vpack.c.b16 %v1821, %v1817
    %v1890 = vpack.c.b16 %v1826, %v1822
    %v1891 = vpack.c.b16 %v1827, %v1823
    %v1892 = vpack.c.b16 %v1828, %v1824
    %v1893 = vpack.c.b16 %v1829, %v1825
    %1958 = vmatpush.bf16.msra.mxu0 %v1858
    %1959 = vmatpush.bf16.msra.mxu0 %v1854
    %1960 = vmatpush.bf16.msra.mxu0 %v1850
    %1961 = vmatpush.bf16.msra.mxu0 %v1846
    %1962 = vmatpush.bf16.msra.mxu0 %v1842
    %1963 = vmatpush.bf16.msra.mxu0 %v1838
    %1964 = vmatpush.bf16.msra.mxu0 %v1834
    %1965 = vmatpush.bf16.msra.mxu0 %v1830
    %1966 = vmatmul.bf16.gmra.mxu0 %v1572
    %v1967 = vpop.f32.mrf.mxu0
    %v1968 = vadd.f32 0.0, %v1967
    %v1969 = vpop.f32.mrf.mxu0
    %v1970 = vadd.f32 0.0, %v1969
    %1971 = vdwg.mxu0
    %1972 = vmatpush.bf16.msra.mxu0 %v1890
    %1973 = vmatpush.bf16.msra.mxu0 %v1886
    %1974 = vmatpush.bf16.msra.mxu0 %v1882
    %1975 = vmatpush.bf16.msra.mxu0 %v1878
    %1976 = vmatpush.bf16.msra.mxu0 %v1874
    %1977 = vmatpush.bf16.msra.mxu0 %v1870
    %1978 = vmatpush.bf16.msra.mxu0 %v1866
    %1979 = vmatpush.bf16.msra.mxu0 %v1862
    %1980 = vmatmul.bf16.gmra.mxu0 %v1573
    %v1981 = vpop.f32.mrf.mxu0
    %v1982 = vadd.f32 %v1968, %v1981
    %v1983 = vpop.f32.mrf.mxu0
    %v1984 = vadd.f32 %v1970, %v1983
    %1985 = vdwg.mxu0
    %1986 = vmatpush.bf16.msra.mxu0 %v1859
    %1987 = vmatpush.bf16.msra.mxu0 %v1855
    %1988 = vmatpush.bf16.msra.mxu0 %v1851
    %1989 = vmatpush.bf16.msra.mxu0 %v1847
    %1990 = vmatpush.bf16.msra.mxu0 %v1843
    %1991 = vmatpush.bf16.msra.mxu0 %v1839
    %1992 = vmatpush.bf16.msra.mxu0 %v1835
    %1993 = vmatpush.bf16.msra.mxu0 %v1831
    %1994 = vmatmul.bf16.gmra.mxu0 %v1572
    %v1995 = vpop.f32.mrf.mxu0
    %v1996 = vadd.f32 0.0, %v1995
    %v1997 = vpop.f32.mrf.mxu0
    %v1998 = vadd.f32 0.0, %v1997
    %1999 = vdwg.mxu0
    %2000 = vmatpush.bf16.msra.mxu0 %v1891
    %2001 = vmatpush.bf16.msra.mxu0 %v1887
    %2002 = vmatpush.bf16.msra.mxu0 %v1883
    %2003 = vmatpush.bf16.msra.mxu0 %v1879
    %2004 = vmatpush.bf16.msra.mxu0 %v1875
    %2005 = vmatpush.bf16.msra.mxu0 %v1871
    %2006 = vmatpush.bf16.msra.mxu0 %v1867
    %2007 = vmatpush.bf16.msra.mxu0 %v1863
    %2008 = vmatmul.bf16.gmra.mxu0 %v1573
    %v2009 = vpop.f32.mrf.mxu0
    %v2010 = vadd.f32 %v1996, %v2009
    %v2011 = vpop.f32.mrf.mxu0
    %v2012 = vadd.f32 %v1998, %v2011
    %2013 = vdwg.mxu0
    %2014 = vmatpush.bf16.msra.mxu0 %v1860
    %2015 = vmatpush.bf16.msra.mxu0 %v1856
    %2016 = vmatpush.bf16.msra.mxu0 %v1852
    %2017 = vmatpush.bf16.msra.mxu0 %v1848
    %2018 = vmatpush.bf16.msra.mxu0 %v1844
    %2019 = vmatpush.bf16.msra.mxu0 %v1840
    %2020 = vmatpush.bf16.msra.mxu0 %v1836
    %2021 = vmatpush.bf16.msra.mxu0 %v1832
    %2022 = vmatmul.bf16.gmra.mxu0 %v1572
    %v2023 = vpop.f32.mrf.mxu0
    %v2024 = vadd.f32 0.0, %v2023
    %v2025 = vpop.f32.mrf.mxu0
    %v2026 = vadd.f32 0.0, %v2025
    %2027 = vdwg.mxu0
    %2028 = vmatpush.bf16.msra.mxu0 %v1892
    %2029 = vmatpush.bf16.msra.mxu0 %v1888
    %2030 = vmatpush.bf16.msra.mxu0 %v1884
    %2031 = vmatpush.bf16.msra.mxu0 %v1880
    %2032 = vmatpush.bf16.msra.mxu0 %v1876
    %2033 = vmatpush.bf16.msra.mxu0 %v1872
    %2034 = vmatpush.bf16.msra.mxu0 %v1868
    %2035 = vmatpush.bf16.msra.mxu0 %v1864
    %2036 = vmatmul.bf16.gmra.mxu0 %v1573
    %v2037 = vpop.f32.mrf.mxu0
    %v2038 = vadd.f32 %v2024, %v2037
    %v2039 = vpop.f32.mrf.mxu0
    %v2040 = vadd.f32 %v2026, %v2039
    %2041 = vdwg.mxu0
    %2042 = vmatpush.bf16.msra.mxu0 %v1861
    %2043 = vmatpush.bf16.msra.mxu0 %v1857
    %2044 = vmatpush.bf16.msra.mxu0 %v1853
    %2045 = vmatpush.bf16.msra.mxu0 %v1849
    %2046 = vmatpush.bf16.msra.mxu0 %v1845
    %2047 = vmatpush.bf16.msra.mxu0 %v1841
    %2048 = vmatpush.bf16.msra.mxu0 %v1837
    %2049 = vmatpush.bf16.msra.mxu0 %v1833
    %2050 = vmatmul.bf16.gmra.mxu0 %v1572
    %v2051 = vpop.f32.mrf.mxu0
    %v2052 = vadd.f32 0.0, %v2051
    %v2053 = vpop.f32.mrf.mxu0
    %v2054 = vadd.f32 0.0, %v2053
    %2055 = vdwg.mxu0
    %2056 = vmatpush.bf16.msra.mxu0 %v1893
    %2057 = vmatpush.bf16.msra.mxu0 %v1889
    %2058 = vmatpush.bf16.msra.mxu0 %v1885
    %2059 = vmatpush.bf16.msra.mxu0 %v1881
    %2060 = vmatpush.bf16.msra.mxu0 %v1877
    %2061 = vmatpush.bf16.msra.mxu0 %v1873
    %2062 = vmatpush.bf16.msra.mxu0 %v1869
    %2063 = vmatpush.bf16.msra.mxu0 %v1865
    %2064 = vmatmul.bf16.gmra.mxu0 %v1573
    %v2065 = vpop.f32.mrf.mxu0
    %v2066 = vadd.f32 %v2052, %v2065
    %v2067 = vpop.f32.mrf.mxu0
    %v2068 = vadd.f32 %v2054, %v2067
    %2069 = vdwg.mxu0
    %v2070 = vadd.f32 %v330, %v1982
    %v2071 = vadd.f32 %v344, %v2010
    %v2072 = vadd.f32 %v358, %v2038
    %v2073 = vadd.f32 %v372, %v2066
    %v2074 = vadd.f32 %v332, %v1984
    %v2075 = vadd.f32 %v346, %v2012
    %v2076 = vadd.f32 %v360, %v2040
    %v2077 = vadd.f32 %v374, %v2068
    %v2079 = vperm.slane %v384, 0
    %v2080 = vperm.slane %v384, 1
    %v2081 = vperm.slane %v384, 2
    %v2082 = vperm.slane %v384, 3
    %v2087 = vadd.f32 %v2070, %v2079
    %v2088 = vadd.f32 %v2071, %v2080
    %v2089 = vadd.f32 %v2072, %v2081
    %v2090 = vadd.f32 %v2073, %v2082
    %v2091 = vadd.f32 %v2074, %v2079
    %v2092 = vadd.f32 %v2075, %v2080
    %v2093 = vadd.f32 %v2076, %v2081
    %v2094 = vadd.f32 %v2077, %v2082
    %vm2095 = vcmp.gt.f32.partialorder %v2087, 0.0
    %vm2096 = vcmp.gt.f32.partialorder %v2088, 0.0
    %vm2097 = vcmp.gt.f32.partialorder %v2089, 0.0
    %vm2098 = vcmp.gt.f32.partialorder %v2090, 0.0
    %vm2099 = vcmp.gt.f32.partialorder %v2091, 0.0
    %vm2100 = vcmp.gt.f32.partialorder %v2092, 0.0
    %vm2101 = vcmp.gt.f32.partialorder %v2093, 0.0
    %vm2102 = vcmp.gt.f32.partialorder %v2094, 0.0
    %v2103 = vmul.f32 %v2087, 0.01
    %v2104 = vmul.f32 %v2088, 0.01
    %v2105 = vmul.f32 %v2089, 0.01
    %v2106 = vmul.f32 %v2090, 0.01
    %v2107 = vmul.f32 %v2091, 0.01
    %v2108 = vmul.f32 %v2092, 0.01
    %v2109 = vmul.f32 %v2093, 0.01
    %v2110 = vmul.f32 %v2094, 0.01
    %v2111 = vsel %vm2095, %v2087, %v2103
    %v2112 = vsel %vm2096, %v2088, %v2104
    %v2113 = vsel %vm2097, %v2089, %v2105
    %v2114 = vsel %vm2098, %v2090, %v2106
    %v2115 = vsel %vm2099, %v2091, %v2107
    %v2116 = vsel %vm2100, %v2092, %v2108
    %v2117 = vsel %vm2101, %v2093, %v2109
    %v2118 = vsel %vm2102, %v2094, %v2110
    %v2119 = vpack.c.bf16 %v2115, %v2111
    %v2120 = vpack.c.bf16 %v2116, %v2112
    %v2121 = vpack.c.bf16 %v2117, %v2113
    %v2122 = vpack.c.bf16 %v2118, %v2114
    %v2123 = vld [vmem:[#allocation13] sm:$0xff]
    %v2124 = vld [vmem:[#allocation13 + $0x8] sm:$0xff]
    %v2125 = vld [vmem:[#allocation13 + $0x10] sm:$0xff]
    %v2126 = vld [vmem:[#allocation13 + $0x18] sm:$0xff]
    %v2127 = vld [vmem:[#allocation13 + $0x20] sm:$0xff]
    %v2128 = vld [vmem:[#allocation13 + $0x28] sm:$0xff]
    %v2129 = vld [vmem:[#allocation13 + $0x30] sm:$0xff]
    %v2130 = vld [vmem:[#allocation13 + $0x38] sm:$0xff]
    %v2131 = vld [vmem:[#allocation13 + $0x40] sm:$0xff]
    %v2132 = vld [vmem:[#allocation13 + $0x48] sm:$0xff]
    %v2133 = vld [vmem:[#allocation13 + $0x50] sm:$0xff]
    %v2134 = vld [vmem:[#allocation13 + $0x58] sm:$0xff]
    %v2135 = vld [vmem:[#allocation13 + $0x60] sm:$0xff]
    %v2136 = vld [vmem:[#allocation13 + $0x68] sm:$0xff]
    %v2137 = vld [vmem:[#allocation13 + $0x70] sm:$0xff]
    %v2138 = vld [vmem:[#allocation13 + $0x78] sm:$0xff]
    %v2139 = vld [vmem:[#allocation13 + $0x80] sm:$0xff]
    %v2140 = vld [vmem:[#allocation13 + $0x88] sm:$0xff]
    %v2141 = vld [vmem:[#allocation13 + $0x90] sm:$0xff]
    %v2142 = vld [vmem:[#allocation13 + $0x98] sm:$0xff]
    %v2143 = vld [vmem:[#allocation13 + $0xa0] sm:$0xff]
    %v2144 = vld [vmem:[#allocation13 + $0xa8] sm:$0xff]
    %v2145 = vld [vmem:[#allocation13 + $0xb0] sm:$0xff]
    %v2146 = vld [vmem:[#allocation13 + $0xb8] sm:$0xff]
    %v2147 = vld [vmem:[#allocation13 + $0xc0] sm:$0xff]
    %v2148 = vld [vmem:[#allocation13 + $0xc8] sm:$0xff]
    %v2149 = vld [vmem:[#allocation13 + $0xd0] sm:$0xff]
    %v2150 = vld [vmem:[#allocation13 + $0xd8] sm:$0xff]
    %v2151 = vld [vmem:[#allocation13 + $0xe0] sm:$0xff]
    %v2152 = vld [vmem:[#allocation13 + $0xe8] sm:$0xff]
    %v2153 = vld [vmem:[#allocation13 + $0xf0] sm:$0xff]
    %v2154 = vld [vmem:[#allocation13 + $0xf8] sm:$0xff]
    %v2155 = vld [vmem:[#allocation13 + $0x100] sm:$0xff]
    %v2156 = vld [vmem:[#allocation13 + $0x108] sm:$0xff]
    %v2157 = vld [vmem:[#allocation13 + $0x110] sm:$0xff]
    %v2158 = vld [vmem:[#allocation13 + $0x118] sm:$0xff]
    %v2159 = vld [vmem:[#allocation13 + $0x120] sm:$0xff]
    %v2160 = vld [vmem:[#allocation13 + $0x128] sm:$0xff]
    %v2161 = vld [vmem:[#allocation13 + $0x130] sm:$0xff]
    %v2162 = vld [vmem:[#allocation13 + $0x138] sm:$0xff]
    %v2163 = vld [vmem:[#allocation13 + $0x140] sm:$0xff]
    %v2164 = vld [vmem:[#allocation13 + $0x148] sm:$0xff]
    %v2165 = vld [vmem:[#allocation13 + $0x150] sm:$0xff]
    %v2166 = vld [vmem:[#allocation13 + $0x158] sm:$0xff]
    %v2167 = vld [vmem:[#allocation13 + $0x160] sm:$0xff]
    %v2168 = vld [vmem:[#allocation13 + $0x168] sm:$0xff]
    %v2169 = vld [vmem:[#allocation13 + $0x170] sm:$0xff]
    %v2170 = vld [vmem:[#allocation13 + $0x178] sm:$0xff]
    %v2171 = vld [vmem:[#allocation13 + $0x180] sm:$0xff]
    %v2172 = vld [vmem:[#allocation13 + $0x188] sm:$0xff]
    %v2173 = vld [vmem:[#allocation13 + $0x190] sm:$0xff]
    %v2174 = vld [vmem:[#allocation13 + $0x198] sm:$0xff]
    %v2175 = vld [vmem:[#allocation13 + $0x1a0] sm:$0xff]
    %v2176 = vld [vmem:[#allocation13 + $0x1a8] sm:$0xff]
    %v2177 = vld [vmem:[#allocation13 + $0x1b0] sm:$0xff]
    %v2178 = vld [vmem:[#allocation13 + $0x1b8] sm:$0xff]
    %v2179 = vld [vmem:[#allocation13 + $0x1c0] sm:$0xff]
    %v2180 = vld [vmem:[#allocation13 + $0x1c8] sm:$0xff]
    %v2181 = vld [vmem:[#allocation13 + $0x1d0] sm:$0xff]
    %v2182 = vld [vmem:[#allocation13 + $0x1d8] sm:$0xff]
    %v2183 = vld [vmem:[#allocation13 + $0x1e0] sm:$0xff]
    %v2184 = vld [vmem:[#allocation13 + $0x1e8] sm:$0xff]
    %v2185 = vld [vmem:[#allocation13 + $0x1f0] sm:$0xff]
    %v2186 = vld [vmem:[#allocation13 + $0x1f8] sm:$0xff]
    %v2187 = vld [vmem:[#allocation13 + $0x200] sm:$0xff]
    %v2188 = vld [vmem:[#allocation13 + $0x208] sm:$0xff]
    %v2189 = vld [vmem:[#allocation13 + $0x210] sm:$0xff]
    %v2190 = vld [vmem:[#allocation13 + $0x218] sm:$0xff]
    %v2191 = vld [vmem:[#allocation13 + $0x220] sm:$0xff]
    %v2192 = vld [vmem:[#allocation13 + $0x228] sm:$0xff]
    %v2193 = vld [vmem:[#allocation13 + $0x230] sm:$0xff]
    %v2194 = vld [vmem:[#allocation13 + $0x238] sm:$0xff]
    %v2195 = vld [vmem:[#allocation13 + $0x240] sm:$0xff]
    %v2196 = vld [vmem:[#allocation13 + $0x248] sm:$0xff]
    %v2197 = vld [vmem:[#allocation13 + $0x250] sm:$0xff]
    %v2198 = vld [vmem:[#allocation13 + $0x258] sm:$0xff]
    %v2199 = vld [vmem:[#allocation13 + $0x260] sm:$0xff]
    %v2200 = vld [vmem:[#allocation13 + $0x268] sm:$0xff]
    %v2201 = vld [vmem:[#allocation13 + $0x270] sm:$0xff]
    %v2202 = vld [vmem:[#allocation13 + $0x278] sm:$0xff]
    %v2203 = vld [vmem:[#allocation13 + $0x280] sm:$0xff]
    %v2204 = vld [vmem:[#allocation13 + $0x288] sm:$0xff]
    %v2205 = vld [vmem:[#allocation13 + $0x290] sm:$0xff]
    %v2206 = vld [vmem:[#allocation13 + $0x298] sm:$0xff]
    %v2207 = vld [vmem:[#allocation13 + $0x2a0] sm:$0xff]
    %v2208 = vld [vmem:[#allocation13 + $0x2a8] sm:$0xff]
    %v2209 = vld [vmem:[#allocation13 + $0x2b0] sm:$0xff]
    %v2210 = vld [vmem:[#allocation13 + $0x2b8] sm:$0xff]
    %v2211 = vld [vmem:[#allocation13 + $0x2c0] sm:$0xff]
    %v2212 = vld [vmem:[#allocation13 + $0x2c8] sm:$0xff]
    %v2213 = vld [vmem:[#allocation13 + $0x2d0] sm:$0xff]
    %v2214 = vld [vmem:[#allocation13 + $0x2d8] sm:$0xff]
    %v2215 = vld [vmem:[#allocation13 + $0x2e0] sm:$0xff]
    %v2216 = vld [vmem:[#allocation13 + $0x2e8] sm:$0xff]
    %v2217 = vld [vmem:[#allocation13 + $0x2f0] sm:$0xff]
    %v2218 = vld [vmem:[#allocation13 + $0x2f8] sm:$0xff]
    %v2219 = vld [vmem:[#allocation13 + $0x300] sm:$0xff]
    %v2220 = vld [vmem:[#allocation13 + $0x308] sm:$0xff]
    %v2221 = vld [vmem:[#allocation13 + $0x310] sm:$0xff]
    %v2222 = vld [vmem:[#allocation13 + $0x318] sm:$0xff]
    %v2223 = vld [vmem:[#allocation13 + $0x320] sm:$0xff]
    %v2224 = vld [vmem:[#allocation13 + $0x328] sm:$0xff]
    %v2225 = vld [vmem:[#allocation13 + $0x330] sm:$0xff]
    %v2226 = vld [vmem:[#allocation13 + $0x338] sm:$0xff]
    %v2227 = vld [vmem:[#allocation13 + $0x340] sm:$0xff]
    %v2228 = vld [vmem:[#allocation13 + $0x348] sm:$0xff]
    %v2229 = vld [vmem:[#allocation13 + $0x350] sm:$0xff]
    %v2230 = vld [vmem:[#allocation13 + $0x358] sm:$0xff]
    %v2231 = vld [vmem:[#allocation13 + $0x360] sm:$0xff]
    %v2232 = vld [vmem:[#allocation13 + $0x368] sm:$0xff]
    %v2233 = vld [vmem:[#allocation13 + $0x370] sm:$0xff]
    %v2234 = vld [vmem:[#allocation13 + $0x378] sm:$0xff]
    %v2235 = vld [vmem:[#allocation13 + $0x380] sm:$0xff]
    %v2236 = vld [vmem:[#allocation13 + $0x388] sm:$0xff]
    %v2237 = vld [vmem:[#allocation13 + $0x390] sm:$0xff]
    %v2238 = vld [vmem:[#allocation13 + $0x398] sm:$0xff]
    %v2239 = vld [vmem:[#allocation13 + $0x3a0] sm:$0xff]
    %v2240 = vld [vmem:[#allocation13 + $0x3a8] sm:$0xff]
    %v2241 = vld [vmem:[#allocation13 + $0x3b0] sm:$0xff]
    %v2242 = vld [vmem:[#allocation13 + $0x3b8] sm:$0xff]
    %v2243 = vld [vmem:[#allocation13 + $0x3c0] sm:$0xff]
    %v2244 = vld [vmem:[#allocation13 + $0x3c8] sm:$0xff]
    %v2245 = vld [vmem:[#allocation13 + $0x3d0] sm:$0xff]
    %v2246 = vld [vmem:[#allocation13 + $0x3d8] sm:$0xff]
    %v2247 = vld [vmem:[#allocation13 + $0x3e0] sm:$0xff]
    %v2248 = vld [vmem:[#allocation13 + $0x3e8] sm:$0xff]
    %v2249 = vld [vmem:[#allocation13 + $0x3f0] sm:$0xff]
    %v2250 = vld [vmem:[#allocation13 + $0x3f8] sm:$0xff]
    %v2252 = vperm.slane %v386, 0
    %v2253 = vperm.slane %v386, 1
    %v2254 = vperm.slane %v386, 2
    %v2255 = vperm.slane %v386, 3
    %v2388 = vunpack.c.l.b16 %v2123
    %v2389 = vunpack.c.h.b16 %v2123
    %v2390 = vunpack.c.l.b16 %v2124
    %v2391 = vunpack.c.h.b16 %v2124
    %v2392 = vunpack.c.l.b16 %v2125
    %v2393 = vunpack.c.h.b16 %v2125
    %v2394 = vunpack.c.l.b16 %v2126
    %v2395 = vunpack.c.h.b16 %v2126
    %v2396 = vunpack.c.l.b16 %v2127
    %v2397 = vunpack.c.h.b16 %v2127
    %v2398 = vunpack.c.l.b16 %v2128
    %v2399 = vunpack.c.h.b16 %v2128
    %v2400 = vunpack.c.l.b16 %v2129
    %v2401 = vunpack.c.h.b16 %v2129
    %v2402 = vunpack.c.l.b16 %v2130
    %v2403 = vunpack.c.h.b16 %v2130
    %v2404 = vunpack.c.l.b16 %v2131
    %v2405 = vunpack.c.h.b16 %v2131
    %v2406 = vunpack.c.l.b16 %v2132
    %v2407 = vunpack.c.h.b16 %v2132
    %v2408 = vunpack.c.l.b16 %v2133
    %v2409 = vunpack.c.h.b16 %v2133
    %v2410 = vunpack.c.l.b16 %v2134
    %v2411 = vunpack.c.h.b16 %v2134
    %v2412 = vunpack.c.l.b16 %v2135
    %v2413 = vunpack.c.h.b16 %v2135
    %v2414 = vunpack.c.l.b16 %v2136
    %v2415 = vunpack.c.h.b16 %v2136
    %v2416 = vunpack.c.l.b16 %v2137
    %v2417 = vunpack.c.h.b16 %v2137
    %v2418 = vunpack.c.l.b16 %v2138
    %v2419 = vunpack.c.h.b16 %v2138
    %v2420 = vunpack.c.l.b16 %v2139
    %v2421 = vunpack.c.h.b16 %v2139
    %v2422 = vunpack.c.l.b16 %v2140
    %v2423 = vunpack.c.h.b16 %v2140
    %v2424 = vunpack.c.l.b16 %v2141
    %v2425 = vunpack.c.h.b16 %v2141
    %v2426 = vunpack.c.l.b16 %v2142
    %v2427 = vunpack.c.h.b16 %v2142
    %v2428 = vunpack.c.l.b16 %v2143
    %v2429 = vunpack.c.h.b16 %v2143
    %v2430 = vunpack.c.l.b16 %v2144
    %v2431 = vunpack.c.h.b16 %v2144
    %v2432 = vunpack.c.l.b16 %v2145
    %v2433 = vunpack.c.h.b16 %v2145
    %v2434 = vunpack.c.l.b16 %v2146
    %v2435 = vunpack.c.h.b16 %v2146
    %v2436 = vunpack.c.l.b16 %v2147
    %v2437 = vunpack.c.h.b16 %v2147
    %v2438 = vunpack.c.l.b16 %v2148
    %v2439 = vunpack.c.h.b16 %v2148
    %v2440 = vunpack.c.l.b16 %v2149
    %v2441 = vunpack.c.h.b16 %v2149
    %v2442 = vunpack.c.l.b16 %v2150
    %v2443 = vunpack.c.h.b16 %v2150
    %v2444 = vunpack.c.l.b16 %v2151
    %v2445 = vunpack.c.h.b16 %v2151
    %v2446 = vunpack.c.l.b16 %v2152
    %v2447 = vunpack.c.h.b16 %v2152
    %v2448 = vunpack.c.l.b16 %v2153
    %v2449 = vunpack.c.h.b16 %v2153
    %v2450 = vunpack.c.l.b16 %v2154
    %v2451 = vunpack.c.h.b16 %v2154
    %v2452 = vunpack.c.l.b16 %v2155
    %v2453 = vunpack.c.h.b16 %v2155
    %v2454 = vunpack.c.l.b16 %v2156
    %v2455 = vunpack.c.h.b16 %v2156
    %v2456 = vunpack.c.l.b16 %v2157
    %v2457 = vunpack.c.h.b16 %v2157
    %v2458 = vunpack.c.l.b16 %v2158
    %v2459 = vunpack.c.h.b16 %v2158
    %v2460 = vunpack.c.l.b16 %v2159
    %v2461 = vunpack.c.h.b16 %v2159
    %v2462 = vunpack.c.l.b16 %v2160
    %v2463 = vunpack.c.h.b16 %v2160
    %v2464 = vunpack.c.l.b16 %v2161
    %v2465 = vunpack.c.h.b16 %v2161
    %v2466 = vunpack.c.l.b16 %v2162
    %v2467 = vunpack.c.h.b16 %v2162
    %v2468 = vunpack.c.l.b16 %v2163
    %v2469 = vunpack.c.h.b16 %v2163
    %v2470 = vunpack.c.l.b16 %v2164
    %v2471 = vunpack.c.h.b16 %v2164
    %v2472 = vunpack.c.l.b16 %v2165
    %v2473 = vunpack.c.h.b16 %v2165
    %v2474 = vunpack.c.l.b16 %v2166
    %v2475 = vunpack.c.h.b16 %v2166
    %v2476 = vunpack.c.l.b16 %v2167
    %v2477 = vunpack.c.h.b16 %v2167
    %v2478 = vunpack.c.l.b16 %v2168
    %v2479 = vunpack.c.h.b16 %v2168
    %v2480 = vunpack.c.l.b16 %v2169
    %v2481 = vunpack.c.h.b16 %v2169
    %v2482 = vunpack.c.l.b16 %v2170
    %v2483 = vunpack.c.h.b16 %v2170
    %v2484 = vunpack.c.l.b16 %v2171
    %v2485 = vunpack.c.h.b16 %v2171
    %v2486 = vunpack.c.l.b16 %v2172
    %v2487 = vunpack.c.h.b16 %v2172
    %v2488 = vunpack.c.l.b16 %v2173
    %v2489 = vunpack.c.h.b16 %v2173
    %v2490 = vunpack.c.l.b16 %v2174
    %v2491 = vunpack.c.h.b16 %v2174
    %v2492 = vunpack.c.l.b16 %v2175
    %v2493 = vunpack.c.h.b16 %v2175
    %v2494 = vunpack.c.l.b16 %v2176
    %v2495 = vunpack.c.h.b16 %v2176
    %v2496 = vunpack.c.l.b16 %v2177
    %v2497 = vunpack.c.h.b16 %v2177
    %v2498 = vunpack.c.l.b16 %v2178
    %v2499 = vunpack.c.h.b16 %v2178
    %v2500 = vunpack.c.l.b16 %v2179
    %v2501 = vunpack.c.h.b16 %v2179
    %v2502 = vunpack.c.l.b16 %v2180
    %v2503 = vunpack.c.h.b16 %v2180
    %v2504 = vunpack.c.l.b16 %v2181
    %v2505 = vunpack.c.h.b16 %v2181
    %v2506 = vunpack.c.l.b16 %v2182
    %v2507 = vunpack.c.h.b16 %v2182
    %v2508 = vunpack.c.l.b16 %v2183
    %v2509 = vunpack.c.h.b16 %v2183
    %v2510 = vunpack.c.l.b16 %v2184
    %v2511 = vunpack.c.h.b16 %v2184
    %v2512 = vunpack.c.l.b16 %v2185
    %v2513 = vunpack.c.h.b16 %v2185
    %v2514 = vunpack.c.l.b16 %v2186
    %v2515 = vunpack.c.h.b16 %v2186
    %v2516 = vunpack.c.l.b16 %v2187
    %v2517 = vunpack.c.h.b16 %v2187
    %v2518 = vunpack.c.l.b16 %v2188
    %v2519 = vunpack.c.h.b16 %v2188
    %v2520 = vunpack.c.l.b16 %v2189
    %v2521 = vunpack.c.h.b16 %v2189
    %v2522 = vunpack.c.l.b16 %v2190
    %v2523 = vunpack.c.h.b16 %v2190
    %v2524 = vunpack.c.l.b16 %v2191
    %v2525 = vunpack.c.h.b16 %v2191
    %v2526 = vunpack.c.l.b16 %v2192
    %v2527 = vunpack.c.h.b16 %v2192
    %v2528 = vunpack.c.l.b16 %v2193
    %v2529 = vunpack.c.h.b16 %v2193
    %v2530 = vunpack.c.l.b16 %v2194
    %v2531 = vunpack.c.h.b16 %v2194
    %v2532 = vunpack.c.l.b16 %v2195
    %v2533 = vunpack.c.h.b16 %v2195
    %v2534 = vunpack.c.l.b16 %v2196
    %v2535 = vunpack.c.h.b16 %v2196
    %v2536 = vunpack.c.l.b16 %v2197
    %v2537 = vunpack.c.h.b16 %v2197
    %v2538 = vunpack.c.l.b16 %v2198
    %v2539 = vunpack.c.h.b16 %v2198
    %v2540 = vunpack.c.l.b16 %v2199
    %v2541 = vunpack.c.h.b16 %v2199
    %v2542 = vunpack.c.l.b16 %v2200
    %v2543 = vunpack.c.h.b16 %v2200
    %v2544 = vunpack.c.l.b16 %v2201
    %v2545 = vunpack.c.h.b16 %v2201
    %v2546 = vunpack.c.l.b16 %v2202
    %v2547 = vunpack.c.h.b16 %v2202
    %v2548 = vunpack.c.l.b16 %v2203
    %v2549 = vunpack.c.h.b16 %v2203
    %v2550 = vunpack.c.l.b16 %v2204
    %v2551 = vunpack.c.h.b16 %v2204
    %v2552 = vunpack.c.l.b16 %v2205
    %v2553 = vunpack.c.h.b16 %v2205
    %v2554 = vunpack.c.l.b16 %v2206
    %v2555 = vunpack.c.h.b16 %v2206
    %v2556 = vunpack.c.l.b16 %v2207
    %v2557 = vunpack.c.h.b16 %v2207
    %v2558 = vunpack.c.l.b16 %v2208
    %v2559 = vunpack.c.h.b16 %v2208
    %v2560 = vunpack.c.l.b16 %v2209
    %v2561 = vunpack.c.h.b16 %v2209
    %v2562 = vunpack.c.l.b16 %v2210
    %v2563 = vunpack.c.h.b16 %v2210
    %v2564 = vunpack.c.l.b16 %v2211
    %v2565 = vunpack.c.h.b16 %v2211
    %v2566 = vunpack.c.l.b16 %v2212
    %v2567 = vunpack.c.h.b16 %v2212
    %v2568 = vunpack.c.l.b16 %v2213
    %v2569 = vunpack.c.h.b16 %v2213
    %v2570 = vunpack.c.l.b16 %v2214
    %v2571 = vunpack.c.h.b16 %v2214
    %v2572 = vunpack.c.l.b16 %v2215
    %v2573 = vunpack.c.h.b16 %v2215
    %v2574 = vunpack.c.l.b16 %v2216
    %v2575 = vunpack.c.h.b16 %v2216
    %v2576 = vunpack.c.l.b16 %v2217
    %v2577 = vunpack.c.h.b16 %v2217
    %v2578 = vunpack.c.l.b16 %v2218
    %v2579 = vunpack.c.h.b16 %v2218
    %v2580 = vunpack.c.l.b16 %v2219
    %v2581 = vunpack.c.h.b16 %v2219
    %v2582 = vunpack.c.l.b16 %v2220
    %v2583 = vunpack.c.h.b16 %v2220
    %v2584 = vunpack.c.l.b16 %v2221
    %v2585 = vunpack.c.h.b16 %v2221
    %v2586 = vunpack.c.l.b16 %v2222
    %v2587 = vunpack.c.h.b16 %v2222
    %v2588 = vunpack.c.l.b16 %v2223
    %v2589 = vunpack.c.h.b16 %v2223
    %v2590 = vunpack.c.l.b16 %v2224
    %v2591 = vunpack.c.h.b16 %v2224
    %v2592 = vunpack.c.l.b16 %v2225
    %v2593 = vunpack.c.h.b16 %v2225
    %v2594 = vunpack.c.l.b16 %v2226
    %v2595 = vunpack.c.h.b16 %v2226
    %v2596 = vunpack.c.l.b16 %v2227
    %v2597 = vunpack.c.h.b16 %v2227
    %v2598 = vunpack.c.l.b16 %v2228
    %v2599 = vunpack.c.h.b16 %v2228
    %v2600 = vunpack.c.l.b16 %v2229
    %v2601 = vunpack.c.h.b16 %v2229
    %v2602 = vunpack.c.l.b16 %v2230
    %v2603 = vunpack.c.h.b16 %v2230
    %v2604 = vunpack.c.l.b16 %v2231
    %v2605 = vunpack.c.h.b16 %v2231
    %v2606 = vunpack.c.l.b16 %v2232
    %v2607 = vunpack.c.h.b16 %v2232
    %v2608 = vunpack.c.l.b16 %v2233
    %v2609 = vunpack.c.h.b16 %v2233
    %v2610 = vunpack.c.l.b16 %v2234
    %v2611 = vunpack.c.h.b16 %v2234
    %v2612 = vunpack.c.l.b16 %v2235
    %v2613 = vunpack.c.h.b16 %v2235
    %v2614 = vunpack.c.l.b16 %v2236
    %v2615 = vunpack.c.h.b16 %v2236
    %v2616 = vunpack.c.l.b16 %v2237
    %v2617 = vunpack.c.h.b16 %v2237
    %v2618 = vunpack.c.l.b16 %v2238
    %v2619 = vunpack.c.h.b16 %v2238
    %v2620 = vunpack.c.l.b16 %v2239
    %v2621 = vunpack.c.h.b16 %v2239
    %v2622 = vunpack.c.l.b16 %v2240
    %v2623 = vunpack.c.h.b16 %v2240
    %v2624 = vunpack.c.l.b16 %v2241
    %v2625 = vunpack.c.h.b16 %v2241
    %v2626 = vunpack.c.l.b16 %v2242
    %v2627 = vunpack.c.h.b16 %v2242
    %v2628 = vunpack.c.l.b16 %v2243
    %v2629 = vunpack.c.h.b16 %v2243
    %v2630 = vunpack.c.l.b16 %v2244
    %v2631 = vunpack.c.h.b16 %v2244
    %v2632 = vunpack.c.l.b16 %v2245
    %v2633 = vunpack.c.h.b16 %v2245
    %v2634 = vunpack.c.l.b16 %v2246
    %v2635 = vunpack.c.h.b16 %v2246
    %v2636 = vunpack.c.l.b16 %v2247
    %v2637 = vunpack.c.h.b16 %v2247
    %v2638 = vunpack.c.l.b16 %v2248
    %v2639 = vunpack.c.h.b16 %v2248
    %v2640 = vunpack.c.l.b16 %v2249
    %v2641 = vunpack.c.h.b16 %v2249
    %v2642 = vunpack.c.l.b16 %v2250
    %v2643 = vunpack.c.h.b16 %v2250
    %v2644 = vpack.c.b16 %v2392, %v2388
    %v2645 = vpack.c.b16 %v2393, %v2389
    %v2646 = vpack.c.b16 %v2394, %v2390
    %v2647 = vpack.c.b16 %v2395, %v2391
    %v2648 = vpack.c.b16 %v2400, %v2396
    %v2649 = vpack.c.b16 %v2401, %v2397
    %v2650 = vpack.c.b16 %v2402, %v2398
    %v2651 = vpack.c.b16 %v2403, %v2399
    %v2652 = vpack.c.b16 %v2408, %v2404
    %v2653 = vpack.c.b16 %v2409, %v2405
    %v2654 = vpack.c.b16 %v2410, %v2406
    %v2655 = vpack.c.b16 %v2411, %v2407
    %v2656 = vpack.c.b16 %v2416, %v2412
    %v2657 = vpack.c.b16 %v2417, %v2413
    %v2658 = vpack.c.b16 %v2418, %v2414
    %v2659 = vpack.c.b16 %v2419, %v2415
    %v2660 = vpack.c.b16 %v2424, %v2420
    %v2661 = vpack.c.b16 %v2425, %v2421
    %v2662 = vpack.c.b16 %v2426, %v2422
    %v2663 = vpack.c.b16 %v2427, %v2423
    %v2664 = vpack.c.b16 %v2432, %v2428
    %v2665 = vpack.c.b16 %v2433, %v2429
    %v2666 = vpack.c.b16 %v2434, %v2430
    %v2667 = vpack.c.b16 %v2435, %v2431
    %v2668 = vpack.c.b16 %v2440, %v2436
    %v2669 = vpack.c.b16 %v2441, %v2437
    %v2670 = vpack.c.b16 %v2442, %v2438
    %v2671 = vpack.c.b16 %v2443, %v2439
    %v2672 = vpack.c.b16 %v2448, %v2444
    %v2673 = vpack.c.b16 %v2449, %v2445
    %v2674 = vpack.c.b16 %v2450, %v2446
    %v2675 = vpack.c.b16 %v2451, %v2447
    %v2676 = vpack.c.b16 %v2456, %v2452
    %v2677 = vpack.c.b16 %v2457, %v2453
    %v2678 = vpack.c.b16 %v2458, %v2454
    %v2679 = vpack.c.b16 %v2459, %v2455
    %v2680 = vpack.c.b16 %v2464, %v2460
    %v2681 = vpack.c.b16 %v2465, %v2461
    %v2682 = vpack.c.b16 %v2466, %v2462
    %v2683 = vpack.c.b16 %v2467, %v2463
    %v2684 = vpack.c.b16 %v2472, %v2468
    %v2685 = vpack.c.b16 %v2473, %v2469
    %v2686 = vpack.c.b16 %v2474, %v2470
    %v2687 = vpack.c.b16 %v2475, %v2471
    %v2688 = vpack.c.b16 %v2480, %v2476
    %v2689 = vpack.c.b16 %v2481, %v2477
    %v2690 = vpack.c.b16 %v2482, %v2478
    %v2691 = vpack.c.b16 %v2483, %v2479
    %v2692 = vpack.c.b16 %v2488, %v2484
    %v2693 = vpack.c.b16 %v2489, %v2485
    %v2694 = vpack.c.b16 %v2490, %v2486
    %v2695 = vpack.c.b16 %v2491, %v2487
    %v2696 = vpack.c.b16 %v2496, %v2492
    %v2697 = vpack.c.b16 %v2497, %v2493
    %v2698 = vpack.c.b16 %v2498, %v2494
    %v2699 = vpack.c.b16 %v2499, %v2495
    %v2700 = vpack.c.b16 %v2504, %v2500
    %v2701 = vpack.c.b16 %v2505, %v2501
    %v2702 = vpack.c.b16 %v2506, %v2502
    %v2703 = vpack.c.b16 %v2507, %v2503
    %v2704 = vpack.c.b16 %v2512, %v2508
    %v2705 = vpack.c.b16 %v2513, %v2509
    %v2706 = vpack.c.b16 %v2514, %v2510
    %v2707 = vpack.c.b16 %v2515, %v2511
    %v2708 = vpack.c.b16 %v2520, %v2516
    %v2709 = vpack.c.b16 %v2521, %v2517
    %v2710 = vpack.c.b16 %v2522, %v2518
    %v2711 = vpack.c.b16 %v2523, %v2519
    %v2712 = vpack.c.b16 %v2528, %v2524
    %v2713 = vpack.c.b16 %v2529, %v2525
    %v2714 = vpack.c.b16 %v2530, %v2526
    %v2715 = vpack.c.b16 %v2531, %v2527
    %v2716 = vpack.c.b16 %v2536, %v2532
    %v2717 = vpack.c.b16 %v2537, %v2533
    %v2718 = vpack.c.b16 %v2538, %v2534
    %v2719 = vpack.c.b16 %v2539, %v2535
    %v2720 = vpack.c.b16 %v2544, %v2540
    %v2721 = vpack.c.b16 %v2545, %v2541
    %v2722 = vpack.c.b16 %v2546, %v2542
    %v2723 = vpack.c.b16 %v2547, %v2543
    %v2724 = vpack.c.b16 %v2552, %v2548
    %v2725 = vpack.c.b16 %v2553, %v2549
    %v2726 = vpack.c.b16 %v2554, %v2550
    %v2727 = vpack.c.b16 %v2555, %v2551
    %v2728 = vpack.c.b16 %v2560, %v2556
    %v2729 = vpack.c.b16 %v2561, %v2557
    %v2730 = vpack.c.b16 %v2562, %v2558
    %v2731 = vpack.c.b16 %v2563, %v2559
    %v2732 = vpack.c.b16 %v2568, %v2564
    %v2733 = vpack.c.b16 %v2569, %v2565
    %v2734 = vpack.c.b16 %v2570, %v2566
    %v2735 = vpack.c.b16 %v2571, %v2567
    %v2736 = vpack.c.b16 %v2576, %v2572
    %v2737 = vpack.c.b16 %v2577, %v2573
    %v2738 = vpack.c.b16 %v2578, %v2574
    %v2739 = vpack.c.b16 %v2579, %v2575
    %v2740 = vpack.c.b16 %v2584, %v2580
    %v2741 = vpack.c.b16 %v2585, %v2581
    %v2742 = vpack.c.b16 %v2586, %v2582
    %v2743 = vpack.c.b16 %v2587, %v2583
    %v2744 = vpack.c.b16 %v2592, %v2588
    %v2745 = vpack.c.b16 %v2593, %v2589
    %v2746 = vpack.c.b16 %v2594, %v2590
    %v2747 = vpack.c.b16 %v2595, %v2591
    %v2748 = vpack.c.b16 %v2600, %v2596
    %v2749 = vpack.c.b16 %v2601, %v2597
    %v2750 = vpack.c.b16 %v2602, %v2598
    %v2751 = vpack.c.b16 %v2603, %v2599
    %v2752 = vpack.c.b16 %v2608, %v2604
    %v2753 = vpack.c.b16 %v2609, %v2605
    %v2754 = vpack.c.b16 %v2610, %v2606
    %v2755 = vpack.c.b16 %v2611, %v2607
    %v2756 = vpack.c.b16 %v2616, %v2612
    %v2757 = vpack.c.b16 %v2617, %v2613
    %v2758 = vpack.c.b16 %v2618, %v2614
    %v2759 = vpack.c.b16 %v2619, %v2615
    %v2760 = vpack.c.b16 %v2624, %v2620
    %v2761 = vpack.c.b16 %v2625, %v2621
    %v2762 = vpack.c.b16 %v2626, %v2622
    %v2763 = vpack.c.b16 %v2627, %v2623
    %v2764 = vpack.c.b16 %v2632, %v2628
    %v2765 = vpack.c.b16 %v2633, %v2629
    %v2766 = vpack.c.b16 %v2634, %v2630
    %v2767 = vpack.c.b16 %v2635, %v2631
    %v2768 = vpack.c.b16 %v2640, %v2636
    %v2769 = vpack.c.b16 %v2641, %v2637
    %v2770 = vpack.c.b16 %v2642, %v2638
    %v2771 = vpack.c.b16 %v2643, %v2639
    %2900 = vmatpush.bf16.msra.mxu0 %v2672
    %2901 = vmatpush.bf16.msra.mxu0 %v2668
    %2902 = vmatpush.bf16.msra.mxu0 %v2664
    %2903 = vmatpush.bf16.msra.mxu0 %v2660
    %2904 = vmatpush.bf16.msra.mxu0 %v2656
    %2905 = vmatpush.bf16.msra.mxu0 %v2652
    %2906 = vmatpush.bf16.msra.mxu0 %v2648
    %2907 = vmatpush.bf16.msra.mxu0 %v2644
    %2908 = vmatmul.bf16.gmra.mxu0 %v2119
    %v2909 = vpop.f32.mrf.mxu0
    %v2910 = vadd.f32 %v2252, %v2909
    %v2911 = vpop.f32.mrf.mxu0
    %v2912 = vadd.f32 %v2252, %v2911
    %2913 = vdwg.mxu0
    %2914 = vmatpush.bf16.msra.mxu0 %v2704
    %2915 = vmatpush.bf16.msra.mxu0 %v2700
    %2916 = vmatpush.bf16.msra.mxu0 %v2696
    %2917 = vmatpush.bf16.msra.mxu0 %v2692
    %2918 = vmatpush.bf16.msra.mxu0 %v2688
    %2919 = vmatpush.bf16.msra.mxu0 %v2684
    %2920 = vmatpush.bf16.msra.mxu0 %v2680
    %2921 = vmatpush.bf16.msra.mxu0 %v2676
    %2922 = vmatmul.bf16.gmra.mxu0 %v2120
    %v2923 = vpop.f32.mrf.mxu0
    %v2924 = vadd.f32 %v2910, %v2923
    %v2925 = vpop.f32.mrf.mxu0
    %v2926 = vadd.f32 %v2912, %v2925
    %2927 = vdwg.mxu0
    %2928 = vmatpush.bf16.msra.mxu0 %v2736
    %2929 = vmatpush.bf16.msra.mxu0 %v2732
    %2930 = vmatpush.bf16.msra.mxu0 %v2728
    %2931 = vmatpush.bf16.msra.mxu0 %v2724
    %2932 = vmatpush.bf16.msra.mxu0 %v2720
    %2933 = vmatpush.bf16.msra.mxu0 %v2716
    %2934 = vmatpush.bf16.msra.mxu0 %v2712
    %2935 = vmatpush.bf16.msra.mxu0 %v2708
    %2936 = vmatmul.bf16.gmra.mxu0 %v2121
    %v2937 = vpop.f32.mrf.mxu0
    %v2938 = vadd.f32 %v2924, %v2937
    %v2939 = vpop.f32.mrf.mxu0
    %v2940 = vadd.f32 %v2926, %v2939
    %2941 = vdwg.mxu0
    %2942 = vmatpush.bf16.msra.mxu0 %v2768
    %2943 = vmatpush.bf16.msra.mxu0 %v2764
    %2944 = vmatpush.bf16.msra.mxu0 %v2760
    %2945 = vmatpush.bf16.msra.mxu0 %v2756
    %2946 = vmatpush.bf16.msra.mxu0 %v2752
    %2947 = vmatpush.bf16.msra.mxu0 %v2748
    %2948 = vmatpush.bf16.msra.mxu0 %v2744
    %2949 = vmatpush.bf16.msra.mxu0 %v2740
    %2950 = vmatmul.bf16.gmra.mxu0 %v2122
    %v2951 = vpop.f32.mrf.mxu0
    %v2952 = vadd.f32 %v2938, %v2951
    %v2953 = vpop.f32.mrf.mxu0
    %v2954 = vadd.f32 %v2940, %v2953
    %2955 = vdwg.mxu0
    %2956 = vmatpush.bf16.msra.mxu0 %v2673
    %2957 = vmatpush.bf16.msra.mxu0 %v2669
    %2958 = vmatpush.bf16.msra.mxu0 %v2665
    %2959 = vmatpush.bf16.msra.mxu0 %v2661
    %2960 = vmatpush.bf16.msra.mxu0 %v2657
    %2961 = vmatpush.bf16.msra.mxu0 %v2653
    %2962 = vmatpush.bf16.msra.mxu0 %v2649
    %2963 = vmatpush.bf16.msra.mxu0 %v2645
    %2964 = vmatmul.bf16.gmra.mxu0 %v2119
    %v2965 = vpop.f32.mrf.mxu0
    %v2966 = vadd.f32 %v2253, %v2965
    %v2967 = vpop.f32.mrf.mxu0
    %v2968 = vadd.f32 %v2253, %v2967
    %2969 = vdwg.mxu0
    %2970 = vmatpush.bf16.msra.mxu0 %v2705
    %2971 = vmatpush.bf16.msra.mxu0 %v2701
    %2972 = vmatpush.bf16.msra.mxu0 %v2697
    %2973 = vmatpush.bf16.msra.mxu0 %v2693
    %2974 = vmatpush.bf16.msra.mxu0 %v2689
    %2975 = vmatpush.bf16.msra.mxu0 %v2685
    %2976 = vmatpush.bf16.msra.mxu0 %v2681
    %2977 = vmatpush.bf16.msra.mxu0 %v2677
    %2978 = vmatmul.bf16.gmra.mxu0 %v2120
    %v2979 = vpop.f32.mrf.mxu0
    %v2980 = vadd.f32 %v2966, %v2979
    %v2981 = vpop.f32.mrf.mxu0
    %v2982 = vadd.f32 %v2968, %v2981
    %2983 = vdwg.mxu0
    %2984 = vmatpush.bf16.msra.mxu0 %v2737
    %2985 = vmatpush.bf16.msra.mxu0 %v2733
    %2986 = vmatpush.bf16.msra.mxu0 %v2729
    %2987 = vmatpush.bf16.msra.mxu0 %v2725
    %2988 = vmatpush.bf16.msra.mxu0 %v2721
    %2989 = vmatpush.bf16.msra.mxu0 %v2717
    %2990 = vmatpush.bf16.msra.mxu0 %v2713
    %2991 = vmatpush.bf16.msra.mxu0 %v2709
    %2992 = vmatmul.bf16.gmra.mxu0 %v2121
    %v2993 = vpop.f32.mrf.mxu0
    %v2994 = vadd.f32 %v2980, %v2993
    %v2995 = vpop.f32.mrf.mxu0
    %v2996 = vadd.f32 %v2982, %v2995
    %2997 = vdwg.mxu0
    %2998 = vmatpush.bf16.msra.mxu0 %v2769
    %2999 = vmatpush.bf16.msra.mxu0 %v2765
    %3000 = vmatpush.bf16.msra.mxu0 %v2761
    %3001 = vmatpush.bf16.msra.mxu0 %v2757
    %3002 = vmatpush.bf16.msra.mxu0 %v2753
    %3003 = vmatpush.bf16.msra.mxu0 %v2749
    %3004 = vmatpush.bf16.msra.mxu0 %v2745
    %3005 = vmatpush.bf16.msra.mxu0 %v2741
    %3006 = vmatmul.bf16.gmra.mxu0 %v2122
    %v3007 = vpop.f32.mrf.mxu0
    %v3008 = vadd.f32 %v2994, %v3007
    %v3009 = vpop.f32.mrf.mxu0
    %v3010 = vadd.f32 %v2996, %v3009
    %3011 = vdwg.mxu0
    %3012 = vmatpush.bf16.msra.mxu0 %v2674
    %3013 = vmatpush.bf16.msra.mxu0 %v2670
    %3014 = vmatpush.bf16.msra.mxu0 %v2666
    %3015 = vmatpush.bf16.msra.mxu0 %v2662
    %3016 = vmatpush.bf16.msra.mxu0 %v2658
    %3017 = vmatpush.bf16.msra.mxu0 %v2654
    %3018 = vmatpush.bf16.msra.mxu0 %v2650
    %3019 = vmatpush.bf16.msra.mxu0 %v2646
    %3020 = vmatmul.bf16.gmra.mxu0 %v2119
    %v3021 = vpop.f32.mrf.mxu0
    %v3022 = vadd.f32 %v2254, %v3021
    %v3023 = vpop.f32.mrf.mxu0
    %v3024 = vadd.f32 %v2254, %v3023
    %3025 = vdwg.mxu0
    %3026 = vmatpush.bf16.msra.mxu0 %v2706
    %3027 = vmatpush.bf16.msra.mxu0 %v2702
    %3028 = vmatpush.bf16.msra.mxu0 %v2698
    %3029 = vmatpush.bf16.msra.mxu0 %v2694
    %3030 = vmatpush.bf16.msra.mxu0 %v2690
    %3031 = vmatpush.bf16.msra.mxu0 %v2686
    %3032 = vmatpush.bf16.msra.mxu0 %v2682
    %3033 = vmatpush.bf16.msra.mxu0 %v2678
    %3034 = vmatmul.bf16.gmra.mxu0 %v2120
    %v3035 = vpop.f32.mrf.mxu0
    %v3036 = vadd.f32 %v3022, %v3035
    %v3037 = vpop.f32.mrf.mxu0
    %v3038 = vadd.f32 %v3024, %v3037
    %3039 = vdwg.mxu0
    %3040 = vmatpush.bf16.msra.mxu0 %v2738
    %3041 = vmatpush.bf16.msra.mxu0 %v2734
    %3042 = vmatpush.bf16.msra.mxu0 %v2730
    %3043 = vmatpush.bf16.msra.mxu0 %v2726
    %3044 = vmatpush.bf16.msra.mxu0 %v2722
    %3045 = vmatpush.bf16.msra.mxu0 %v2718
    %3046 = vmatpush.bf16.msra.mxu0 %v2714
    %3047 = vmatpush.bf16.msra.mxu0 %v2710
    %3048 = vmatmul.bf16.gmra.mxu0 %v2121
    %v3049 = vpop.f32.mrf.mxu0
    %v3050 = vadd.f32 %v3036, %v3049
    %v3051 = vpop.f32.mrf.mxu0
    %v3052 = vadd.f32 %v3038, %v3051
    %3053 = vdwg.mxu0
    %3054 = vmatpush.bf16.msra.mxu0 %v2770
    %3055 = vmatpush.bf16.msra.mxu0 %v2766
    %3056 = vmatpush.bf16.msra.mxu0 %v2762
    %3057 = vmatpush.bf16.msra.mxu0 %v2758
    %3058 = vmatpush.bf16.msra.mxu0 %v2754
    %3059 = vmatpush.bf16.msra.mxu0 %v2750
    %3060 = vmatpush.bf16.msra.mxu0 %v2746
    %3061 = vmatpush.bf16.msra.mxu0 %v2742
    %3062 = vmatmul.bf16.gmra.mxu0 %v2122
    %v3063 = vpop.f32.mrf.mxu0
    %v3064 = vadd.f32 %v3050, %v3063
    %v3065 = vpop.f32.mrf.mxu0
    %v3066 = vadd.f32 %v3052, %v3065
    %3067 = vdwg.mxu0
    %3068 = vmatpush.bf16.msra.mxu0 %v2675
    %3069 = vmatpush.bf16.msra.mxu0 %v2671
    %3070 = vmatpush.bf16.msra.mxu0 %v2667
    %3071 = vmatpush.bf16.msra.mxu0 %v2663
    %3072 = vmatpush.bf16.msra.mxu0 %v2659
    %3073 = vmatpush.bf16.msra.mxu0 %v2655
    %3074 = vmatpush.bf16.msra.mxu0 %v2651
    %3075 = vmatpush.bf16.msra.mxu0 %v2647
    %3076 = vmatmul.bf16.gmra.mxu0 %v2119
    %v3077 = vpop.f32.mrf.mxu0
    %v3078 = vadd.f32 %v2255, %v3077
    %v3079 = vpop.f32.mrf.mxu0
    %v3080 = vadd.f32 %v2255, %v3079
    %3081 = vdwg.mxu0
    %3082 = vmatpush.bf16.msra.mxu0 %v2707
    %3083 = vmatpush.bf16.msra.mxu0 %v2703
    %3084 = vmatpush.bf16.msra.mxu0 %v2699
    %3085 = vmatpush.bf16.msra.mxu0 %v2695
    %3086 = vmatpush.bf16.msra.mxu0 %v2691
    %3087 = vmatpush.bf16.msra.mxu0 %v2687
    %3088 = vmatpush.bf16.msra.mxu0 %v2683
    %3089 = vmatpush.bf16.msra.mxu0 %v2679
    %3090 = vmatmul.bf16.gmra.mxu0 %v2120
    %v3091 = vpop.f32.mrf.mxu0
    %v3092 = vadd.f32 %v3078, %v3091
    %v3093 = vpop.f32.mrf.mxu0
    %v3094 = vadd.f32 %v3080, %v3093
    %3095 = vdwg.mxu0
    %3096 = vmatpush.bf16.msra.mxu0 %v2739
    %3097 = vmatpush.bf16.msra.mxu0 %v2735
    %3098 = vmatpush.bf16.msra.mxu0 %v2731
    %3099 = vmatpush.bf16.msra.mxu0 %v2727
    %3100 = vmatpush.bf16.msra.mxu0 %v2723
    %3101 = vmatpush.bf16.msra.mxu0 %v2719
    %3102 = vmatpush.bf16.msra.mxu0 %v2715
    %3103 = vmatpush.bf16.msra.mxu0 %v2711
    %3104 = vmatmul.bf16.gmra.mxu0 %v2121
    %v3105 = vpop.f32.mrf.mxu0
    %v3106 = vadd.f32 %v3092, %v3105
    %v3107 = vpop.f32.mrf.mxu0
    %v3108 = vadd.f32 %v3094, %v3107
    %3109 = vdwg.mxu0
    %3110 = vmatpush.bf16.msra.mxu0 %v2771
    %3111 = vmatpush.bf16.msra.mxu0 %v2767
    %3112 = vmatpush.bf16.msra.mxu0 %v2763
    %3113 = vmatpush.bf16.msra.mxu0 %v2759
    %3114 = vmatpush.bf16.msra.mxu0 %v2755
    %3115 = vmatpush.bf16.msra.mxu0 %v2751
    %3116 = vmatpush.bf16.msra.mxu0 %v2747
    %3117 = vmatpush.bf16.msra.mxu0 %v2743
    %3118 = vmatmul.bf16.gmra.mxu0 %v2122
    %v3119 = vpop.f32.mrf.mxu0
    %v3120 = vadd.f32 %v3106, %v3119
    %v3121 = vpop.f32.mrf.mxu0
    %v3122 = vadd.f32 %v3108, %v3121
    %3123 = vdwg.mxu0
    %vm3124 = vcmp.gt.f32.partialorder %v2952, 0.0
    %vm3125 = vcmp.gt.f32.partialorder %v3008, 0.0
    %vm3126 = vcmp.gt.f32.partialorder %v3064, 0.0
    %vm3127 = vcmp.gt.f32.partialorder %v3120, 0.0
    %vm3128 = vcmp.gt.f32.partialorder %v2954, 0.0
    %vm3129 = vcmp.gt.f32.partialorder %v3010, 0.0
    %vm3130 = vcmp.gt.f32.partialorder %v3066, 0.0
    %vm3131 = vcmp.gt.f32.partialorder %v3122, 0.0
    %v3132 = vmul.f32 %v2952, 0.01
    %v3133 = vmul.f32 %v3008, 0.01
    %v3134 = vmul.f32 %v3064, 0.01
    %v3135 = vmul.f32 %v3120, 0.01
    %v3136 = vmul.f32 %v2954, 0.01
    %v3137 = vmul.f32 %v3010, 0.01
    %v3138 = vmul.f32 %v3066, 0.01
    %v3139 = vmul.f32 %v3122, 0.01
    %v3140 = vsel %vm3124, %v2952, %v3132
    %v3141 = vsel %vm3125, %v3008, %v3133
    %v3142 = vsel %vm3126, %v3064, %v3134
    %v3143 = vsel %vm3127, %v3120, %v3135
    %v3144 = vsel %vm3128, %v2954, %v3136
    %v3145 = vsel %vm3129, %v3010, %v3137
    %v3146 = vsel %vm3130, %v3066, %v3138
    %v3147 = vsel %vm3131, %v3122, %v3139
    %v3148 = vpack.c.bf16 %v3144, %v3140
    %v3149 = vpack.c.bf16 %v3145, %v3141
    %v3150 = vpack.c.bf16 %v3146, %v3142
    %v3151 = vpack.c.bf16 %v3147, %v3143
    %v3152 = vld [vmem:[#allocation14] sm:$0xf]
    %v3153 = vld [vmem:[#allocation14 + $0x4] sm:$0xf]
    %v3154 = vld [vmem:[#allocation14 + $0x8] sm:$0xf]
    %v3155 = vld [vmem:[#allocation14 + $0xc] sm:$0xf]
    %v3156 = vld [vmem:[#allocation14 + $0x10] sm:$0xf]
    %v3157 = vld [vmem:[#allocation14 + $0x14] sm:$0xf]
    %v3158 = vld [vmem:[#allocation14 + $0x18] sm:$0xf]
    %v3159 = vld [vmem:[#allocation14 + $0x1c] sm:$0xf]
    %v3160 = vld [vmem:[#allocation14 + $0x20] sm:$0xf]
    %v3161 = vld [vmem:[#allocation14 + $0x24] sm:$0xf]
    %v3162 = vld [vmem:[#allocation14 + $0x28] sm:$0xf]
    %v3163 = vld [vmem:[#allocation14 + $0x2c] sm:$0xf]
    %v3164 = vld [vmem:[#allocation14 + $0x30] sm:$0xf]
    %v3165 = vld [vmem:[#allocation14 + $0x34] sm:$0xf]
    %v3166 = vld [vmem:[#allocation14 + $0x38] sm:$0xf]
    %v3167 = vld [vmem:[#allocation14 + $0x3c] sm:$0xf]
    %v3168 = vld [vmem:[#allocation14 + $0x40] sm:$0xf]
    %v3169 = vld [vmem:[#allocation14 + $0x44] sm:$0xf]
    %v3170 = vld [vmem:[#allocation14 + $0x48] sm:$0xf]
    %v3171 = vld [vmem:[#allocation14 + $0x4c] sm:$0xf]
    %v3172 = vld [vmem:[#allocation14 + $0x50] sm:$0xf]
    %v3173 = vld [vmem:[#allocation14 + $0x54] sm:$0xf]
    %v3174 = vld [vmem:[#allocation14 + $0x58] sm:$0xf]
    %v3175 = vld [vmem:[#allocation14 + $0x5c] sm:$0xf]
    %v3176 = vld [vmem:[#allocation14 + $0x60] sm:$0xf]
    %v3177 = vld [vmem:[#allocation14 + $0x64] sm:$0xf]
    %v3178 = vld [vmem:[#allocation14 + $0x68] sm:$0xf]
    %v3179 = vld [vmem:[#allocation14 + $0x6c] sm:$0xf]
    %v3180 = vld [vmem:[#allocation14 + $0x70] sm:$0xf]
    %v3181 = vld [vmem:[#allocation14 + $0x74] sm:$0xf]
    %v3182 = vld [vmem:[#allocation14 + $0x78] sm:$0xf]
    %v3183 = vld [vmem:[#allocation14 + $0x7c] sm:$0xf]
    %v3184 = vld [vmem:[#allocation14 + $0x80] sm:$0xf]
    %v3185 = vld [vmem:[#allocation14 + $0x84] sm:$0xf]
    %v3186 = vld [vmem:[#allocation14 + $0x88] sm:$0xf]
    %v3187 = vld [vmem:[#allocation14 + $0x8c] sm:$0xf]
    %v3188 = vld [vmem:[#allocation14 + $0x90] sm:$0xf]
    %v3189 = vld [vmem:[#allocation14 + $0x94] sm:$0xf]
    %v3190 = vld [vmem:[#allocation14 + $0x98] sm:$0xf]
    %v3191 = vld [vmem:[#allocation14 + $0x9c] sm:$0xf]
    %v3192 = vld [vmem:[#allocation14 + $0xa0] sm:$0xf]
    %v3193 = vld [vmem:[#allocation14 + $0xa4] sm:$0xf]
    %v3194 = vld [vmem:[#allocation14 + $0xa8] sm:$0xf]
    %v3195 = vld [vmem:[#allocation14 + $0xac] sm:$0xf]
    %v3196 = vld [vmem:[#allocation14 + $0xb0] sm:$0xf]
    %v3197 = vld [vmem:[#allocation14 + $0xb4] sm:$0xf]
    %v3198 = vld [vmem:[#allocation14 + $0xb8] sm:$0xf]
    %v3199 = vld [vmem:[#allocation14 + $0xbc] sm:$0xf]
    %v3200 = vld [vmem:[#allocation14 + $0xc0] sm:$0xf]
    %v3201 = vld [vmem:[#allocation14 + $0xc4] sm:$0xf]
    %v3202 = vld [vmem:[#allocation14 + $0xc8] sm:$0xf]
    %v3203 = vld [vmem:[#allocation14 + $0xcc] sm:$0xf]
    %v3204 = vld [vmem:[#allocation14 + $0xd0] sm:$0xf]
    %v3205 = vld [vmem:[#allocation14 + $0xd4] sm:$0xf]
    %v3206 = vld [vmem:[#allocation14 + $0xd8] sm:$0xf]
    %v3207 = vld [vmem:[#allocation14 + $0xdc] sm:$0xf]
    %v3208 = vld [vmem:[#allocation14 + $0xe0] sm:$0xf]
    %v3209 = vld [vmem:[#allocation14 + $0xe4] sm:$0xf]
    %v3210 = vld [vmem:[#allocation14 + $0xe8] sm:$0xf]
    %v3211 = vld [vmem:[#allocation14 + $0xec] sm:$0xf]
    %v3212 = vld [vmem:[#allocation14 + $0xf0] sm:$0xf]
    %v3213 = vld [vmem:[#allocation14 + $0xf4] sm:$0xf]
    %v3214 = vld [vmem:[#allocation14 + $0xf8] sm:$0xf]
    %v3215 = vld [vmem:[#allocation14 + $0xfc] sm:$0xf]
    %v3216 = vld [vmem:[%s8] sm:$0x1]
    %v3218 = vperm.slane %v3216, 0
    %v3284 = vunpack.c.l.b16 %v3152
    %v3285 = vunpack.c.l.b16 %v3153
    %v3286 = vunpack.c.l.b16 %v3154
    %v3287 = vunpack.c.l.b16 %v3155
    %v3288 = vunpack.c.l.b16 %v3156
    %v3289 = vunpack.c.l.b16 %v3157
    %v3290 = vunpack.c.l.b16 %v3158
    %v3291 = vunpack.c.l.b16 %v3159
    %v3292 = vunpack.c.l.b16 %v3160
    %v3293 = vunpack.c.l.b16 %v3161
    %v3294 = vunpack.c.l.b16 %v3162
    %v3295 = vunpack.c.l.b16 %v3163
    %v3296 = vunpack.c.l.b16 %v3164
    %v3297 = vunpack.c.l.b16 %v3165
    %v3298 = vunpack.c.l.b16 %v3166
    %v3299 = vunpack.c.l.b16 %v3167
    %v3300 = vunpack.c.l.b16 %v3168
    %v3301 = vunpack.c.l.b16 %v3169
    %v3302 = vunpack.c.l.b16 %v3170
    %v3303 = vunpack.c.l.b16 %v3171
    %v3304 = vunpack.c.l.b16 %v3172
    %v3305 = vunpack.c.l.b16 %v3173
    %v3306 = vunpack.c.l.b16 %v3174
    %v3307 = vunpack.c.l.b16 %v3175
    %v3308 = vunpack.c.l.b16 %v3176
    %v3309 = vunpack.c.l.b16 %v3177
    %v3310 = vunpack.c.l.b16 %v3178
    %v3311 = vunpack.c.l.b16 %v3179
    %v3312 = vunpack.c.l.b16 %v3180
    %v3313 = vunpack.c.l.b16 %v3181
    %v3314 = vunpack.c.l.b16 %v3182
    %v3315 = vunpack.c.l.b16 %v3183
    %v3316 = vunpack.c.l.b16 %v3184
    %v3317 = vunpack.c.l.b16 %v3185
    %v3318 = vunpack.c.l.b16 %v3186
    %v3319 = vunpack.c.l.b16 %v3187
    %v3320 = vunpack.c.l.b16 %v3188
    %v3321 = vunpack.c.l.b16 %v3189
    %v3322 = vunpack.c.l.b16 %v3190
    %v3323 = vunpack.c.l.b16 %v3191
    %v3324 = vunpack.c.l.b16 %v3192
    %v3325 = vunpack.c.l.b16 %v3193
    %v3326 = vunpack.c.l.b16 %v3194
    %v3327 = vunpack.c.l.b16 %v3195
    %v3328 = vunpack.c.l.b16 %v3196
    %v3329 = vunpack.c.l.b16 %v3197
    %v3330 = vunpack.c.l.b16 %v3198
    %v3331 = vunpack.c.l.b16 %v3199
    %v3332 = vunpack.c.l.b16 %v3200
    %v3333 = vunpack.c.l.b16 %v3201
    %v3334 = vunpack.c.l.b16 %v3202
    %v3335 = vunpack.c.l.b16 %v3203
    %v3336 = vunpack.c.l.b16 %v3204
    %v3337 = vunpack.c.l.b16 %v3205
    %v3338 = vunpack.c.l.b16 %v3206
    %v3339 = vunpack.c.l.b16 %v3207
    %v3340 = vunpack.c.l.b16 %v3208
    %v3341 = vunpack.c.l.b16 %v3209
    %v3342 = vunpack.c.l.b16 %v3210
    %v3343 = vunpack.c.l.b16 %v3211
    %v3344 = vunpack.c.l.b16 %v3212
    %v3345 = vunpack.c.l.b16 %v3213
    %v3346 = vunpack.c.l.b16 %v3214
    %v3347 = vunpack.c.l.b16 %v3215
    %v3348 = vpack.c.b16 %v3285, %v3284
    %v3349 = vpack.c.b16 %v3287, %v3286
    %v3350 = vpack.c.b16 %v3289, %v3288
    %v3351 = vpack.c.b16 %v3291, %v3290
    %v3352 = vpack.c.b16 %v3293, %v3292
    %v3353 = vpack.c.b16 %v3295, %v3294
    %v3354 = vpack.c.b16 %v3297, %v3296
    %v3355 = vpack.c.b16 %v3299, %v3298
    %v3356 = vpack.c.b16 %v3301, %v3300
    %v3357 = vpack.c.b16 %v3303, %v3302
    %v3358 = vpack.c.b16 %v3305, %v3304
    %v3359 = vpack.c.b16 %v3307, %v3306
    %v3360 = vpack.c.b16 %v3309, %v3308
    %v3361 = vpack.c.b16 %v3311, %v3310
    %v3362 = vpack.c.b16 %v3313, %v3312
    %v3363 = vpack.c.b16 %v3315, %v3314
    %v3364 = vpack.c.b16 %v3317, %v3316
    %v3365 = vpack.c.b16 %v3319, %v3318
    %v3366 = vpack.c.b16 %v3321, %v3320
    %v3367 = vpack.c.b16 %v3323, %v3322
    %v3368 = vpack.c.b16 %v3325, %v3324
    %v3369 = vpack.c.b16 %v3327, %v3326
    %v3370 = vpack.c.b16 %v3329, %v3328
    %v3371 = vpack.c.b16 %v3331, %v3330
    %v3372 = vpack.c.b16 %v3333, %v3332
    %v3373 = vpack.c.b16 %v3335, %v3334
    %v3374 = vpack.c.b16 %v3337, %v3336
    %v3375 = vpack.c.b16 %v3339, %v3338
    %v3376 = vpack.c.b16 %v3341, %v3340
    %v3377 = vpack.c.b16 %v3343, %v3342
    %v3378 = vpack.c.b16 %v3345, %v3344
    %v3379 = vpack.c.b16 %v3347, %v3346
    %3412 = vmatpush.bf16.msra.mxu0 %v3355
    %3413 = vmatpush.bf16.msra.mxu0 %v3354
    %3414 = vmatpush.bf16.msra.mxu0 %v3353
    %3415 = vmatpush.bf16.msra.mxu0 %v3352
    %3416 = vmatpush.bf16.msra.mxu0 %v3351
    %3417 = vmatpush.bf16.msra.mxu0 %v3350
    %3418 = vmatpush.bf16.msra.mxu0 %v3349
    %3419 = vmatpush.bf16.msra.mxu0 %v3348
    %3420 = vmatmul.bf16.gmra.mxu0 %v3148
    %v3421 = vpop.f32.mrf.mxu0
    %v3422 = vadd.f32 %v3218, %v3421
    %v3423 = vpop.f32.mrf.mxu0
    %v3424 = vadd.f32 %v3218, %v3423
    %3425 = vdwg.mxu0
    %3426 = vmatpush.bf16.msra.mxu0 %v3363
    %3427 = vmatpush.bf16.msra.mxu0 %v3362
    %3428 = vmatpush.bf16.msra.mxu0 %v3361
    %3429 = vmatpush.bf16.msra.mxu0 %v3360
    %3430 = vmatpush.bf16.msra.mxu0 %v3359
    %3431 = vmatpush.bf16.msra.mxu0 %v3358
    %3432 = vmatpush.bf16.msra.mxu0 %v3357
    %3433 = vmatpush.bf16.msra.mxu0 %v3356
    %3434 = vmatmul.bf16.gmra.mxu0 %v3149
    %v3435 = vpop.f32.mrf.mxu0
    %v3436 = vadd.f32 %v3422, %v3435
    %v3437 = vpop.f32.mrf.mxu0
    %v3438 = vadd.f32 %v3424, %v3437
    %3439 = vdwg.mxu0
    %3440 = vmatpush.bf16.msra.mxu0 %v3371
    %3441 = vmatpush.bf16.msra.mxu0 %v3370
    %3442 = vmatpush.bf16.msra.mxu0 %v3369
    %3443 = vmatpush.bf16.msra.mxu0 %v3368
    %3444 = vmatpush.bf16.msra.mxu0 %v3367
    %3445 = vmatpush.bf16.msra.mxu0 %v3366
    %3446 = vmatpush.bf16.msra.mxu0 %v3365
    %3447 = vmatpush.bf16.msra.mxu0 %v3364
    %3448 = vmatmul.bf16.gmra.mxu0 %v3150
    %v3449 = vpop.f32.mrf.mxu0
    %v3450 = vadd.f32 %v3436, %v3449
    %v3451 = vpop.f32.mrf.mxu0
    %v3452 = vadd.f32 %v3438, %v3451
    %3453 = vdwg.mxu0
    %3454 = vmatpush.bf16.msra.mxu0 %v3379
    %3455 = vmatpush.bf16.msra.mxu0 %v3378
    %3456 = vmatpush.bf16.msra.mxu0 %v3377
    %3457 = vmatpush.bf16.msra.mxu0 %v3376
    %3458 = vmatpush.bf16.msra.mxu0 %v3375
    %3459 = vmatpush.bf16.msra.mxu0 %v3374
    %3460 = vmatpush.bf16.msra.mxu0 %v3373
    %3461 = vmatpush.bf16.msra.mxu0 %v3372
    %3462 = vmatmul.bf16.gmra.mxu0 %v3151
    %v3463 = vpop.f32.mrf.mxu0
    %v3464 = vadd.f32 %v3450, %v3463
    %v3465 = vpop.f32.mrf.mxu0
    %v3466 = vadd.f32 %v3452, %v3465
    %3467 = vdwg.mxu0
    %3468 = vst [vmem:[#allocation16] sm:$0xff] %v3464
    %3469 = vst [vmem:[#allocation16 + $0x8] sm:$0xff] %v3466
    // Predicated region
    $region70: #{tpu_custom_call.1} parent=1 // pred_check
      _
    $region71: #{tpu_custom_call.1} parent=1 // pred_check_branch
      %3471 = sbr.rel (0) target = $region73
    $region72: #{tpu_custom_call.1} parent=1 // pred_region
      %3473 = vsyncadd [#allocation4], 0
      %s3474 = sshll.u32 [#allocation16], 4
      %s3475 = int_to_ptr.vmem [resolvable:$true] %s3474
      %s3476 = sshll.u32 %s9, 4
      %s3477 = int_to_ptr.hbm [resolvable:$true] %s3476
      %3482 = dma.vmem_to_hbm [thread:$0]  %s3475, 256, %s3477, [#allocation4], 128, 128, 8
    $region73: #{tpu_custom_call.1} parent=1 // pred_fallthru
      _
    // Predicated region
    $region74: #{tpu_custom_call.1} parent=1 // pred_check
      _
    $region75: #{tpu_custom_call.1} parent=1 // pred_check_branch
      %3484 = sbr.rel (0) target = $region77
    $region76: #{tpu_custom_call.1} parent=1 // pred_region
      %3486 = dma.done [#allocation4], 256
    $region77: #{tpu_custom_call.1} parent=1 // pred_fallthru
      _
    %3487 = vsyncpa [#allocation3], 1
    %3488 = vsyncpa [#allocation6], 1
    %3489 = vsyncpa [#allocation9], 1
    %3490 = vsyncpa [#allocation12], 1
    %3491 = vsyncpa [#allocation15], 1
    %3492 = vsyncpa [#allocation4], 1

// kernel: tpu_custom_call.1
$region0: #{tpu_custom_call.1}
  #allocation0 [shape = 'u32[]', space=smem, size = 0x4, offset = 0x4, fixed_abs, tag = 'smem constant byte address 0x4 - core index']
  #allocation1 [shape = 'u32[72,128]{1,0:T(1,128)}', space=vmem, size = 0x9000, scoped, tag = 'internal scratch']
  %s0 = inlined_call_operand.hbm [shape: bf16[16,32], index: 0, kind: input, shape index: {}]
  %s1 = inlined_call_operand.hbm [shape: f32[16,256], index: 1, kind: input, shape index: {}]
  %s2 = inlined_call_operand.hbm [shape: bf16[32,1024], index: 2, kind: input, shape index: {}]
  %s3 = inlined_call_operand.hbm [shape: f32[8,512], index: 3, kind: input, shape index: {}]
  %s4 = inlined_call_operand.hbm [shape: bf16[512,512], index: 4, kind: input, shape index: {}]
  %s5 = inlined_call_operand.hbm [shape: bf16[256,512], index: 5, kind: input, shape index: {}]
  %s6 = inlined_call_operand.hbm [shape: bf16[512,512], index: 6, kind: input, shape index: {}]
  %s7 = inlined_call_operand.hbm [shape: bf16[512,128], index: 7, kind: input, shape index: {}]
  %s8 = inlined_call_operand.vmem [shape: f32[1,128], index: 8, kind: input, shape index: {}]
  %s9 = inlined_call_operand.hbm [shape: f32[16,128], index: 9, kind: output, shape index: {}]
  %s10 = sld [smem:[#allocation0]]
  $region78: #{tpu_custom_call.1} parent=0
    _
  %s12 = ssub.s32 1, %s10
  %s13 = scalar_select 0, %s12, %s10
  $region1: #{tpu_custom_call.1} parent=0
    #allocation2 [shape = 'u8[4096]{0}', space=vmem, size = 0x1000, scoped, tag = 'input window, operand 0, single buffered']
    #allocation3 [shape = 's32[1]{0}', space=sflag, size = 0x4, scoped, tag = 'scoped memory for tpu_custom_call.1']
    #allocation4 [shape = 's32[1]{0}', space=sflag, size = 0x4, scoped, tag = 'scoped memory for tpu_custom_call.1']
    #allocation5 [shape = 'u8[16384]{0}', space=vmem, size = 0x4000, scoped, tag = 'input window, operand 1, single buffered']
    #allocation6 [shape = 's32[1]{0}', space=sflag, size = 0x4, scoped, tag = 'scoped memory for tpu_custom_call.1']
    #allocation7 [shape = 'u8[65536]{0}', space=vmem, size = 0x10000, scoped, tag = 'input window, operand 2, single buffered']
    #allocation8 [shape = 'u8[16384]{0}', space=vmem, size = 0x4000, scoped, tag = 'input window, operand 3, single buffered']
    #allocation9 [shape = 's32[1]{0}', space=sflag, size = 0x4, scoped, tag = 'scoped memory for tpu_custom_call.1']
    #allocation10 [shape = 'u8[524288]{0}', space=vmem, size = 0x80000, scoped, tag = 'input window, operand 4, single buffered']
    #allocation11 [shape = 'u8[262144]{0}', space=vmem, size = 0x40000, scoped, tag = 'input window, operand 5, single buffered']
    #allocation12 [shape = 's32[1]{0}', space=sflag, size = 0x4, scoped, tag = 'scoped memory for tpu_custom_call.1']
    #allocation13 [shape = 'u8[524288]{0}', space=vmem, size = 0x80000, scoped, tag = 'input window, operand 6, single buffered']
    #allocation14 [shape = 'u8[131072]{0}', space=vmem, size = 0x20000, scoped, tag = 'input window, operand 7, single buffered']
    #allocation15 [shape = 's32[1]{0}', space=sflag, size = 0x4, scoped, tag = 'scoped memory for tpu_custom_call.1']
    #allocation16 [shape = 'u8[8192]{0}', space=vmem, size = 0x2000, scoped, tag = 'output window, operand 0, single buffered']
    %14 = vsyncpa [#allocation3], 0
    %15 = vsyncpa [#allocation6], 0
    %16 = vsyncpa [#allocation9], 0
    %17 = vsyncpa [#allocation12], 0
    %18 = vsyncpa [#allocation15], 0
    %19 = vsyncpa [#allocation4], 0
    // Predicated region
    $region2: #{tpu_custom_call.1} parent=1 // pred_check
      _
    $region3: #{tpu_custom_call.1} parent=1 // pred_check_branch
      %21 = sbr.rel (0) target = $region5
    $region4: #{tpu_custom_call.1} parent=1 // pred_region
      %23 = vsyncadd [#allocation3], 0
      %s24 = sshll.u32 %s0, 4
      %s25 = int_to_ptr.hbm [resolvable:$true] %s24
      %s26 = sshll.u32 [#allocation2], 4
      %s27 = int_to_ptr.vmem [resolvable:$true] %s26
      %32 = dma.hbm_to_vmem [thread:$0]  %s25, 128, %s27, [#allocation3], 64, 64, 4
    $region5: #{tpu_custom_call.1} parent=1 // pred_fallthru
      _
    // Predicated region
    $region6: #{tpu_custom_call.1} parent=1 // pred_check
      _
    $region7: #{tpu_custom_call.1} parent=1 // pred_check_branch
      %34 = sbr.rel (0) target = $region9
    $region8: #{tpu_custom_call.1} parent=1 // pred_region
      %36 = vsyncadd [#allocation6], 0
      %s37 = sshll.u32 %s1, 4
      %s38 = int_to_ptr.hbm [resolvable:$true] %s37
      %s39 = sshll.u32 [#allocation5], 4
      %s40 = int_to_ptr.vmem [resolvable:$true] %s39
      %45 = dma.hbm_to_vmem [thread:$0]  %s38, 512, %s40, [#allocation6], 256, 256, 16
    $region9: #{tpu_custom_call.1} parent=1 // pred_fallthru
      _
    // Predicated region
    $region10: #{tpu_custom_call.1} parent=1 // pred_check
      _
    $region11: #{tpu_custom_call.1} parent=1 // pred_check_branch
      %47 = sbr.rel (0) target = $region13
    $region12: #{tpu_custom_call.1} parent=1 // pred_region
      %49 = vsyncadd [#allocation6], 0
      %s50 = sshll.u32 %s2, 4
      %s51 = int_to_ptr.hbm [resolvable:$true] %s50
      %s52 = sshll.u32 [#allocation7], 4
      %s53 = int_to_ptr.vmem [resolvable:$true] %s52
      %58 = dma.hbm_to_vmem [thread:$0]  %s51, 2048, %s53, [#allocation6], 512, 512, 32
    $region13: #{tpu_custom_call.1} parent=1 // pred_fallthru
      _
    // Predicated region
    $region14: #{tpu_custom_call.1} parent=1 // pred_check
      _
    $region15: #{tpu_custom_call.1} parent=1 // pred_check_branch
      %60 = sbr.rel (0) target = $region17
    $region16: #{tpu_custom_call.1} parent=1 // pred_region
      %62 = vsyncadd [#allocation9], 0
      %s64 = sshll.u32 %s3, 4
      %s65 = int_to_ptr.hbm [resolvable:$true] %s64
      %s66 = sshll.u32 [#allocation8], 4
      %s67 = int_to_ptr.vmem [resolvable:$true] %s66
      %69 = dma.hbm_to_vmem [thread:$0]  %s65, 512, %s67, [#allocation9]
    $region17: #{tpu_custom_call.1} parent=1 // pred_fallthru
      _
    // Predicated region
    $region18: #{tpu_custom_call.1} parent=1 // pred_check
      _
    $region19: #{tpu_custom_call.1} parent=1 // pred_check_branch
      %71 = sbr.rel (0) target = $region21
    $region20: #{tpu_custom_call.1} parent=1 // pred_region
      %73 = vsyncadd [#allocation9], 0
      %s74 = sshll.u32 %s4, 4
      %s75 = int_to_ptr.hbm [resolvable:$true] %s74
      %s76 = sshll.u32 [#allocation10], 4
      %s77 = int_to_ptr.vmem [resolvable:$true] %s76
      %82 = dma.hbm_to_vmem [thread:$0]  %s75, 16384, %s77, [#allocation9], 256, 256, 16
    $region21: #{tpu_custom_call.1} parent=1 // pred_fallthru
      _
    // Predicated region
    $region22: #{tpu_custom_call.1} parent=1 // pred_check
      _
    $region23: #{tpu_custom_call.1} parent=1 // pred_check_branch
      %84 = sbr.rel (0) target = $region25
    $region24: #{tpu_custom_call.1} parent=1 // pred_region
      %86 = vsyncadd [#allocation12], 0
      %s87 = sshll.u32 %s5, 4
      %s88 = int_to_ptr.hbm [resolvable:$true] %s87
      %s89 = sshll.u32 [#allocation11], 4
      %s90 = int_to_ptr.vmem [resolvable:$true] %s89
      %95 = dma.hbm_to_vmem [thread:$0]  %s88, 8192, %s90, [#allocation12], 256, 256, 16
    $region25: #{tpu_custom_call.1} parent=1 // pred_fallthru
      _
    // Predicated region
    $region26: #{tpu_custom_call.1} parent=1 // pred_check
      _
    $region27: #{tpu_custom_call.1} parent=1 // pred_check_branch
      %97 = sbr.rel (0) target = $region29
    $region28: #{tpu_custom_call.1} parent=1 // pred_region
      %99 = vsyncadd [#allocation12], 0
      %s100 = sshll.u32 %s6, 4
      %s101 = int_to_ptr.hbm [resolvable:$true] %s100
      %s102 = sshll.u32 [#allocation13], 4
      %s103 = int_to_ptr.vmem [resolvable:$true] %s102
      %108 = dma.hbm_to_vmem [thread:$0]  %s101, 16384, %s103, [#allocation12], 256, 256, 16
    $region29: #{tpu_custom_call.1} parent=1 // pred_fallthru
      _
    // Predicated region
    $region30: #{tpu_custom_call.1} parent=1 // pred_check
      _
    $region31: #{tpu_custom_call.1} parent=1 // pred_check_branch
      %110 = sbr.rel (0) target = $region33
    $region32: #{tpu_custom_call.1} parent=1 // pred_region
      %112 = vsyncadd [#allocation15], 0
      %s113 = sshll.u32 %s7, 4
      %s114 = int_to_ptr.hbm [resolvable:$true] %s113
      %s115 = sshll.u32 [#allocation14], 4
      %s116 = int_to_ptr.vmem [resolvable:$true] %s115
      %121 = dma.hbm_to_vmem [thread:$0]  %s114, 4096, %s116, [#allocation15], 64, 64, 4
    $region33: #{tpu_custom_call.1} parent=1 // pred_fallthru
      _
    // Predicated region
    $region34: #{tpu_custom_call.1} parent=1 // pred_check
      _
    $region35: #{tpu_custom_call.1} parent=1 // pred_check_branch
      %123 = sbr.rel (0) target = $region37
    $region36: #{tpu_custom_call.1} parent=1 // pred_region
      _
    $region37: #{tpu_custom_call.1} parent=1 // pred_fallthru
      _
    // Predicated region
    $region38: #{tpu_custom_call.1} parent=1 // pred_check
      _
    $region39: #{tpu_custom_call.1} parent=1 // pred_check_branch
      %125 = sbr.rel (0) target = $region41
    $region40: #{tpu_custom_call.1} parent=1 // pred_region
      %127 = dma.done [#allocation3], 128
    $region41: #{tpu_custom_call.1} parent=1 // pred_fallthru
      _
    // Predicated region
    $region42: #{tpu_custom_call.1} parent=1 // pred_check
      _
    $region43: #{tpu_custom_call.1} parent=1 // pred_check_branch
      %129 = sbr.rel (0) target = $region45
    $region44: #{tpu_custom_call.1} parent=1 // pred_region
      %131 = dma.done [#allocation6], 512
    $region45: #{tpu_custom_call.1} parent=1 // pred_fallthru
      _
    // Predicated region
    $region46: #{tpu_custom_call.1} parent=1 // pred_check
      _
    $region47: #{tpu_custom_call.1} parent=1 // pred_check_branch
      %133 = sbr.rel (0) target = $region49
    $region48: #{tpu_custom_call.1} parent=1 // pred_region
      %135 = dma.done [#allocation6], 2048
    $region49: #{tpu_custom_call.1} parent=1 // pred_fallthru
      _
    // Predicated region
    $region50: #{tpu_custom_call.1} parent=1 // pred_check
      _
    $region51: #{tpu_custom_call.1} parent=1 // pred_check_branch
      %137 = sbr.rel (0) target = $region53
    $region52: #{tpu_custom_call.1} parent=1 // pred_region
      %139 = dma.done [#allocation9], 512
    $region53: #{tpu_custom_call.1} parent=1 // pred_fallthru
      _
    // Predicated region
    $region54: #{tpu_custom_call.1} parent=1 // pred_check
      _
    $region55: #{tpu_custom_call.1} parent=1 // pred_check_branch
      %141 = sbr.rel (0) target = $region57
    $region56: #{tpu_custom_call.1} parent=1 // pred_region
      %143 = dma.done [#allocation9], 16384
    $region57: #{tpu_custom_call.1} parent=1 // pred_fallthru
      _
    // Predicated region
    $region58: #{tpu_custom_call.1} parent=1 // pred_check
      _
    $region59: #{tpu_custom_call.1} parent=1 // pred_check_branch
      %145 = sbr.rel (0) target = $region61
    $region60: #{tpu_custom_call.1} parent=1 // pred_region
      %147 = dma.done [#allocation12], 8192
    $region61: #{tpu_custom_call.1} parent=1 // pred_fallthru
      _
    // Predicated region
    $region62: #{tpu_custom_call.1} parent=1 // pred_check
      _
    $region63: #{tpu_custom_call.1} parent=1 // pred_check_branch
      %149 = sbr.rel (0) target = $region65
    $region64: #{tpu_custom_call.1} parent=1 // pred_region
      %151 = dma.done [#allocation12], 16384
    $region65: #{tpu_custom_call.1} parent=1 // pred_fallthru
      _
    // Predicated region
    $region66: #{tpu_custom_call.1} parent=1 // pred_check
      _
    $region67: #{tpu_custom_call.1} parent=1 // pred_check_branch
      %153 = sbr.rel (0) target = $region69
    $region68: #{tpu_custom_call.1} parent=1 // pred_region
      %155 = dma.done [#allocation15], 4096
    $region69: #{tpu_custom_call.1} parent=1 // pred_fallthru
      _
    %v157 = vld [vmem:[#allocation2] sm:$0xf]
    %v158 = vld [vmem:[#allocation2 + $0x4] sm:$0xf]
    %v159 = vld [vmem:[#allocation7] sm:$0xff]
    %v160 = vld [vmem:[#allocation7 + $0x8] sm:$0xff]
    %v161 = vld [vmem:[#allocation7 + $0x10] sm:$0xff]
    %v162 = vld [vmem:[#allocation7 + $0x18] sm:$0xff]
    %v163 = vld [vmem:[#allocation7 + $0x20] sm:$0xff]
    %v164 = vld [vmem:[#allocation7 + $0x28] sm:$0xff]
    %v165 = vld [vmem:[#allocation7 + $0x30] sm:$0xff]
    %v166 = vld [vmem:[#allocation7 + $0x38] sm:$0xff]
    %v167 = vld [vmem:[#allocation7 + $0x40] sm:$0xff]
    %v168 = vld [vmem:[#allocation7 + $0x48] sm:$0xff]
    %v169 = vld [vmem:[#allocation7 + $0x50] sm:$0xff]
    %v170 = vld [vmem:[#allocation7 + $0x58] sm:$0xff]
    %v171 = vld [vmem:[#allocation7 + $0x60] sm:$0xff]
    %v172 = vld [vmem:[#allocation7 + $0x68] sm:$0xff]
    %v173 = vld [vmem:[#allocation7 + $0x70] sm:$0xff]
    %v174 = vld [vmem:[#allocation7 + $0x78] sm:$0xff]
    %v177 = vunpack.c.l.b16 %v157
    %v178 = vunpack.c.l.b16 %v158
    %v179 = vpack.c.b16 %v178, %v177
    %v196 = vunpack.c.l.b16 %v159
    %v197 = vunpack.c.h.b16 %v159
    %v198 = vunpack.c.l.b16 %v160
    %v199 = vunpack.c.h.b16 %v160
    %v200 = vunpack.c.l.b16 %v161
    %v201 = vunpack.c.h.b16 %v161
    %v202 = vunpack.c.l.b16 %v162
    %v203 = vunpack.c.h.b16 %v162
    %v204 = vunpack.c.l.b16 %v163
    %v205 = vunpack.c.h.b16 %v163
    %v206 = vunpack.c.l.b16 %v164
    %v207 = vunpack.c.h.b16 %v164
    %v208 = vunpack.c.l.b16 %v165
    %v209 = vunpack.c.h.b16 %v165
    %v210 = vunpack.c.l.b16 %v166
    %v211 = vunpack.c.h.b16 %v166
    %v212 = vunpack.c.l.b16 %v167
    %v213 = vunpack.c.h.b16 %v167
    %v214 = vunpack.c.l.b16 %v168
    %v215 = vunpack.c.h.b16 %v168
    %v216 = vunpack.c.l.b16 %v169
    %v217 = vunpack.c.h.b16 %v169
    %v218 = vunpack.c.l.b16 %v170
    %v219 = vunpack.c.h.b16 %v170
    %v220 = vunpack.c.l.b16 %v171
    %v221 = vunpack.c.h.b16 %v171
    %v222 = vunpack.c.l.b16 %v172
    %v223 = vunpack.c.h.b16 %v172
    %v224 = vunpack.c.l.b16 %v173
    %v225 = vunpack.c.h.b16 %v173
    %v226 = vunpack.c.l.b16 %v174
    %v227 = vunpack.c.h.b16 %v174
    %v228 = vpack.c.b16 %v204, %v196
    %v229 = vpack.c.b16 %v205, %v197
    %v230 = vpack.c.b16 %v206, %v198
    %v231 = vpack.c.b16 %v207, %v199
    %v232 = vpack.c.b16 %v208, %v200
    %v233 = vpack.c.b16 %v209, %v201
    %v234 = vpack.c.b16 %v210, %v202
    %v235 = vpack.c.b16 %v211, %v203
    %v236 = vpack.c.b16 %v220, %v212
    %v237 = vpack.c.b16 %v221, %v213
    %v238 = vpack.c.b16 %v222, %v214
    %v239 = vpack.c.b16 %v223, %v215
    %v240 = vpack.c.b16 %v224, %v216
    %v241 = vpack.c.b16 %v225, %v217
    %v242 = vpack.c.b16 %v226, %v218
    %v243 = vpack.c.b16 %v227, %v219
    %vm260 = vcmask 261120
    %v262 = vsel %vm260, %v179, 0
    %264 = vmatpush.bf16.msra.mxu0 0
    %265 = vmatpush.bf16.msra.mxu0 0
    %266 = vmatpush.bf16.msra.mxu0 0
    %267 = vmatpush.bf16.msra.mxu0 0
    %268 = vmatpush.bf16.msra.mxu0 0
    %269 = vmatpush.bf16.msra.mxu0 0
    %270 = vmatpush.bf16.msra.mxu0 %v236
    %271 = vmatpush.bf16.msra.mxu0 %v228
    %272 = vmatmul.bf16.gmra.mxu0 %v262
    %v273 = vpop.f32.mrf.mxu0
    %v274 = vadd.f32 0.0, %v273
    %v275 = vpop.f32.mrf.mxu0
    %v276 = vadd.f32 0.0, %v275
    %277 = vdwg.mxu0
    %278 = vmatpush.bf16.msra.mxu0 0
    %279 = vmatpush.bf16.msra.mxu0 0
    %280 = vmatpush.bf16.msra.mxu0 0
    %281 = vmatpush.bf16.msra.mxu0 0
    %282 = vmatpush.bf16.msra.mxu0 0
    %283 = vmatpush.bf16.msra.mxu0 0
    %284 = vmatpush.bf16.msra.mxu0 %v237
    %285 = vmatpush.bf16.msra.mxu0 %v229
    %286 = vmatmul.bf16.gmra.mxu0 %v262
    %v287 = vpop.f32.mrf.mxu0
    %v288 = vadd.f32 0.0, %v287
    %v289 = vpop.f32.mrf.mxu0
    %v290 = vadd.f32 0.0, %v289
    %291 = vdwg.mxu0
    %292 = vmatpush.bf16.msra.mxu0 0
    %293 = vmatpush.bf16.msra.mxu0 0
    %294 = vmatpush.bf16.msra.mxu0 0
    %295 = vmatpush.bf16.msra.mxu0 0
    %296 = vmatpush.bf16.msra.mxu0 0
    %297 = vmatpush.bf16.msra.mxu0 0
    %298 = vmatpush.bf16.msra.mxu0 %v238
    %299 = vmatpush.bf16.msra.mxu0 %v230
    %300 = vmatmul.bf16.gmra.mxu0 %v262
    %v301 = vpop.f32.mrf.mxu0
    %v302 = vadd.f32 0.0, %v301
    %v303 = vpop.f32.mrf.mxu0
    %v304 = vadd.f32 0.0, %v303
    %305 = vdwg.mxu0
    %306 = vmatpush.bf16.msra.mxu0 0
    %307 = vmatpush.bf16.msra.mxu0 0
    %308 = vmatpush.bf16.msra.mxu0 0
    %309 = vmatpush.bf16.msra.mxu0 0
    %310 = vmatpush.bf16.msra.mxu0 0
    %311 = vmatpush.bf16.msra.mxu0 0
    %312 = vmatpush.bf16.msra.mxu0 %v239
    %313 = vmatpush.bf16.msra.mxu0 %v231
    %314 = vmatmul.bf16.gmra.mxu0 %v262
    %v315 = vpop.f32.mrf.mxu0
    %v316 = vadd.f32 0.0, %v315
    %v317 = vpop.f32.mrf.mxu0
    %v318 = vadd.f32 0.0, %v317
    %319 = vdwg.mxu0
    %320 = vmatpush.bf16.msra.mxu0 0
    %321 = vmatpush.bf16.msra.mxu0 0
    %322 = vmatpush.bf16.msra.mxu0 0
    %323 = vmatpush.bf16.msra.mxu0 0
    %324 = vmatpush.bf16.msra.mxu0 0
    %325 = vmatpush.bf16.msra.mxu0 0
    %326 = vmatpush.bf16.msra.mxu0 %v240
    %327 = vmatpush.bf16.msra.mxu0 %v232
    %328 = vmatmul.bf16.gmra.mxu0 %v262
    %v329 = vpop.f32.mrf.mxu0
    %v330 = vadd.f32 0.0, %v329
    %v331 = vpop.f32.mrf.mxu0
    %v332 = vadd.f32 0.0, %v331
    %333 = vdwg.mxu0
    %334 = vmatpush.bf16.msra.mxu0 0
    %335 = vmatpush.bf16.msra.mxu0 0
    %336 = vmatpush.bf16.msra.mxu0 0
    %337 = vmatpush.bf16.msra.mxu0 0
    %338 = vmatpush.bf16.msra.mxu0 0
    %339 = vmatpush.bf16.msra.mxu0 0
    %340 = vmatpush.bf16.msra.mxu0 %v241
    %341 = vmatpush.bf16.msra.mxu0 %v233
    %342 = vmatmul.bf16.gmra.mxu0 %v262
    %v343 = vpop.f32.mrf.mxu0
    %v344 = vadd.f32 0.0, %v343
    %v345 = vpop.f32.mrf.mxu0
    %v346 = vadd.f32 0.0, %v345
    %347 = vdwg.mxu0
    %348 = vmatpush.bf16.msra.mxu0 0
    %349 = vmatpush.bf16.msra.mxu0 0
    %350 = vmatpush.bf16.msra.mxu0 0
    %351 = vmatpush.bf16.msra.mxu0 0
    %352 = vmatpush.bf16.msra.mxu0 0
    %353 = vmatpush.bf16.msra.mxu0 0
    %354 = vmatpush.bf16.msra.mxu0 %v242
    %355 = vmatpush.bf16.msra.mxu0 %v234
    %356 = vmatmul.bf16.gmra.mxu0 %v262
    %v357 = vpop.f32.mrf.mxu0
    %v358 = vadd.f32 0.0, %v357
    %v359 = vpop.f32.mrf.mxu0
    %v360 = vadd.f32 0.0, %v359
    %361 = vdwg.mxu0
    %362 = vmatpush.bf16.msra.mxu0 0
    %363 = vmatpush.bf16.msra.mxu0 0
    %364 = vmatpush.bf16.msra.mxu0 0
    %365 = vmatpush.bf16.msra.mxu0 0
    %366 = vmatpush.bf16.msra.mxu0 0
    %367 = vmatpush.bf16.msra.mxu0 0
    %368 = vmatpush.bf16.msra.mxu0 %v243
    %369 = vmatpush.bf16.msra.mxu0 %v235
    %370 = vmatmul.bf16.gmra.mxu0 %v262
    %v371 = vpop.f32.mrf.mxu0
    %v372 = vadd.f32 0.0, %v371
    %v373 = vpop.f32.mrf.mxu0
    %v374 = vadd.f32 0.0, %v373
    %375 = vdwg.mxu0
    %v376 = vld [vmem:[#allocation8] ss:$8 sm:$0xf]
    %s377 = scalar_lea.vmem [#allocation8], 1
    %v378 = vld [vmem:[%s377] ss:$8 sm:$0xf]
    %s379 = scalar_lea.vmem [#allocation8], 2
    %v380 = vld [vmem:[%s379] ss:$8 sm:$0xf]
    %s381 = scalar_lea.vmem [#allocation8], 3
    %v382 = vld [vmem:[%s381] ss:$8 sm:$0xf]
    %s383 = scalar_lea.vmem [#allocation8], 4
    %v384 = vld [vmem:[%s383] ss:$8 sm:$0xf]
    %s385 = scalar_lea.vmem [#allocation8], 5
    %v386 = vld [vmem:[%s385] ss:$8 sm:$0xf]
    %v388 = vperm.slane %v376, 0
    %v389 = vperm.slane %v376, 1
    %v390 = vperm.slane %v376, 2
    %v391 = vperm.slane %v376, 3
    %v396 = vadd.f32 %v274, %v388
    %v397 = vadd.f32 %v288, %v389
    %v398 = vadd.f32 %v302, %v390
    %v399 = vadd.f32 %v316, %v391
    %v400 = vadd.f32 %v276, %v388
    %v401 = vadd.f32 %v290, %v389
    %v402 = vadd.f32 %v304, %v390
    %v403 = vadd.f32 %v318, %v391
    %v404 = vadd.f32 %v396, %v397
    %v405 = vadd.f32 %v404, %v398
    %v406 = vadd.f32 %v405, %v399
    %407 = vadd.xlane.f32.xlu0 %v406
    %v408 = vpop.xlane.xlu0 %407
    %v409 = vadd.f32 %v400, %v401
    %v410 = vadd.f32 %v409, %v402
    %v411 = vadd.f32 %v410, %v403
    %412 = vadd.xlane.f32.xlu0 %v411
    %v413 = vpop.xlane.xlu0 %412
    %v414 = vrcp.pop 512.0
    %v415 = vmul.f32 512.0, %v414
    %v416 = vsub.f32 1.0, %v415
    %v417 = vmul.f32 %v414, %v416
    %v418 = vadd.f32 %v414, %v417
    %vm419 = vweird.f32 %v414
    %v420 = vsel %vm419, %v414, %v418
    %v421 = vmul.f32 %v408, %v420
    %v422 = vmul.f32 %v413, %v420
    %v423 = vsub.f32 %v396, %v421
    %v424 = vsub.f32 %v397, %v421
    %v425 = vsub.f32 %v398, %v421
    %v426 = vsub.f32 %v399, %v421
    %v427 = vsub.f32 %v400, %v422
    %v428 = vsub.f32 %v401, %v422
    %v429 = vsub.f32 %v402, %v422
    %v430 = vsub.f32 %v403, %v422
    %v431 = vmul.f32 %v423, %v423
    %v432 = vmul.f32 %v424, %v424
    %v433 = vmul.f32 %v425, %v425
    %v434 = vmul.f32 %v426, %v426
    %v435 = vmul.f32 %v427, %v427
    %v436 = vmul.f32 %v428, %v428
    %v437 = vmul.f32 %v429, %v429
    %v438 = vmul.f32 %v430, %v430
    %v439 = vadd.f32 %v431, %v432
    %v440 = vadd.f32 %v439, %v433
    %v441 = vadd.f32 %v440, %v434
    %442 = vadd.xlane.f32.xlu0 %v441
    %v443 = vpop.xlane.xlu0 %442
    %v444 = vadd.f32 %v435, %v436
    %v445 = vadd.f32 %v444, %v437
    %v446 = vadd.f32 %v445, %v438
    %447 = vadd.xlane.f32.xlu0 %v446
    %v448 = vpop.xlane.xlu0 %447
    %v449 = vmul.f32 %v443, %v420
    %v450 = vmul.f32 %v448, %v420
    %v451 = vadd.f32 %v449, 1e-05
    %v452 = vadd.f32 %v450, 1e-05
    %v453 = vrsqrt.pop %v451
    %v454 = vmul.f32 %v453, %v451
    %v455 = vmul.f32 %v454, %v453
    %v456 = vmul.f32 0.5, %v455
    %v457 = vsub.f32 1.5, %v456
    %v458 = vmul.f32 %v453, %v457
    %vm459 = vweird.f32 %v451
    %vm460 = vweird.f32 %v453
    %vm461 = vmor %vm459, %vm460
    %v462 = vsel %vm461, %v453, %v458
    %v463 = vrsqrt.pop %v452
    %v464 = vmul.f32 %v463, %v452
    %v465 = vmul.f32 %v464, %v463
    %v466 = vmul.f32 0.5, %v465
    %v467 = vsub.f32 1.5, %v466
    %v468 = vmul.f32 %v463, %v467
    %vm469 = vweird.f32 %v452
    %vm470 = vweird.f32 %v463
    %vm471 = vmor %vm469, %vm470
    %v472 = vsel %vm471, %v463, %v468
    %v473 = vmul.f32 %v423, %v462
    %v474 = vmul.f32 %v424, %v462
    %v475 = vmul.f32 %v425, %v462
    %v476 = vmul.f32 %v426, %v462
    %v477 = vmul.f32 %v427, %v472
    %v478 = vmul.f32 %v428, %v472
    %v479 = vmul.f32 %v429, %v472
    %v480 = vmul.f32 %v430, %v472
    %v482 = vperm.slane %v378, 0
    %v483 = vperm.slane %v378, 1
    %v484 = vperm.slane %v378, 2
    %v485 = vperm.slane %v378, 3
    %v490 = vmul.f32 %v473, %v482
    %v491 = vmul.f32 %v474, %v483
    %v492 = vmul.f32 %v475, %v484
    %v493 = vmul.f32 %v476, %v485
    %v494 = vmul.f32 %v477, %v482
    %v495 = vmul.f32 %v478, %v483
    %v496 = vmul.f32 %v479, %v484
    %v497 = vmul.f32 %v480, %v485
    %v499 = vperm.slane %v380, 0
    %v500 = vperm.slane %v380, 1
    %v501 = vperm.slane %v380, 2
    %v502 = vperm.slane %v380, 3
    %v507 = vadd.f32 %v490, %v499
    %v508 = vadd.f32 %v491, %v500
    %v509 = vadd.f32 %v492, %v501
    %v510 = vadd.f32 %v493, %v502
    %v511 = vadd.f32 %v494, %v499
    %v512 = vadd.f32 %v495, %v500
    %v513 = vadd.f32 %v496, %v501
    %v514 = vadd.f32 %v497, %v502
    %vm515 = vcmp.gt.f32.partialorder %v507, 0.0
    %vm516 = vcmp.gt.f32.partialorder %v508, 0.0
    %vm517 = vcmp.gt.f32.partialorder %v509, 0.0
    %vm518 = vcmp.gt.f32.partialorder %v510, 0.0
    %vm519 = vcmp.gt.f32.partialorder %v511, 0.0
    %vm520 = vcmp.gt.f32.partialorder %v512, 0.0
    %vm521 = vcmp.gt.f32.partialorder %v513, 0.0
    %vm522 = vcmp.gt.f32.partialorder %v514, 0.0
    %v523 = vmul.f32 %v507, 0.01
    %v524 = vmul.f32 %v508, 0.01
    %v525 = vmul.f32 %v509, 0.01
    %v526 = vmul.f32 %v510, 0.01
    %v527 = vmul.f32 %v511, 0.01
    %v528 = vmul.f32 %v512, 0.01
    %v529 = vmul.f32 %v513, 0.01
    %v530 = vmul.f32 %v514, 0.01
    %v531 = vsel %vm515, %v507, %v523
    %v532 = vsel %vm516, %v508, %v524
    %v533 = vsel %vm517, %v509, %v525
    %v534 = vsel %vm518, %v510, %v526
    %v535 = vsel %vm519, %v511, %v527
    %v536 = vsel %vm520, %v512, %v528
    %v537 = vsel %vm521, %v513, %v529
    %v538 = vsel %vm522, %v514, %v530
    %v539 = vpack.c.bf16 %v535, %v531
    %v540 = vpack.c.bf16 %v536, %v532
    %v541 = vpack.c.bf16 %v537, %v533
    %v542 = vpack.c.bf16 %v538, %v534
    %v543 = vld [vmem:[#allocation10] sm:$0xff]
    %v544 = vld [vmem:[#allocation10 + $0x8] sm:$0xff]
    %v545 = vld [vmem:[#allocation10 + $0x10] sm:$0xff]
    %v546 = vld [vmem:[#allocation10 + $0x18] sm:$0xff]
    %v547 = vld [vmem:[#allocation10 + $0x20] sm:$0xff]
    %v548 = vld [vmem:[#allocation10 + $0x28] sm:$0xff]
    %v549 = vld [vmem:[#allocation10 + $0x30] sm:$0xff]
    %v550 = vld [vmem:[#allocation10 + $0x38] sm:$0xff]
    %v551 = vld [vmem:[#allocation10 + $0x40] sm:$0xff]
    %v552 = vld [vmem:[#allocation10 + $0x48] sm:$0xff]
    %v553 = vld [vmem:[#allocation10 + $0x50] sm:$0xff]
    %v554 = vld [vmem:[#allocation10 + $0x58] sm:$0xff]
    %v555 = vld [vmem:[#allocation10 + $0x60] sm:$0xff]
    %v556 = vld [vmem:[#allocation10 + $0x68] sm:$0xff]
    %v557 = vld [vmem:[#allocation10 + $0x70] sm:$0xff]
    %v558 = vld [vmem:[#allocation10 + $0x78] sm:$0xff]
    %v559 = vld [vmem:[#allocation10 + $0x80] sm:$0xff]
    %v560 = vld [vmem:[#allocation10 + $0x88] sm:$0xff]
    %v561 = vld [vmem:[#allocation10 + $0x90] sm:$0xff]
    %v562 = vld [vmem:[#allocation10 + $0x98] sm:$0xff]
    %v563 = vld [vmem:[#allocation10 + $0xa0] sm:$0xff]
    %v564 = vld [vmem:[#allocation10 + $0xa8] sm:$0xff]
    %v565 = vld [vmem:[#allocation10 + $0xb0] sm:$0xff]
    %v566 = vld [vmem:[#allocation10 + $0xb8] sm:$0xff]
    %v567 = vld [vmem:[#allocation10 + $0xc0] sm:$0xff]
    %v568 = vld [vmem:[#allocation10 + $0xc8] sm:$0xff]
    %v569 = vld [vmem:[#allocation10 + $0xd0] sm:$0xff]
    %v570 = vld [vmem:[#allocation10 + $0xd8] sm:$0xff]
    %v571 = vld [vmem:[#allocation10 + $0xe0] sm:$0xff]
    %v572 = vld [vmem:[#allocation10 + $0xe8] sm:$0xff]
    %v573 = vld [vmem:[#allocation10 + $0xf0] sm:$0xff]
    %v574 = vld [vmem:[#allocation10 + $0xf8] sm:$0xff]
    %v575 = vld [vmem:[#allocation10 + $0x100] sm:$0xff]
    %v576 = vld [vmem:[#allocation10 + $0x108] sm:$0xff]
    %v577 = vld [vmem:[#allocation10 + $0x110] sm:$0xff]
    %v578 = vld [vmem:[#allocation10 + $0x118] sm:$0xff]
    %v579 = vld [vmem:[#allocation10 + $0x120] sm:$0xff]
    %v580 = vld [vmem:[#allocation10 + $0x128] sm:$0xff]
    %v581 = vld [vmem:[#allocation10 + $0x130] sm:$0xff]
    %v582 = vld [vmem:[#allocation10 + $0x138] sm:$0xff]
    %v583 = vld [vmem:[#allocation10 + $0x140] sm:$0xff]
    %v584 = vld [vmem:[#allocation10 + $0x148] sm:$0xff]
    %v585 = vld [vmem:[#allocation10 + $0x150] sm:$0xff]
    %v586 = vld [vmem:[#allocation10 + $0x158] sm:$0xff]
    %v587 = vld [vmem:[#allocation10 + $0x160] sm:$0xff]
    %v588 = vld [vmem:[#allocation10 + $0x168] sm:$0xff]
    %v589 = vld [vmem:[#allocation10 + $0x170] sm:$0xff]
    %v590 = vld [vmem:[#allocation10 + $0x178] sm:$0xff]
    %v591 = vld [vmem:[#allocation10 + $0x180] sm:$0xff]
    %v592 = vld [vmem:[#allocation10 + $0x188] sm:$0xff]
    %v593 = vld [vmem:[#allocation10 + $0x190] sm:$0xff]
    %v594 = vld [vmem:[#allocation10 + $0x198] sm:$0xff]
    %v595 = vld [vmem:[#allocation10 + $0x1a0] sm:$0xff]
    %v596 = vld [vmem:[#allocation10 + $0x1a8] sm:$0xff]
    %v597 = vld [vmem:[#allocation10 + $0x1b0] sm:$0xff]
    %v598 = vld [vmem:[#allocation10 + $0x1b8] sm:$0xff]
    %v599 = vld [vmem:[#allocation10 + $0x1c0] sm:$0xff]
    %v600 = vld [vmem:[#allocation10 + $0x1c8] sm:$0xff]
    %v601 = vld [vmem:[#allocation10 + $0x1d0] sm:$0xff]
    %v602 = vld [vmem:[#allocation10 + $0x1d8] sm:$0xff]
    %v603 = vld [vmem:[#allocation10 + $0x1e0] sm:$0xff]
    %v604 = vld [vmem:[#allocation10 + $0x1e8] sm:$0xff]
    %v605 = vld [vmem:[#allocation10 + $0x1f0] sm:$0xff]
    %v606 = vld [vmem:[#allocation10 + $0x1f8] sm:$0xff]
    %v607 = vld [vmem:[#allocation10 + $0x200] sm:$0xff]
    %v608 = vld [vmem:[#allocation10 + $0x208] sm:$0xff]
    %v609 = vld [vmem:[#allocation10 + $0x210] sm:$0xff]
    %v610 = vld [vmem:[#allocation10 + $0x218] sm:$0xff]
    %v611 = vld [vmem:[#allocation10 + $0x220] sm:$0xff]
    %v612 = vld [vmem:[#allocation10 + $0x228] sm:$0xff]
    %v613 = vld [vmem:[#allocation10 + $0x230] sm:$0xff]
    %v614 = vld [vmem:[#allocation10 + $0x238] sm:$0xff]
    %v615 = vld [vmem:[#allocation10 + $0x240] sm:$0xff]
    %v616 = vld [vmem:[#allocation10 + $0x248] sm:$0xff]
    %v617 = vld [vmem:[#allocation10 + $0x250] sm:$0xff]
    %v618 = vld [vmem:[#allocation10 + $0x258] sm:$0xff]
    %v619 = vld [vmem:[#allocation10 + $0x260] sm:$0xff]
    %v620 = vld [vmem:[#allocation10 + $0x268] sm:$0xff]
    %v621 = vld [vmem:[#allocation10 + $0x270] sm:$0xff]
    %v622 = vld [vmem:[#allocation10 + $0x278] sm:$0xff]
    %v623 = vld [vmem:[#allocation10 + $0x280] sm:$0xff]
    %v624 = vld [vmem:[#allocation10 + $0x288] sm:$0xff]
    %v625 = vld [vmem:[#allocation10 + $0x290] sm:$0xff]
    %v626 = vld [vmem:[#allocation10 + $0x298] sm:$0xff]
    %v627 = vld [vmem:[#allocation10 + $0x2a0] sm:$0xff]
    %v628 = vld [vmem:[#allocation10 + $0x2a8] sm:$0xff]
    %v629 = vld [vmem:[#allocation10 + $0x2b0] sm:$0xff]
    %v630 = vld [vmem:[#allocation10 + $0x2b8] sm:$0xff]
    %v631 = vld [vmem:[#allocation10 + $0x2c0] sm:$0xff]
    %v632 = vld [vmem:[#allocation10 + $0x2c8] sm:$0xff]
    %v633 = vld [vmem:[#allocation10 + $0x2d0] sm:$0xff]
    %v634 = vld [vmem:[#allocation10 + $0x2d8] sm:$0xff]
    %v635 = vld [vmem:[#allocation10 + $0x2e0] sm:$0xff]
    %v636 = vld [vmem:[#allocation10 + $0x2e8] sm:$0xff]
    %v637 = vld [vmem:[#allocation10 + $0x2f0] sm:$0xff]
    %v638 = vld [vmem:[#allocation10 + $0x2f8] sm:$0xff]
    %v639 = vld [vmem:[#allocation10 + $0x300] sm:$0xff]
    %v640 = vld [vmem:[#allocation10 + $0x308] sm:$0xff]
    %v641 = vld [vmem:[#allocation10 + $0x310] sm:$0xff]
    %v642 = vld [vmem:[#allocation10 + $0x318] sm:$0xff]
    %v643 = vld [vmem:[#allocation10 + $0x320] sm:$0xff]
    %v644 = vld [vmem:[#allocation10 + $0x328] sm:$0xff]
    %v645 = vld [vmem:[#allocation10 + $0x330] sm:$0xff]
    %v646 = vld [vmem:[#allocation10 + $0x338] sm:$0xff]
    %v647 = vld [vmem:[#allocation10 + $0x340] sm:$0xff]
    %v648 = vld [vmem:[#allocation10 + $0x348] sm:$0xff]
    %v649 = vld [vmem:[#allocation10 + $0x350] sm:$0xff]
    %v650 = vld [vmem:[#allocation10 + $0x358] sm:$0xff]
    %v651 = vld [vmem:[#allocation10 + $0x360] sm:$0xff]
    %v652 = vld [vmem:[#allocation10 + $0x368] sm:$0xff]
    %v653 = vld [vmem:[#allocation10 + $0x370] sm:$0xff]
    %v654 = vld [vmem:[#allocation10 + $0x378] sm:$0xff]
    %v655 = vld [vmem:[#allocation10 + $0x380] sm:$0xff]
    %v656 = vld [vmem:[#allocation10 + $0x388] sm:$0xff]
    %v657 = vld [vmem:[#allocation10 + $0x390] sm:$0xff]
    %v658 = vld [vmem:[#allocation10 + $0x398] sm:$0xff]
    %v659 = vld [vmem:[#allocation10 + $0x3a0] sm:$0xff]
    %v660 = vld [vmem:[#allocation10 + $0x3a8] sm:$0xff]
    %v661 = vld [vmem:[#allocation10 + $0x3b0] sm:$0xff]
    %v662 = vld [vmem:[#allocation10 + $0x3b8] sm:$0xff]
    %v663 = vld [vmem:[#allocation10 + $0x3c0] sm:$0xff]
    %v664 = vld [vmem:[#allocation10 + $0x3c8] sm:$0xff]
    %v665 = vld [vmem:[#allocation10 + $0x3d0] sm:$0xff]
    %v666 = vld [vmem:[#allocation10 + $0x3d8] sm:$0xff]
    %v667 = vld [vmem:[#allocation10 + $0x3e0] sm:$0xff]
    %v668 = vld [vmem:[#allocation10 + $0x3e8] sm:$0xff]
    %v669 = vld [vmem:[#allocation10 + $0x3f0] sm:$0xff]
    %v670 = vld [vmem:[#allocation10 + $0x3f8] sm:$0xff]
    %v672 = vperm.slane %v382, 0
    %v673 = vperm.slane %v382, 1
    %v674 = vperm.slane %v382, 2
    %v675 = vperm.slane %v382, 3
    %v808 = vunpack.c.l.b16 %v543
    %v809 = vunpack.c.h.b16 %v543
    %v810 = vunpack.c.l.b16 %v544
    %v811 = vunpack.c.h.b16 %v544
    %v812 = vunpack.c.l.b16 %v545
    %v813 = vunpack.c.h.b16 %v545
    %v814 = vunpack.c.l.b16 %v546
    %v815 = vunpack.c.h.b16 %v546
    %v816 = vunpack.c.l.b16 %v547
    %v817 = vunpack.c.h.b16 %v547
    %v818 = vunpack.c.l.b16 %v548
    %v819 = vunpack.c.h.b16 %v548
    %v820 = vunpack.c.l.b16 %v549
    %v821 = vunpack.c.h.b16 %v549
    %v822 = vunpack.c.l.b16 %v550
    %v823 = vunpack.c.h.b16 %v550
    %v824 = vunpack.c.l.b16 %v551
    %v825 = vunpack.c.h.b16 %v551
    %v826 = vunpack.c.l.b16 %v552
    %v827 = vunpack.c.h.b16 %v552
    %v828 = vunpack.c.l.b16 %v553
    %v829 = vunpack.c.h.b16 %v553
    %v830 = vunpack.c.l.b16 %v554
    %v831 = vunpack.c.h.b16 %v554
    %v832 = vunpack.c.l.b16 %v555
    %v833 = vunpack.c.h.b16 %v555
    %v834 = vunpack.c.l.b16 %v556
    %v835 = vunpack.c.h.b16 %v556
    %v836 = vunpack.c.l.b16 %v557
    %v837 = vunpack.c.h.b16 %v557
    %v838 = vunpack.c.l.b16 %v558
    %v839 = vunpack.c.h.b16 %v558
    %v840 = vunpack.c.l.b16 %v559
    %v841 = vunpack.c.h.b16 %v559
    %v842 = vunpack.c.l.b16 %v560
    %v843 = vunpack.c.h.b16 %v560
    %v844 = vunpack.c.l.b16 %v561
    %v845 = vunpack.c.h.b16 %v561
    %v846 = vunpack.c.l.b16 %v562
    %v847 = vunpack.c.h.b16 %v562
    %v848 = vunpack.c.l.b16 %v563
    %v849 = vunpack.c.h.b16 %v563
    %v850 = vunpack.c.l.b16 %v564
    %v851 = vunpack.c.h.b16 %v564
    %v852 = vunpack.c.l.b16 %v565
    %v853 = vunpack.c.h.b16 %v565
    %v854 = vunpack.c.l.b16 %v566
    %v855 = vunpack.c.h.b16 %v566
    %v856 = vunpack.c.l.b16 %v567
    %v857 = vunpack.c.h.b16 %v567
    %v858 = vunpack.c.l.b16 %v568
    %v859 = vunpack.c.h.b16 %v568
    %v860 = vunpack.c.l.b16 %v569
    %v861 = vunpack.c.h.b16 %v569
    %v862 = vunpack.c.l.b16 %v570
    %v863 = vunpack.c.h.b16 %v570
    %v864 = vunpack.c.l.b16 %v571
    %v865 = vunpack.c.h.b16 %v571
    %v866 = vunpack.c.l.b16 %v572
    %v867 = vunpack.c.h.b16 %v572
    %v868 = vunpack.c.l.b16 %v573
    %v869 = vunpack.c.h.b16 %v573
    %v870 = vunpack.c.l.b16 %v574
    %v871 = vunpack.c.h.b16 %v574
    %v872 = vunpack.c.l.b16 %v575
    %v873 = vunpack.c.h.b16 %v575
    %v874 = vunpack.c.l.b16 %v576
    %v875 = vunpack.c.h.b16 %v576
    %v876 = vunpack.c.l.b16 %v577
    %v877 = vunpack.c.h.b16 %v577
    %v878 = vunpack.c.l.b16 %v578
    %v879 = vunpack.c.h.b16 %v578
    %v880 = vunpack.c.l.b16 %v579
    %v881 = vunpack.c.h.b16 %v579
    %v882 = vunpack.c.l.b16 %v580
    %v883 = vunpack.c.h.b16 %v580
    %v884 = vunpack.c.l.b16 %v581
    %v885 = vunpack.c.h.b16 %v581
    %v886 = vunpack.c.l.b16 %v582
    %v887 = vunpack.c.h.b16 %v582
    %v888 = vunpack.c.l.b16 %v583
    %v889 = vunpack.c.h.b16 %v583
    %v890 = vunpack.c.l.b16 %v584
    %v891 = vunpack.c.h.b16 %v584
    %v892 = vunpack.c.l.b16 %v585
    %v893 = vunpack.c.h.b16 %v585
    %v894 = vunpack.c.l.b16 %v586
    %v895 = vunpack.c.h.b16 %v586
    %v896 = vunpack.c.l.b16 %v587
    %v897 = vunpack.c.h.b16 %v587
    %v898 = vunpack.c.l.b16 %v588
    %v899 = vunpack.c.h.b16 %v588
    %v900 = vunpack.c.l.b16 %v589
    %v901 = vunpack.c.h.b16 %v589
    %v902 = vunpack.c.l.b16 %v590
    %v903 = vunpack.c.h.b16 %v590
    %v904 = vunpack.c.l.b16 %v591
    %v905 = vunpack.c.h.b16 %v591
    %v906 = vunpack.c.l.b16 %v592
    %v907 = vunpack.c.h.b16 %v592
    %v908 = vunpack.c.l.b16 %v593
    %v909 = vunpack.c.h.b16 %v593
    %v910 = vunpack.c.l.b16 %v594
    %v911 = vunpack.c.h.b16 %v594
    %v912 = vunpack.c.l.b16 %v595
    %v913 = vunpack.c.h.b16 %v595
    %v914 = vunpack.c.l.b16 %v596
    %v915 = vunpack.c.h.b16 %v596
    %v916 = vunpack.c.l.b16 %v597
    %v917 = vunpack.c.h.b16 %v597
    %v918 = vunpack.c.l.b16 %v598
    %v919 = vunpack.c.h.b16 %v598
    %v920 = vunpack.c.l.b16 %v599
    %v921 = vunpack.c.h.b16 %v599
    %v922 = vunpack.c.l.b16 %v600
    %v923 = vunpack.c.h.b16 %v600
    %v924 = vunpack.c.l.b16 %v601
    %v925 = vunpack.c.h.b16 %v601
    %v926 = vunpack.c.l.b16 %v602
    %v927 = vunpack.c.h.b16 %v602
    %v928 = vunpack.c.l.b16 %v603
    %v929 = vunpack.c.h.b16 %v603
    %v930 = vunpack.c.l.b16 %v604
    %v931 = vunpack.c.h.b16 %v604
    %v932 = vunpack.c.l.b16 %v605
    %v933 = vunpack.c.h.b16 %v605
    %v934 = vunpack.c.l.b16 %v606
    %v935 = vunpack.c.h.b16 %v606
    %v936 = vunpack.c.l.b16 %v607
    %v937 = vunpack.c.h.b16 %v607
    %v938 = vunpack.c.l.b16 %v608
    %v939 = vunpack.c.h.b16 %v608
    %v940 = vunpack.c.l.b16 %v609
    %v941 = vunpack.c.h.b16 %v609
    %v942 = vunpack.c.l.b16 %v610
    %v943 = vunpack.c.h.b16 %v610
    %v944 = vunpack.c.l.b16 %v611
    %v945 = vunpack.c.h.b16 %v611
    %v946 = vunpack.c.l.b16 %v612
    %v947 = vunpack.c.h.b16 %v612
    %v948 = vunpack.c.l.b16 %v613
    %v949 = vunpack.c.h.b16 %v613
    %v950 = vunpack.c.l.b16 %v614
    %v951 = vunpack.c.h.b16 %v614
    %v952 = vunpack.c.l.b16 %v615
    %v953 = vunpack.c.h.b16 %v615
    %v954 = vunpack.c.l.b16 %v616
    %v955 = vunpack.c.h.b16 %v616
    %v956 = vunpack.c.l.b16 %v617
    %v957 = vunpack.c.h.b16 %v617
    %v958 = vunpack.c.l.b16 %v618
    %v959 = vunpack.c.h.b16 %v618
    %v960 = vunpack.c.l.b16 %v619
    %v961 = vunpack.c.h.b16 %v619
    %v962 = vunpack.c.l.b16 %v620
    %v963 = vunpack.c.h.b16 %v620
    %v964 = vunpack.c.l.b16 %v621
    %v965 = vunpack.c.h.b16 %v621
    %v966 = vunpack.c.l.b16 %v622
    %v967 = vunpack.c.h.b16 %v622
    %v968 = vunpack.c.l.b16 %v623
    %v969 = vunpack.c.h.b16 %v623
    %v970 = vunpack.c.l.b16 %v624
    %v971 = vunpack.c.h.b16 %v624
    %v972 = vunpack.c.l.b16 %v625
    %v973 = vunpack.c.h.b16 %v625
    %v974 = vunpack.c.l.b16 %v626
    %v975 = vunpack.c.h.b16 %v626
    %v976 = vunpack.c.l.b16 %v627
    %v977 = vunpack.c.h.b16 %v627
    %v978 = vunpack.c.l.b16 %v628
    %v979 = vunpack.c.h.b16 %v628
    %v980 = vunpack.c.l.b16 %v629
    %v981 = vunpack.c.h.b16 %v629
    %v982 = vunpack.c.l.b16 %v630
    %v983 = vunpack.c.h.b16 %v630
    %v984 = vunpack.c.l.b16 %v631
    %v985 = vunpack.c.h.b16 %v631
    %v986 = vunpack.c.l.b16 %v632
    %v987 = vunpack.c.h.b16 %v632
    %v988 = vunpack.c.l.b16 %v633
    %v989 = vunpack.c.h.b16 %v633
    %v990 = vunpack.c.l.b16 %v634
    %v991 = vunpack.c.h.b16 %v634
    %v992 = vunpack.c.l.b16 %v635
    %v993 = vunpack.c.h.b16 %v635
    %v994 = vunpack.c.l.b16 %v636
    %v995 = vunpack.c.h.b16 %v636
    %v996 = vunpack.c.l.b16 %v637
    %v997 = vunpack.c.h.b16 %v637
    %v998 = vunpack.c.l.b16 %v638
    %v999 = vunpack.c.h.b16 %v638
    %v1000 = vunpack.c.l.b16 %v639
    %v1001 = vunpack.c.h.b16 %v639
    %v1002 = vunpack.c.l.b16 %v640
    %v1003 = vunpack.c.h.b16 %v640
    %v1004 = vunpack.c.l.b16 %v641
    %v1005 = vunpack.c.h.b16 %v641
    %v1006 = vunpack.c.l.b16 %v642
    %v1007 = vunpack.c.h.b16 %v642
    %v1008 = vunpack.c.l.b16 %v643
    %v1009 = vunpack.c.h.b16 %v643
    %v1010 = vunpack.c.l.b16 %v644
    %v1011 = vunpack.c.h.b16 %v644
    %v1012 = vunpack.c.l.b16 %v645
    %v1013 = vunpack.c.h.b16 %v645
    %v1014 = vunpack.c.l.b16 %v646
    %v1015 = vunpack.c.h.b16 %v646
    %v1016 = vunpack.c.l.b16 %v647
    %v1017 = vunpack.c.h.b16 %v647
    %v1018 = vunpack.c.l.b16 %v648
    %v1019 = vunpack.c.h.b16 %v648
    %v1020 = vunpack.c.l.b16 %v649
    %v1021 = vunpack.c.h.b16 %v649
    %v1022 = vunpack.c.l.b16 %v650
    %v1023 = vunpack.c.h.b16 %v650
    %v1024 = vunpack.c.l.b16 %v651
    %v1025 = vunpack.c.h.b16 %v651
    %v1026 = vunpack.c.l.b16 %v652
    %v1027 = vunpack.c.h.b16 %v652
    %v1028 = vunpack.c.l.b16 %v653
    %v1029 = vunpack.c.h.b16 %v653
    %v1030 = vunpack.c.l.b16 %v654
    %v1031 = vunpack.c.h.b16 %v654
    %v1032 = vunpack.c.l.b16 %v655
    %v1033 = vunpack.c.h.b16 %v655
    %v1034 = vunpack.c.l.b16 %v656
    %v1035 = vunpack.c.h.b16 %v656
    %v1036 = vunpack.c.l.b16 %v657
    %v1037 = vunpack.c.h.b16 %v657
    %v1038 = vunpack.c.l.b16 %v658
    %v1039 = vunpack.c.h.b16 %v658
    %v1040 = vunpack.c.l.b16 %v659
    %v1041 = vunpack.c.h.b16 %v659
    %v1042 = vunpack.c.l.b16 %v660
    %v1043 = vunpack.c.h.b16 %v660
    %v1044 = vunpack.c.l.b16 %v661
    %v1045 = vunpack.c.h.b16 %v661
    %v1046 = vunpack.c.l.b16 %v662
    %v1047 = vunpack.c.h.b16 %v662
    %v1048 = vunpack.c.l.b16 %v663
    %v1049 = vunpack.c.h.b16 %v663
    %v1050 = vunpack.c.l.b16 %v664
    %v1051 = vunpack.c.h.b16 %v664
    %v1052 = vunpack.c.l.b16 %v665
    %v1053 = vunpack.c.h.b16 %v665
    %v1054 = vunpack.c.l.b16 %v666
    %v1055 = vunpack.c.h.b16 %v666
    %v1056 = vunpack.c.l.b16 %v667
    %v1057 = vunpack.c.h.b16 %v667
    %v1058 = vunpack.c.l.b16 %v668
    %v1059 = vunpack.c.h.b16 %v668
    %v1060 = vunpack.c.l.b16 %v669
    %v1061 = vunpack.c.h.b16 %v669
    %v1062 = vunpack.c.l.b16 %v670
    %v1063 = vunpack.c.h.b16 %v670
    %v1064 = vpack.c.b16 %v812, %v808
    %v1065 = vpack.c.b16 %v813, %v809
    %v1066 = vpack.c.b16 %v814, %v810
    %v1067 = vpack.c.b16 %v815, %v811
    %v1068 = vpack.c.b16 %v820, %v816
    %v1069 = vpack.c.b16 %v821, %v817
    %v1070 = vpack.c.b16 %v822, %v818
    %v1071 = vpack.c.b16 %v823, %v819
    %v1072 = vpack.c.b16 %v828, %v824
    %v1073 = vpack.c.b16 %v829, %v825
    %v1074 = vpack.c.b16 %v830, %v826
    %v1075 = vpack.c.b16 %v831, %v827
    %v1076 = vpack.c.b16 %v836, %v832
    %v1077 = vpack.c.b16 %v837, %v833
    %v1078 = vpack.c.b16 %v838, %v834
    %v1079 = vpack.c.b16 %v839, %v835
    %v1080 = vpack.c.b16 %v844, %v840
    %v1081 = vpack.c.b16 %v845, %v841
    %v1082 = vpack.c.b16 %v846, %v842
    %v1083 = vpack.c.b16 %v847, %v843
    %v1084 = vpack.c.b16 %v852, %v848
    %v1085 = vpack.c.b16 %v853, %v849
    %v1086 = vpack.c.b16 %v854, %v850
    %v1087 = vpack.c.b16 %v855, %v851
    %v1088 = vpack.c.b16 %v860, %v856
    %v1089 = vpack.c.b16 %v861, %v857
    %v1090 = vpack.c.b16 %v862, %v858
    %v1091 = vpack.c.b16 %v863, %v859
    %v1092 = vpack.c.b16 %v868, %v864
    %v1093 = vpack.c.b16 %v869, %v865
    %v1094 = vpack.c.b16 %v870, %v866
    %v1095 = vpack.c.b16 %v871, %v867
    %v1096 = vpack.c.b16 %v876, %v872
    %v1097 = vpack.c.b16 %v877, %v873
    %v1098 = vpack.c.b16 %v878, %v874
    %v1099 = vpack.c.b16 %v879, %v875
    %v1100 = vpack.c.b16 %v884, %v880
    %v1101 = vpack.c.b16 %v885, %v881
    %v1102 = vpack.c.b16 %v886, %v882
    %v1103 = vpack.c.b16 %v887, %v883
    %v1104 = vpack.c.b16 %v892, %v888
    %v1105 = vpack.c.b16 %v893, %v889
    %v1106 = vpack.c.b16 %v894, %v890
    %v1107 = vpack.c.b16 %v895, %v891
    %v1108 = vpack.c.b16 %v900, %v896
    %v1109 = vpack.c.b16 %v901, %v897
    %v1110 = vpack.c.b16 %v902, %v898
    %v1111 = vpack.c.b16 %v903, %v899
    %v1112 = vpack.c.b16 %v908, %v904
    %v1113 = vpack.c.b16 %v909, %v905
    %v1114 = vpack.c.b16 %v910, %v906
    %v1115 = vpack.c.b16 %v911, %v907
    %v1116 = vpack.c.b16 %v916, %v912
    %v1117 = vpack.c.b16 %v917, %v913
    %v1118 = vpack.c.b16 %v918, %v914
    %v1119 = vpack.c.b16 %v919, %v915
    %v1120 = vpack.c.b16 %v924, %v920
    %v1121 = vpack.c.b16 %v925, %v921
    %v1122 = vpack.c.b16 %v926, %v922
    %v1123 = vpack.c.b16 %v927, %v923
    %v1124 = vpack.c.b16 %v932, %v928
    %v1125 = vpack.c.b16 %v933, %v929
    %v1126 = vpack.c.b16 %v934, %v930
    %v1127 = vpack.c.b16 %v935, %v931
    %v1128 = vpack.c.b16 %v940, %v936
    %v1129 = vpack.c.b16 %v941, %v937
    %v1130 = vpack.c.b16 %v942, %v938
    %v1131 = vpack.c.b16 %v943, %v939
    %v1132 = vpack.c.b16 %v948, %v944
    %v1133 = vpack.c.b16 %v949, %v945
    %v1134 = vpack.c.b16 %v950, %v946
    %v1135 = vpack.c.b16 %v951, %v947
    %v1136 = vpack.c.b16 %v956, %v952
    %v1137 = vpack.c.b16 %v957, %v953
    %v1138 = vpack.c.b16 %v958, %v954
    %v1139 = vpack.c.b16 %v959, %v955
    %v1140 = vpack.c.b16 %v964, %v960
    %v1141 = vpack.c.b16 %v965, %v961
    %v1142 = vpack.c.b16 %v966, %v962
    %v1143 = vpack.c.b16 %v967, %v963
    %v1144 = vpack.c.b16 %v972, %v968
    %v1145 = vpack.c.b16 %v973, %v969
    %v1146 = vpack.c.b16 %v974, %v970
    %v1147 = vpack.c.b16 %v975, %v971
    %v1148 = vpack.c.b16 %v980, %v976
    %v1149 = vpack.c.b16 %v981, %v977
    %v1150 = vpack.c.b16 %v982, %v978
    %v1151 = vpack.c.b16 %v983, %v979
    %v1152 = vpack.c.b16 %v988, %v984
    %v1153 = vpack.c.b16 %v989, %v985
    %v1154 = vpack.c.b16 %v990, %v986
    %v1155 = vpack.c.b16 %v991, %v987
    %v1156 = vpack.c.b16 %v996, %v992
    %v1157 = vpack.c.b16 %v997, %v993
    %v1158 = vpack.c.b16 %v998, %v994
    %v1159 = vpack.c.b16 %v999, %v995
    %v1160 = vpack.c.b16 %v1004, %v1000
    %v1161 = vpack.c.b16 %v1005, %v1001
    %v1162 = vpack.c.b16 %v1006, %v1002
    %v1163 = vpack.c.b16 %v1007, %v1003
    %v1164 = vpack.c.b16 %v1012, %v1008
    %v1165 = vpack.c.b16 %v1013, %v1009
    %v1166 = vpack.c.b16 %v1014, %v1010
    %v1167 = vpack.c.b16 %v1015, %v1011
    %v1168 = vpack.c.b16 %v1020, %v1016
    %v1169 = vpack.c.b16 %v1021, %v1017
    %v1170 = vpack.c.b16 %v1022, %v1018
    %v1171 = vpack.c.b16 %v1023, %v1019
    %v1172 = vpack.c.b16 %v1028, %v1024
    %v1173 = vpack.c.b16 %v1029, %v1025
    %v1174 = vpack.c.b16 %v1030, %v1026
    %v1175 = vpack.c.b16 %v1031, %v1027
    %v1176 = vpack.c.b16 %v1036, %v1032
    %v1177 = vpack.c.b16 %v1037, %v1033
    %v1178 = vpack.c.b16 %v1038, %v1034
    %v1179 = vpack.c.b16 %v1039, %v1035
    %v1180 = vpack.c.b16 %v1044, %v1040
    %v1181 = vpack.c.b16 %v1045, %v1041
    %v1182 = vpack.c.b16 %v1046, %v1042
    %v1183 = vpack.c.b16 %v1047, %v1043
    %v1184 = vpack.c.b16 %v1052, %v1048
    %v1185 = vpack.c.b16 %v1053, %v1049
    %v1186 = vpack.c.b16 %v1054, %v1050
    %v1187 = vpack.c.b16 %v1055, %v1051
    %v1188 = vpack.c.b16 %v1060, %v1056
    %v1189 = vpack.c.b16 %v1061, %v1057
    %v1190 = vpack.c.b16 %v1062, %v1058
    %v1191 = vpack.c.b16 %v1063, %v1059
    %1320 = vmatpush.bf16.msra.mxu0 %v1092
    %1321 = vmatpush.bf16.msra.mxu0 %v1088
    %1322 = vmatpush.bf16.msra.mxu0 %v1084
    %1323 = vmatpush.bf16.msra.mxu0 %v1080
    %1324 = vmatpush.bf16.msra.mxu0 %v1076
    %1325 = vmatpush.bf16.msra.mxu0 %v1072
    %1326 = vmatpush.bf16.msra.mxu0 %v1068
    %1327 = vmatpush.bf16.msra.mxu0 %v1064
    %1328 = vmatmul.bf16.gmra.mxu0 %v539
    %v1329 = vpop.f32.mrf.mxu0
    %v1330 = vadd.f32 %v672, %v1329
    %v1331 = vpop.f32.mrf.mxu0
    %v1332 = vadd.f32 %v672, %v1331
    %1333 = vdwg.mxu0
    %1334 = vmatpush.bf16.msra.mxu0 %v1124
    %1335 = vmatpush.bf16.msra.mxu0 %v1120
    %1336 = vmatpush.bf16.msra.mxu0 %v1116
    %1337 = vmatpush.bf16.msra.mxu0 %v1112
    %1338 = vmatpush.bf16.msra.mxu0 %v1108
    %1339 = vmatpush.bf16.msra.mxu0 %v1104
    %1340 = vmatpush.bf16.msra.mxu0 %v1100
    %1341 = vmatpush.bf16.msra.mxu0 %v1096
    %1342 = vmatmul.bf16.gmra.mxu0 %v540
    %v1343 = vpop.f32.mrf.mxu0
    %v1344 = vadd.f32 %v1330, %v1343
    %v1345 = vpop.f32.mrf.mxu0
    %v1346 = vadd.f32 %v1332, %v1345
    %1347 = vdwg.mxu0
    %1348 = vmatpush.bf16.msra.mxu0 %v1156
    %1349 = vmatpush.bf16.msra.mxu0 %v1152
    %1350 = vmatpush.bf16.msra.mxu0 %v1148
    %1351 = vmatpush.bf16.msra.mxu0 %v1144
    %1352 = vmatpush.bf16.msra.mxu0 %v1140
    %1353 = vmatpush.bf16.msra.mxu0 %v1136
    %1354 = vmatpush.bf16.msra.mxu0 %v1132
    %1355 = vmatpush.bf16.msra.mxu0 %v1128
    %1356 = vmatmul.bf16.gmra.mxu0 %v541
    %v1357 = vpop.f32.mrf.mxu0
    %v1358 = vadd.f32 %v1344, %v1357
    %v1359 = vpop.f32.mrf.mxu0
    %v1360 = vadd.f32 %v1346, %v1359
    %1361 = vdwg.mxu0
    %1362 = vmatpush.bf16.msra.mxu0 %v1188
    %1363 = vmatpush.bf16.msra.mxu0 %v1184
    %1364 = vmatpush.bf16.msra.mxu0 %v1180
    %1365 = vmatpush.bf16.msra.mxu0 %v1176
    %1366 = vmatpush.bf16.msra.mxu0 %v1172
    %1367 = vmatpush.bf16.msra.mxu0 %v1168
    %1368 = vmatpush.bf16.msra.mxu0 %v1164
    %1369 = vmatpush.bf16.msra.mxu0 %v1160
    %1370 = vmatmul.bf16.gmra.mxu0 %v542
    %v1371 = vpop.f32.mrf.mxu0
    %v1372 = vadd.f32 %v1358, %v1371
    %v1373 = vpop.f32.mrf.mxu0
    %v1374 = vadd.f32 %v1360, %v1373
    %1375 = vdwg.mxu0
    %1376 = vmatpush.bf16.msra.mxu0 %v1093
    %1377 = vmatpush.bf16.msra.mxu0 %v1089
    %1378 = vmatpush.bf16.msra.mxu0 %v1085
    %1379 = vmatpush.bf16.msra.mxu0 %v1081
    %1380 = vmatpush.bf16.msra.mxu0 %v1077
    %1381 = vmatpush.bf16.msra.mxu0 %v1073
    %1382 = vmatpush.bf16.msra.mxu0 %v1069
    %1383 = vmatpush.bf16.msra.mxu0 %v1065
    %1384 = vmatmul.bf16.gmra.mxu0 %v539
    %v1385 = vpop.f32.mrf.mxu0
    %v1386 = vadd.f32 %v673, %v1385
    %v1387 = vpop.f32.mrf.mxu0
    %v1388 = vadd.f32 %v673, %v1387
    %1389 = vdwg.mxu0
    %1390 = vmatpush.bf16.msra.mxu0 %v1125
    %1391 = vmatpush.bf16.msra.mxu0 %v1121
    %1392 = vmatpush.bf16.msra.mxu0 %v1117
    %1393 = vmatpush.bf16.msra.mxu0 %v1113
    %1394 = vmatpush.bf16.msra.mxu0 %v1109
    %1395 = vmatpush.bf16.msra.mxu0 %v1105
    %1396 = vmatpush.bf16.msra.mxu0 %v1101
    %1397 = vmatpush.bf16.msra.mxu0 %v1097
    %1398 = vmatmul.bf16.gmra.mxu0 %v540
    %v1399 = vpop.f32.mrf.mxu0
    %v1400 = vadd.f32 %v1386, %v1399
    %v1401 = vpop.f32.mrf.mxu0
    %v1402 = vadd.f32 %v1388, %v1401
    %1403 = vdwg.mxu0
    %1404 = vmatpush.bf16.msra.mxu0 %v1157
    %1405 = vmatpush.bf16.msra.mxu0 %v1153
    %1406 = vmatpush.bf16.msra.mxu0 %v1149
    %1407 = vmatpush.bf16.msra.mxu0 %v1145
    %1408 = vmatpush.bf16.msra.mxu0 %v1141
    %1409 = vmatpush.bf16.msra.mxu0 %v1137
    %1410 = vmatpush.bf16.msra.mxu0 %v1133
    %1411 = vmatpush.bf16.msra.mxu0 %v1129
    %1412 = vmatmul.bf16.gmra.mxu0 %v541
    %v1413 = vpop.f32.mrf.mxu0
    %v1414 = vadd.f32 %v1400, %v1413
    %v1415 = vpop.f32.mrf.mxu0
    %v1416 = vadd.f32 %v1402, %v1415
    %1417 = vdwg.mxu0
    %1418 = vmatpush.bf16.msra.mxu0 %v1189
    %1419 = vmatpush.bf16.msra.mxu0 %v1185
    %1420 = vmatpush.bf16.msra.mxu0 %v1181
    %1421 = vmatpush.bf16.msra.mxu0 %v1177
    %1422 = vmatpush.bf16.msra.mxu0 %v1173
    %1423 = vmatpush.bf16.msra.mxu0 %v1169
    %1424 = vmatpush.bf16.msra.mxu0 %v1165
    %1425 = vmatpush.bf16.msra.mxu0 %v1161
    %1426 = vmatmul.bf16.gmra.mxu0 %v542
    %v1427 = vpop.f32.mrf.mxu0
    %v1428 = vadd.f32 %v1414, %v1427
    %v1429 = vpop.f32.mrf.mxu0
    %v1430 = vadd.f32 %v1416, %v1429
    %1431 = vdwg.mxu0
    %1432 = vmatpush.bf16.msra.mxu0 %v1094
    %1433 = vmatpush.bf16.msra.mxu0 %v1090
    %1434 = vmatpush.bf16.msra.mxu0 %v1086
    %1435 = vmatpush.bf16.msra.mxu0 %v1082
    %1436 = vmatpush.bf16.msra.mxu0 %v1078
    %1437 = vmatpush.bf16.msra.mxu0 %v1074
    %1438 = vmatpush.bf16.msra.mxu0 %v1070
    %1439 = vmatpush.bf16.msra.mxu0 %v1066
    %1440 = vmatmul.bf16.gmra.mxu0 %v539
    %v1441 = vpop.f32.mrf.mxu0
    %v1442 = vadd.f32 %v674, %v1441
    %v1443 = vpop.f32.mrf.mxu0
    %v1444 = vadd.f32 %v674, %v1443
    %1445 = vdwg.mxu0
    %1446 = vmatpush.bf16.msra.mxu0 %v1126
    %1447 = vmatpush.bf16.msra.mxu0 %v1122
    %1448 = vmatpush.bf16.msra.mxu0 %v1118
    %1449 = vmatpush.bf16.msra.mxu0 %v1114
    %1450 = vmatpush.bf16.msra.mxu0 %v1110
    %1451 = vmatpush.bf16.msra.mxu0 %v1106
    %1452 = vmatpush.bf16.msra.mxu0 %v1102
    %1453 = vmatpush.bf16.msra.mxu0 %v1098
    %1454 = vmatmul.bf16.gmra.mxu0 %v540
    %v1455 = vpop.f32.mrf.mxu0
    %v1456 = vadd.f32 %v1442, %v1455
    %v1457 = vpop.f32.mrf.mxu0
    %v1458 = vadd.f32 %v1444, %v1457
    %1459 = vdwg.mxu0
    %1460 = vmatpush.bf16.msra.mxu0 %v1158
    %1461 = vmatpush.bf16.msra.mxu0 %v1154
    %1462 = vmatpush.bf16.msra.mxu0 %v1150
    %1463 = vmatpush.bf16.msra.mxu0 %v1146
    %1464 = vmatpush.bf16.msra.mxu0 %v1142
    %1465 = vmatpush.bf16.msra.mxu0 %v1138
    %1466 = vmatpush.bf16.msra.mxu0 %v1134
    %1467 = vmatpush.bf16.msra.mxu0 %v1130
    %1468 = vmatmul.bf16.gmra.mxu0 %v541
    %v1469 = vpop.f32.mrf.mxu0
    %v1470 = vadd.f32 %v1456, %v1469
    %v1471 = vpop.f32.mrf.mxu0
    %v1472 = vadd.f32 %v1458, %v1471
    %1473 = vdwg.mxu0
    %1474 = vmatpush.bf16.msra.mxu0 %v1190
    %1475 = vmatpush.bf16.msra.mxu0 %v1186
    %1476 = vmatpush.bf16.msra.mxu0 %v1182
    %1477 = vmatpush.bf16.msra.mxu0 %v1178
    %1478 = vmatpush.bf16.msra.mxu0 %v1174
    %1479 = vmatpush.bf16.msra.mxu0 %v1170
    %1480 = vmatpush.bf16.msra.mxu0 %v1166
    %1481 = vmatpush.bf16.msra.mxu0 %v1162
    %1482 = vmatmul.bf16.gmra.mxu0 %v542
    %v1483 = vpop.f32.mrf.mxu0
    %v1484 = vadd.f32 %v1470, %v1483
    %v1485 = vpop.f32.mrf.mxu0
    %v1486 = vadd.f32 %v1472, %v1485
    %1487 = vdwg.mxu0
    %1488 = vmatpush.bf16.msra.mxu0 %v1095
    %1489 = vmatpush.bf16.msra.mxu0 %v1091
    %1490 = vmatpush.bf16.msra.mxu0 %v1087
    %1491 = vmatpush.bf16.msra.mxu0 %v1083
    %1492 = vmatpush.bf16.msra.mxu0 %v1079
    %1493 = vmatpush.bf16.msra.mxu0 %v1075
    %1494 = vmatpush.bf16.msra.mxu0 %v1071
    %1495 = vmatpush.bf16.msra.mxu0 %v1067
    %1496 = vmatmul.bf16.gmra.mxu0 %v539
    %v1497 = vpop.f32.mrf.mxu0
    %v1498 = vadd.f32 %v675, %v1497
    %v1499 = vpop.f32.mrf.mxu0
    %v1500 = vadd.f32 %v675, %v1499
    %1501 = vdwg.mxu0
    %1502 = vmatpush.bf16.msra.mxu0 %v1127
    %1503 = vmatpush.bf16.msra.mxu0 %v1123
    %1504 = vmatpush.bf16.msra.mxu0 %v1119
    %1505 = vmatpush.bf16.msra.mxu0 %v1115
    %1506 = vmatpush.bf16.msra.mxu0 %v1111
    %1507 = vmatpush.bf16.msra.mxu0 %v1107
    %1508 = vmatpush.bf16.msra.mxu0 %v1103
    %1509 = vmatpush.bf16.msra.mxu0 %v1099
    %1510 = vmatmul.bf16.gmra.mxu0 %v540
    %v1511 = vpop.f32.mrf.mxu0
    %v1512 = vadd.f32 %v1498, %v1511
    %v1513 = vpop.f32.mrf.mxu0
    %v1514 = vadd.f32 %v1500, %v1513
    %1515 = vdwg.mxu0
    %1516 = vmatpush.bf16.msra.mxu0 %v1159
    %1517 = vmatpush.bf16.msra.mxu0 %v1155
    %1518 = vmatpush.bf16.msra.mxu0 %v1151
    %1519 = vmatpush.bf16.msra.mxu0 %v1147
    %1520 = vmatpush.bf16.msra.mxu0 %v1143
    %1521 = vmatpush.bf16.msra.mxu0 %v1139
    %1522 = vmatpush.bf16.msra.mxu0 %v1135
    %1523 = vmatpush.bf16.msra.mxu0 %v1131
    %1524 = vmatmul.bf16.gmra.mxu0 %v541
    %v1525 = vpop.f32.mrf.mxu0
    %v1526 = vadd.f32 %v1512, %v1525
    %v1527 = vpop.f32.mrf.mxu0
    %v1528 = vadd.f32 %v1514, %v1527
    %1529 = vdwg.mxu0
    %1530 = vmatpush.bf16.msra.mxu0 %v1191
    %1531 = vmatpush.bf16.msra.mxu0 %v1187
    %1532 = vmatpush.bf16.msra.mxu0 %v1183
    %1533 = vmatpush.bf16.msra.mxu0 %v1179
    %1534 = vmatpush.bf16.msra.mxu0 %v1175
    %1535 = vmatpush.bf16.msra.mxu0 %v1171
    %1536 = vmatpush.bf16.msra.mxu0 %v1167
    %1537 = vmatpush.bf16.msra.mxu0 %v1163
    %1538 = vmatmul.bf16.gmra.mxu0 %v542
    %v1539 = vpop.f32.mrf.mxu0
    %v1540 = vadd.f32 %v1526, %v1539
    %v1541 = vpop.f32.mrf.mxu0
    %v1542 = vadd.f32 %v1528, %v1541
    %1543 = vdwg.mxu0
    %v1544 = vmul.f32 %v1484, 1.442695
    %v1545 = vpow.pop %v1544
    %v1546 = vmul.f32 %v1540, 1.442695
    %v1547 = vpow.pop %v1546
    %v1548 = vmul.f32 %v1486, 1.442695
    %v1549 = vpow.pop %v1548
    %v1550 = vmul.f32 %v1542, 1.442695
    %v1551 = vpow.pop %v1550
    %v1552 = vmul.f32 %v1545, 1.001
    %v1553 = vmul.f32 %v1547, 1.001
    %v1554 = vmul.f32 %v1549, 1.001
    %v1555 = vmul.f32 %v1551, 1.001
    %v1556 = vadd.f32 %v1552, 1e-05
    %v1557 = vadd.f32 %v1553, 1e-05
    %v1558 = vadd.f32 %v1554, 1e-05
    %v1559 = vadd.f32 %v1555, 1e-05
    %v1560 = vld [vmem:[#allocation5] sm:$0xff]
    %v1561 = vld [vmem:[#allocation5 + $0x8] sm:$0xff]
    %v1562 = vld [vmem:[#allocation5 + $0x10] sm:$0xff]
    %v1563 = vld [vmem:[#allocation5 + $0x18] sm:$0xff]
    %v1564 = vmul.f32 %v1556, %v1560
    %v1565 = vmul.f32 %v1557, %v1561
    %v1566 = vmul.f32 %v1558, %v1562
    %v1567 = vmul.f32 %v1559, %v1563
    %v1568 = vadd.f32 %v1372, %v1564
    %v1569 = vadd.f32 %v1428, %v1565
    %v1570 = vadd.f32 %v1374, %v1566
    %v1571 = vadd.f32 %v1430, %v1567
    %v1572 = vpack.c.bf16 %v1570, %v1568
    %v1573 = vpack.c.bf16 %v1571, %v1569
    %v1574 = vld [vmem:[#allocation11] sm:$0xff]
    %v1575 = vld [vmem:[#allocation11 + $0x8] sm:$0xff]
    %v1576 = vld [vmem:[#allocation11 + $0x10] sm:$0xff]
    %v1577 = vld [vmem:[#allocation11 + $0x18] sm:$0xff]
    %v1578 = vld [vmem:[#allocation11 + $0x20] sm:$0xff]
    %v1579 = vld [vmem:[#allocation11 + $0x28] sm:$0xff]
    %v1580 = vld [vmem:[#allocation11 + $0x30] sm:$0xff]
    %v1581 = vld [vmem:[#allocation11 + $0x38] sm:$0xff]
    %v1582 = vld [vmem:[#allocation11 + $0x40] sm:$0xff]
    %v1583 = vld [vmem:[#allocation11 + $0x48] sm:$0xff]
    %v1584 = vld [vmem:[#allocation11 + $0x50] sm:$0xff]
    %v1585 = vld [vmem:[#allocation11 + $0x58] sm:$0xff]
    %v1586 = vld [vmem:[#allocation11 + $0x60] sm:$0xff]
    %v1587 = vld [vmem:[#allocation11 + $0x68] sm:$0xff]
    %v1588 = vld [vmem:[#allocation11 + $0x70] sm:$0xff]
    %v1589 = vld [vmem:[#allocation11 + $0x78] sm:$0xff]
    %v1590 = vld [vmem:[#allocation11 + $0x80] sm:$0xff]
    %v1591 = vld [vmem:[#allocation11 + $0x88] sm:$0xff]
    %v1592 = vld [vmem:[#allocation11 + $0x90] sm:$0xff]
    %v1593 = vld [vmem:[#allocation11 + $0x98] sm:$0xff]
    %v1594 = vld [vmem:[#allocation11 + $0xa0] sm:$0xff]
    %v1595 = vld [vmem:[#allocation11 + $0xa8] sm:$0xff]
    %v1596 = vld [vmem:[#allocation11 + $0xb0] sm:$0xff]
    %v1597 = vld [vmem:[#allocation11 + $0xb8] sm:$0xff]
    %v1598 = vld [vmem:[#allocation11 + $0xc0] sm:$0xff]
    %v1599 = vld [vmem:[#allocation11 + $0xc8] sm:$0xff]
    %v1600 = vld [vmem:[#allocation11 + $0xd0] sm:$0xff]
    %v1601 = vld [vmem:[#allocation11 + $0xd8] sm:$0xff]
    %v1602 = vld [vmem:[#allocation11 + $0xe0] sm:$0xff]
    %v1603 = vld [vmem:[#allocation11 + $0xe8] sm:$0xff]
    %v1604 = vld [vmem:[#allocation11 + $0xf0] sm:$0xff]
    %v1605 = vld [vmem:[#allocation11 + $0xf8] sm:$0xff]
    %v1606 = vld [vmem:[#allocation11 + $0x100] sm:$0xff]
    %v1607 = vld [vmem:[#allocation11 + $0x108] sm:$0xff]
    %v1608 = vld [vmem:[#allocation11 + $0x110] sm:$0xff]
    %v1609 = vld [vmem:[#allocation11 + $0x118] sm:$0xff]
    %v1610 = vld [vmem:[#allocation11 + $0x120] sm:$0xff]
    %v1611 = vld [vmem:[#allocation11 + $0x128] sm:$0xff]
    %v1612 = vld [vmem:[#allocation11 + $0x130] sm:$0xff]
    %v1613 = vld [vmem:[#allocation11 + $0x138] sm:$0xff]
    %v1614 = vld [vmem:[#allocation11 + $0x140] sm:$0xff]
    %v1615 = vld [vmem:[#allocation11 + $0x148] sm:$0xff]
    %v1616 = vld [vmem:[#allocation11 + $0x150] sm:$0xff]
    %v1617 = vld [vmem:[#allocation11 + $0x158] sm:$0xff]
    %v1618 = vld [vmem:[#allocation11 + $0x160] sm:$0xff]
    %v1619 = vld [vmem:[#allocation11 + $0x168] sm:$0xff]
    %v1620 = vld [vmem:[#allocation11 + $0x170] sm:$0xff]
    %v1621 = vld [vmem:[#allocation11 + $0x178] sm:$0xff]
    %v1622 = vld [vmem:[#allocation11 + $0x180] sm:$0xff]
    %v1623 = vld [vmem:[#allocation11 + $0x188] sm:$0xff]
    %v1624 = vld [vmem:[#allocation11 + $0x190] sm:$0xff]
    %v1625 = vld [vmem:[#allocation11 + $0x198] sm:$0xff]
    %v1626 = vld [vmem:[#allocation11 + $0x1a0] sm:$0xff]
    %v1627 = vld [vmem:[#allocation11 + $0x1a8] sm:$0xff]
    %v1628 = vld [vmem:[#allocation11 + $0x1b0] sm:$0xff]
    %v1629 = vld [vmem:[#allocation11 + $0x1b8] sm:$0xff]
    %v1630 = vld [vmem:[#allocation11 + $0x1c0] sm:$0xff]
    %v1631 = vld [vmem:[#allocation11 + $0x1c8] sm:$0xff]
    %v1632 = vld [vmem:[#allocation11 + $0x1d0] sm:$0xff]
    %v1633 = vld [vmem:[#allocation11 + $0x1d8] sm:$0xff]
    %v1634 = vld [vmem:[#allocation11 + $0x1e0] sm:$0xff]
    %v1635 = vld [vmem:[#allocation11 + $0x1e8] sm:$0xff]
    %v1636 = vld [vmem:[#allocation11 + $0x1f0] sm:$0xff]
    %v1637 = vld [vmem:[#allocation11 + $0x1f8] sm:$0xff]
    %v1702 = vunpack.c.l.b16 %v1574
    %v1703 = vunpack.c.h.b16 %v1574
    %v1704 = vunpack.c.l.b16 %v1575
    %v1705 = vunpack.c.h.b16 %v1575
    %v1706 = vunpack.c.l.b16 %v1576
    %v1707 = vunpack.c.h.b16 %v1576
    %v1708 = vunpack.c.l.b16 %v1577
    %v1709 = vunpack.c.h.b16 %v1577
    %v1710 = vunpack.c.l.b16 %v1578
    %v1711 = vunpack.c.h.b16 %v1578
    %v1712 = vunpack.c.l.b16 %v1579
    %v1713 = vunpack.c.h.b16 %v1579
    %v1714 = vunpack.c.l.b16 %v1580
    %v1715 = vunpack.c.h.b16 %v1580
    %v1716 = vunpack.c.l.b16 %v1581
    %v1717 = vunpack.c.h.b16 %v1581
    %v1718 = vunpack.c.l.b16 %v1582
    %v1719 = vunpack.c.h.b16 %v1582
    %v1720 = vunpack.c.l.b16 %v1583
    %v1721 = vunpack.c.h.b16 %v1583
    %v1722 = vunpack.c.l.b16 %v1584
    %v1723 = vunpack.c.h.b16 %v1584
    %v1724 = vunpack.c.l.b16 %v1585
    %v1725 = vunpack.c.h.b16 %v1585
    %v1726 = vunpack.c.l.b16 %v1586
    %v1727 = vunpack.c.h.b16 %v1586
    %v1728 = vunpack.c.l.b16 %v1587
    %v1729 = vunpack.c.h.b16 %v1587
    %v1730 = vunpack.c.l.b16 %v1588
    %v1731 = vunpack.c.h.b16 %v1588
    %v1732 = vunpack.c.l.b16 %v1589
    %v1733 = vunpack.c.h.b16 %v1589
    %v1734 = vunpack.c.l.b16 %v1590
    %v1735 = vunpack.c.h.b16 %v1590
    %v1736 = vunpack.c.l.b16 %v1591
    %v1737 = vunpack.c.h.b16 %v1591
    %v1738 = vunpack.c.l.b16 %v1592
    %v1739 = vunpack.c.h.b16 %v1592
    %v1740 = vunpack.c.l.b16 %v1593
    %v1741 = vunpack.c.h.b16 %v1593
    %v1742 = vunpack.c.l.b16 %v1594
    %v1743 = vunpack.c.h.b16 %v1594
    %v1744 = vunpack.c.l.b16 %v1595
    %v1745 = vunpack.c.h.b16 %v1595
    %v1746 = vunpack.c.l.b16 %v1596
    %v1747 = vunpack.c.h.b16 %v1596
    %v1748 = vunpack.c.l.b16 %v1597
    %v1749 = vunpack.c.h.b16 %v1597
    %v1750 = vunpack.c.l.b16 %v1598
    %v1751 = vunpack.c.h.b16 %v1598
    %v1752 = vunpack.c.l.b16 %v1599
    %v1753 = vunpack.c.h.b16 %v1599
    %v1754 = vunpack.c.l.b16 %v1600
    %v1755 = vunpack.c.h.b16 %v1600
    %v1756 = vunpack.c.l.b16 %v1601
    %v1757 = vunpack.c.h.b16 %v1601
    %v1758 = vunpack.c.l.b16 %v1602
    %v1759 = vunpack.c.h.b16 %v1602
    %v1760 = vunpack.c.l.b16 %v1603
    %v1761 = vunpack.c.h.b16 %v1603
    %v1762 = vunpack.c.l.b16 %v1604
    %v1763 = vunpack.c.h.b16 %v1604
    %v1764 = vunpack.c.l.b16 %v1605
    %v1765 = vunpack.c.h.b16 %v1605
    %v1766 = vunpack.c.l.b16 %v1606
    %v1767 = vunpack.c.h.b16 %v1606
    %v1768 = vunpack.c.l.b16 %v1607
    %v1769 = vunpack.c.h.b16 %v1607
    %v1770 = vunpack.c.l.b16 %v1608
    %v1771 = vunpack.c.h.b16 %v1608
    %v1772 = vunpack.c.l.b16 %v1609
    %v1773 = vunpack.c.h.b16 %v1609
    %v1774 = vunpack.c.l.b16 %v1610
    %v1775 = vunpack.c.h.b16 %v1610
    %v1776 = vunpack.c.l.b16 %v1611
    %v1777 = vunpack.c.h.b16 %v1611
    %v1778 = vunpack.c.l.b16 %v1612
    %v1779 = vunpack.c.h.b16 %v1612
    %v1780 = vunpack.c.l.b16 %v1613
    %v1781 = vunpack.c.h.b16 %v1613
    %v1782 = vunpack.c.l.b16 %v1614
    %v1783 = vunpack.c.h.b16 %v1614
    %v1784 = vunpack.c.l.b16 %v1615
    %v1785 = vunpack.c.h.b16 %v1615
    %v1786 = vunpack.c.l.b16 %v1616
    %v1787 = vunpack.c.h.b16 %v1616
    %v1788 = vunpack.c.l.b16 %v1617
    %v1789 = vunpack.c.h.b16 %v1617
    %v1790 = vunpack.c.l.b16 %v1618
    %v1791 = vunpack.c.h.b16 %v1618
    %v1792 = vunpack.c.l.b16 %v1619
    %v1793 = vunpack.c.h.b16 %v1619
    %v1794 = vunpack.c.l.b16 %v1620
    %v1795 = vunpack.c.h.b16 %v1620
    %v1796 = vunpack.c.l.b16 %v1621
    %v1797 = vunpack.c.h.b16 %v1621
    %v1798 = vunpack.c.l.b16 %v1622
    %v1799 = vunpack.c.h.b16 %v1622
    %v1800 = vunpack.c.l.b16 %v1623
    %v1801 = vunpack.c.h.b16 %v1623
    %v1802 = vunpack.c.l.b16 %v1624
    %v1803 = vunpack.c.h.b16 %v1624
    %v1804 = vunpack.c.l.b16 %v1625
    %v1805 = vunpack.c.h.b16 %v1625
    %v1806 = vunpack.c.l.b16 %v1626
    %v1807 = vunpack.c.h.b16 %v1626
    %v1808 = vunpack.c.l.b16 %v1627
    %v1809 = vunpack.c.h.b16 %v1627
    %v1810 = vunpack.c.l.b16 %v1628
    %v1811 = vunpack.c.h.b16 %v1628
    %v1812 = vunpack.c.l.b16 %v1629
    %v1813 = vunpack.c.h.b16 %v1629
    %v1814 = vunpack.c.l.b16 %v1630
    %v1815 = vunpack.c.h.b16 %v1630
    %v1816 = vunpack.c.l.b16 %v1631
    %v1817 = vunpack.c.h.b16 %v1631
    %v1818 = vunpack.c.l.b16 %v1632
    %v1819 = vunpack.c.h.b16 %v1632
    %v1820 = vunpack.c.l.b16 %v1633
    %v1821 = vunpack.c.h.b16 %v1633
    %v1822 = vunpack.c.l.b16 %v1634
    %v1823 = vunpack.c.h.b16 %v1634
    %v1824 = vunpack.c.l.b16 %v1635
    %v1825 = vunpack.c.h.b16 %v1635
    %v1826 = vunpack.c.l.b16 %v1636
    %v1827 = vunpack.c.h.b16 %v1636
    %v1828 = vunpack.c.l.b16 %v1637
    %v1829 = vunpack.c.h.b16 %v1637
    %v1830 = vpack.c.b16 %v1706, %v1702
    %v1831 = vpack.c.b16 %v1707, %v1703
    %v1832 = vpack.c.b16 %v1708, %v1704
    %v1833 = vpack.c.b16 %v1709, %v1705
    %v1834 = vpack.c.b16 %v1714, %v1710
    %v1835 = vpack.c.b16 %v1715, %v1711
    %v1836 = vpack.c.b16 %v1716, %v1712
    %v1837 = vpack.c.b16 %v1717, %v1713
    %v1838 = vpack.c.b16 %v1722, %v1718
    %v1839 = vpack.c.b16 %v1723, %v1719
    %v1840 = vpack.c.b16 %v1724, %v1720
    %v1841 = vpack.c.b16 %v1725, %v1721
    %v1842 = vpack.c.b16 %v1730, %v1726
    %v1843 = vpack.c.b16 %v1731, %v1727
    %v1844 = vpack.c.b16 %v1732, %v1728
    %v1845 = vpack.c.b16 %v1733, %v1729
    %v1846 = vpack.c.b16 %v1738, %v1734
    %v1847 = vpack.c.b16 %v1739, %v1735
    %v1848 = vpack.c.b16 %v1740, %v1736
    %v1849 = vpack.c.b16 %v1741, %v1737
    %v1850 = vpack.c.b16 %v1746, %v1742
    %v1851 = vpack.c.b16 %v1747, %v1743
    %v1852 = vpack.c.b16 %v1748, %v1744
    %v1853 = vpack.c.b16 %v1749, %v1745
    %v1854 = vpack.c.b16 %v1754, %v1750
    %v1855 = vpack.c.b16 %v1755, %v1751
    %v1856 = vpack.c.b16 %v1756, %v1752
    %v1857 = vpack.c.b16 %v1757, %v1753
    %v1858 = vpack.c.b16 %v1762, %v1758
    %v1859 = vpack.c.b16 %v1763, %v1759
    %v1860 = vpack.c.b16 %v1764, %v1760
    %v1861 = vpack.c.b16 %v1765, %v1761
    %v1862 = vpack.c.b16 %v1770, %v1766
    %v1863 = vpack.c.b16 %v1771, %v1767
    %v1864 = vpack.c.b16 %v1772, %v1768
    %v1865 = vpack.c.b16 %v1773, %v1769
    %v1866 = vpack.c.b16 %v1778, %v1774
    %v1867 = vpack.c.b16 %v1779, %v1775
    %v1868 = vpack.c.b16 %v1780, %v1776
    %v1869 = vpack.c.b16 %v1781, %v1777
    %v1870 = vpack.c.b16 %v1786, %v1782
    %v1871 = vpack.c.b16 %v1787, %v1783
    %v1872 = vpack.c.b16 %v1788, %v1784
    %v1873 = vpack.c.b16 %v1789, %v1785
    %v1874 = vpack.c.b16 %v1794, %v1790
    %v1875 = vpack.c.b16 %v1795, %v1791
    %v1876 = vpack.c.b16 %v1796, %v1792
    %v1877 = vpack.c.b16 %v1797, %v1793
    %v1878 = vpack.c.b16 %v1802, %v1798
    %v1879 = vpack.c.b16 %v1803, %v1799
    %v1880 = vpack.c.b16 %v1804, %v1800
    %v1881 = vpack.c.b16 %v1805, %v1801
    %v1882 = vpack.c.b16 %v1810, %v1806
    %v1883 = vpack.c.b16 %v1811, %v1807
    %v1884 = vpack.c.b16 %v1812, %v1808
    %v1885 = vpack.c.b16 %v1813, %v1809
    %v1886 = vpack.c.b16 %v1818, %v1814
    %v1887 = vpack.c.b16 %v1819, %v1815
    %v1888 = vpack.c.b16 %v1820, %v1816
    %v1889 = vpack.c.b16 %v1821, %v1817
    %v1890 = vpack.c.b16 %v1826, %v1822
    %v1891 = vpack.c.b16 %v1827, %v1823
    %v1892 = vpack.c.b16 %v1828, %v1824
    %v1893 = vpack.c.b16 %v1829, %v1825
    %1958 = vmatpush.bf16.msra.mxu0 %v1858
    %1959 = vmatpush.bf16.msra.mxu0 %v1854
    %1960 = vmatpush.bf16.msra.mxu0 %v1850
    %1961 = vmatpush.bf16.msra.mxu0 %v1846
    %1962 = vmatpush.bf16.msra.mxu0 %v1842
    %1963 = vmatpush.bf16.msra.mxu0 %v1838
    %1964 = vmatpush.bf16.msra.mxu0 %v1834
    %1965 = vmatpush.bf16.msra.mxu0 %v1830
    %1966 = vmatmul.bf16.gmra.mxu0 %v1572
    %v1967 = vpop.f32.mrf.mxu0
    %v1968 = vadd.f32 0.0, %v1967
    %v1969 = vpop.f32.mrf.mxu0
    %v1970 = vadd.f32 0.0, %v1969
    %1971 = vdwg.mxu0
    %1972 = vmatpush.bf16.msra.mxu0 %v1890
    %1973 = vmatpush.bf16.msra.mxu0 %v1886
    %1974 = vmatpush.bf16.msra.mxu0 %v1882
    %1975 = vmatpush.bf16.msra.mxu0 %v1878
    %1976 = vmatpush.bf16.msra.mxu0 %v1874
    %1977 = vmatpush.bf16.msra.mxu0 %v1870
    %1978 = vmatpush.bf16.msra.mxu0 %v1866
    %1979 = vmatpush.bf16.msra.mxu0 %v1862
    %1980 = vmatmul.bf16.gmra.mxu0 %v1573
    %v1981 = vpop.f32.mrf.mxu0
    %v1982 = vadd.f32 %v1968, %v1981
    %v1983 = vpop.f32.mrf.mxu0
    %v1984 = vadd.f32 %v1970, %v1983
    %1985 = vdwg.mxu0
    %1986 = vmatpush.bf16.msra.mxu0 %v1859
    %1987 = vmatpush.bf16.msra.mxu0 %v1855
    %1988 = vmatpush.bf16.msra.mxu0 %v1851
    %1989 = vmatpush.bf16.msra.mxu0 %v1847
    %1990 = vmatpush.bf16.msra.mxu0 %v1843
    %1991 = vmatpush.bf16.msra.mxu0 %v1839
    %1992 = vmatpush.bf16.msra.mxu0 %v1835
    %1993 = vmatpush.bf16.msra.mxu0 %v1831
    %1994 = vmatmul.bf16.gmra.mxu0 %v1572
    %v1995 = vpop.f32.mrf.mxu0
    %v1996 = vadd.f32 0.0, %v1995
    %v1997 = vpop.f32.mrf.mxu0
    %v1998 = vadd.f32 0.0, %v1997
    %1999 = vdwg.mxu0
    %2000 = vmatpush.bf16.msra.mxu0 %v1891
    %2001 = vmatpush.bf16.msra.mxu0 %v1887
    %2002 = vmatpush.bf16.msra.mxu0 %v1883
    %2003 = vmatpush.bf16.msra.mxu0 %v1879
    %2004 = vmatpush.bf16.msra.mxu0 %v1875
    %2005 = vmatpush.bf16.msra.mxu0 %v1871
    %2006 = vmatpush.bf16.msra.mxu0 %v1867
    %2007 = vmatpush.bf16.msra.mxu0 %v1863
    %2008 = vmatmul.bf16.gmra.mxu0 %v1573
    %v2009 = vpop.f32.mrf.mxu0
    %v2010 = vadd.f32 %v1996, %v2009
    %v2011 = vpop.f32.mrf.mxu0
    %v2012 = vadd.f32 %v1998, %v2011
    %2013 = vdwg.mxu0
    %2014 = vmatpush.bf16.msra.mxu0 %v1860
    %2015 = vmatpush.bf16.msra.mxu0 %v1856
    %2016 = vmatpush.bf16.msra.mxu0 %v1852
    %2017 = vmatpush.bf16.msra.mxu0 %v1848
    %2018 = vmatpush.bf16.msra.mxu0 %v1844
    %2019 = vmatpush.bf16.msra.mxu0 %v1840
    %2020 = vmatpush.bf16.msra.mxu0 %v1836
    %2021 = vmatpush.bf16.msra.mxu0 %v1832
    %2022 = vmatmul.bf16.gmra.mxu0 %v1572
    %v2023 = vpop.f32.mrf.mxu0
    %v2024 = vadd.f32 0.0, %v2023
    %v2025 = vpop.f32.mrf.mxu0
    %v2026 = vadd.f32 0.0, %v2025
    %2027 = vdwg.mxu0
    %2028 = vmatpush.bf16.msra.mxu0 %v1892
    %2029 = vmatpush.bf16.msra.mxu0 %v1888
    %2030 = vmatpush.bf16.msra.mxu0 %v1884
    %2031 = vmatpush.bf16.msra.mxu0 %v1880
    %2032 = vmatpush.bf16.msra.mxu0 %v1876
    %2033 = vmatpush.bf16.msra.mxu0 %v1872
    %2034 = vmatpush.bf16.msra.mxu0 %v1868
    %2035 = vmatpush.bf16.msra.mxu0 %v1864
    %2036 = vmatmul.bf16.gmra.mxu0 %v1573
    %v2037 = vpop.f32.mrf.mxu0
    %v2038 = vadd.f32 %v2024, %v2037
    %v2039 = vpop.f32.mrf.mxu0
    %v2040 = vadd.f32 %v2026, %v2039
    %2041 = vdwg.mxu0
    %2042 = vmatpush.bf16.msra.mxu0 %v1861
    %2043 = vmatpush.bf16.msra.mxu0 %v1857
    %2044 = vmatpush.bf16.msra.mxu0 %v1853
    %2045 = vmatpush.bf16.msra.mxu0 %v1849
    %2046 = vmatpush.bf16.msra.mxu0 %v1845
    %2047 = vmatpush.bf16.msra.mxu0 %v1841
    %2048 = vmatpush.bf16.msra.mxu0 %v1837
    %2049 = vmatpush.bf16.msra.mxu0 %v1833
    %2050 = vmatmul.bf16.gmra.mxu0 %v1572
    %v2051 = vpop.f32.mrf.mxu0
    %v2052 = vadd.f32 0.0, %v2051
    %v2053 = vpop.f32.mrf.mxu0
    %v2054 = vadd.f32 0.0, %v2053
    %2055 = vdwg.mxu0
    %2056 = vmatpush.bf16.msra.mxu0 %v1893
    %2057 = vmatpush.bf16.msra.mxu0 %v1889
    %2058 = vmatpush.bf16.msra.mxu0 %v1885
    %2059 = vmatpush.bf16.msra.mxu0 %v1881
    %2060 = vmatpush.bf16.msra.mxu0 %v1877
    %2061 = vmatpush.bf16.msra.mxu0 %v1873
    %2062 = vmatpush.bf16.msra.mxu0 %v1869
    %2063 = vmatpush.bf16.msra.mxu0 %v1865
    %2064 = vmatmul.bf16.gmra.mxu0 %v1573
    %v2065 = vpop.f32.mrf.mxu0
    %v2066 = vadd.f32 %v2052, %v2065
    %v2067 = vpop.f32.mrf.mxu0
    %v2068 = vadd.f32 %v2054, %v2067
    %2069 = vdwg.mxu0
    %v2070 = vadd.f32 %v330, %v1982
    %v2071 = vadd.f32 %v344, %v2010
    %v2072 = vadd.f32 %v358, %v2038
    %v2073 = vadd.f32 %v372, %v2066
    %v2074 = vadd.f32 %v332, %v1984
    %v2075 = vadd.f32 %v346, %v2012
    %v2076 = vadd.f32 %v360, %v2040
    %v2077 = vadd.f32 %v374, %v2068
    %v2079 = vperm.slane %v384, 0
    %v2080 = vperm.slane %v384, 1
    %v2081 = vperm.slane %v384, 2
    %v2082 = vperm.slane %v384, 3
    %v2087 = vadd.f32 %v2070, %v2079
    %v2088 = vadd.f32 %v2071, %v2080
    %v2089 = vadd.f32 %v2072, %v2081
    %v2090 = vadd.f32 %v2073, %v2082
    %v2091 = vadd.f32 %v2074, %v2079
    %v2092 = vadd.f32 %v2075, %v2080
    %v2093 = vadd.f32 %v2076, %v2081
    %v2094 = vadd.f32 %v2077, %v2082
    %vm2095 = vcmp.gt.f32.partialorder %v2087, 0.0
    %vm2096 = vcmp.gt.f32.partialorder %v2088, 0.0
    %vm2097 = vcmp.gt.f32.partialorder %v2089, 0.0
    %vm2098 = vcmp.gt.f32.partialorder %v2090, 0.0
    %vm2099 = vcmp.gt.f32.partialorder %v2091, 0.0
    %vm2100 = vcmp.gt.f32.partialorder %v2092, 0.0
    %vm2101 = vcmp.gt.f32.partialorder %v2093, 0.0
    %vm2102 = vcmp.gt.f32.partialorder %v2094, 0.0
    %v2103 = vmul.f32 %v2087, 0.01
    %v2104 = vmul.f32 %v2088, 0.01
    %v2105 = vmul.f32 %v2089, 0.01
    %v2106 = vmul.f32 %v2090, 0.01
    %v2107 = vmul.f32 %v2091, 0.01
    %v2108 = vmul.f32 %v2092, 0.01
    %v2109 = vmul.f32 %v2093, 0.01
    %v2110 = vmul.f32 %v2094, 0.01
    %v2111 = vsel %vm2095, %v2087, %v2103
    %v2112 = vsel %vm2096, %v2088, %v2104
    %v2113 = vsel %vm2097, %v2089, %v2105
    %v2114 = vsel %vm2098, %v2090, %v2106
    %v2115 = vsel %vm2099, %v2091, %v2107
    %v2116 = vsel %vm2100, %v2092, %v2108
    %v2117 = vsel %vm2101, %v2093, %v2109
    %v2118 = vsel %vm2102, %v2094, %v2110
    %v2119 = vpack.c.bf16 %v2115, %v2111
    %v2120 = vpack.c.bf16 %v2116, %v2112
    %v2121 = vpack.c.bf16 %v2117, %v2113
    %v2122 = vpack.c.bf16 %v2118, %v2114
    %v2123 = vld [vmem:[#allocation13] sm:$0xff]
    %v2124 = vld [vmem:[#allocation13 + $0x8] sm:$0xff]
    %v2125 = vld [vmem:[#allocation13 + $0x10] sm:$0xff]
    %v2126 = vld [vmem:[#allocation13 + $0x18] sm:$0xff]
    %v2127 = vld [vmem:[#allocation13 + $0x20] sm:$0xff]
    %v2128 = vld [vmem:[#allocation13 + $0x28] sm:$0xff]
    %v2129 = vld [vmem:[#allocation13 + $0x30] sm:$0xff]
    %v2130 = vld [vmem:[#allocation13 + $0x38] sm:$0xff]
    %v2131 = vld [vmem:[#allocation13 + $0x40] sm:$0xff]
    %v2132 = vld [vmem:[#allocation13 + $0x48] sm:$0xff]
    %v2133 = vld [vmem:[#allocation13 + $0x50] sm:$0xff]
    %v2134 = vld [vmem:[#allocation13 + $0x58] sm:$0xff]
    %v2135 = vld [vmem:[#allocation13 + $0x60] sm:$0xff]
    %v2136 = vld [vmem:[#allocation13 + $0x68] sm:$0xff]
    %v2137 = vld [vmem:[#allocation13 + $0x70] sm:$0xff]
    %v2138 = vld [vmem:[#allocation13 + $0x78] sm:$0xff]
    %v2139 = vld [vmem:[#allocation13 + $0x80] sm:$0xff]
    %v2140 = vld [vmem:[#allocation13 + $0x88] sm:$0xff]
    %v2141 = vld [vmem:[#allocation13 + $0x90] sm:$0xff]
    %v2142 = vld [vmem:[#allocation13 + $0x98] sm:$0xff]
    %v2143 = vld [vmem:[#allocation13 + $0xa0] sm:$0xff]
    %v2144 = vld [vmem:[#allocation13 + $0xa8] sm:$0xff]
    %v2145 = vld [vmem:[#allocation13 + $0xb0] sm:$0xff]
    %v2146 = vld [vmem:[#allocation13 + $0xb8] sm:$0xff]
    %v2147 = vld [vmem:[#allocation13 + $0xc0] sm:$0xff]
    %v2148 = vld [vmem:[#allocation13 + $0xc8] sm:$0xff]
    %v2149 = vld [vmem:[#allocation13 + $0xd0] sm:$0xff]
    %v2150 = vld [vmem:[#allocation13 + $0xd8] sm:$0xff]
    %v2151 = vld [vmem:[#allocation13 + $0xe0] sm:$0xff]
    %v2152 = vld [vmem:[#allocation13 + $0xe8] sm:$0xff]
    %v2153 = vld [vmem:[#allocation13 + $0xf0] sm:$0xff]
    %v2154 = vld [vmem:[#allocation13 + $0xf8] sm:$0xff]
    %v2155 = vld [vmem:[#allocation13 + $0x100] sm:$0xff]
    %v2156 = vld [vmem:[#allocation13 + $0x108] sm:$0xff]
    %v2157 = vld [vmem:[#allocation13 + $0x110] sm:$0xff]
    %v2158 = vld [vmem:[#allocation13 + $0x118] sm:$0xff]
    %v2159 = vld [vmem:[#allocation13 + $0x120] sm:$0xff]
    %v2160 = vld [vmem:[#allocation13 + $0x128] sm:$0xff]
    %v2161 = vld [vmem:[#allocation13 + $0x130] sm:$0xff]
    %v2162 = vld [vmem:[#allocation13 + $0x138] sm:$0xff]
    %v2163 = vld [vmem:[#allocation13 + $0x140] sm:$0xff]
    %v2164 = vld [vmem:[#allocation13 + $0x148] sm:$0xff]
    %v2165 = vld [vmem:[#allocation13 + $0x150] sm:$0xff]
    %v2166 = vld [vmem:[#allocation13 + $0x158] sm:$0xff]
    %v2167 = vld [vmem:[#allocation13 + $0x160] sm:$0xff]
    %v2168 = vld [vmem:[#allocation13 + $0x168] sm:$0xff]
    %v2169 = vld [vmem:[#allocation13 + $0x170] sm:$0xff]
    %v2170 = vld [vmem:[#allocation13 + $0x178] sm:$0xff]
    %v2171 = vld [vmem:[#allocation13 + $0x180] sm:$0xff]
    %v2172 = vld [vmem:[#allocation13 + $0x188] sm:$0xff]
    %v2173 = vld [vmem:[#allocation13 + $0x190] sm:$0xff]
    %v2174 = vld [vmem:[#allocation13 + $0x198] sm:$0xff]
    %v2175 = vld [vmem:[#allocation13 + $0x1a0] sm:$0xff]
    %v2176 = vld [vmem:[#allocation13 + $0x1a8] sm:$0xff]
    %v2177 = vld [vmem:[#allocation13 + $0x1b0] sm:$0xff]
    %v2178 = vld [vmem:[#allocation13 + $0x1b8] sm:$0xff]
    %v2179 = vld [vmem:[#allocation13 + $0x1c0] sm:$0xff]
    %v2180 = vld [vmem:[#allocation13 + $0x1c8] sm:$0xff]
    %v2181 = vld [vmem:[#allocation13 + $0x1d0] sm:$0xff]
    %v2182 = vld [vmem:[#allocation13 + $0x1d8] sm:$0xff]
    %v2183 = vld [vmem:[#allocation13 + $0x1e0] sm:$0xff]
    %v2184 = vld [vmem:[#allocation13 + $0x1e8] sm:$0xff]
    %v2185 = vld [vmem:[#allocation13 + $0x1f0] sm:$0xff]
    %v2186 = vld [vmem:[#allocation13 + $0x1f8] sm:$0xff]
    %v2187 = vld [vmem:[#allocation13 + $0x200] sm:$0xff]
    %v2188 = vld [vmem:[#allocation13 + $0x208] sm:$0xff]
    %v2189 = vld [vmem:[#allocation13 + $0x210] sm:$0xff]
    %v2190 = vld [vmem:[#allocation13 + $0x218] sm:$0xff]
    %v2191 = vld [vmem:[#allocation13 + $0x220] sm:$0xff]
    %v2192 = vld [vmem:[#allocation13 + $0x228] sm:$0xff]
    %v2193 = vld [vmem:[#allocation13 + $0x230] sm:$0xff]
    %v2194 = vld [vmem:[#allocation13 + $0x238] sm:$0xff]
    %v2195 = vld [vmem:[#allocation13 + $0x240] sm:$0xff]
    %v2196 = vld [vmem:[#allocation13 + $0x248] sm:$0xff]
    %v2197 = vld [vmem:[#allocation13 + $0x250] sm:$0xff]
    %v2198 = vld [vmem:[#allocation13 + $0x258] sm:$0xff]
    %v2199 = vld [vmem:[#allocation13 + $0x260] sm:$0xff]
    %v2200 = vld [vmem:[#allocation13 + $0x268] sm:$0xff]
    %v2201 = vld [vmem:[#allocation13 + $0x270] sm:$0xff]
    %v2202 = vld [vmem:[#allocation13 + $0x278] sm:$0xff]
    %v2203 = vld [vmem:[#allocation13 + $0x280] sm:$0xff]
    %v2204 = vld [vmem:[#allocation13 + $0x288] sm:$0xff]
    %v2205 = vld [vmem:[#allocation13 + $0x290] sm:$0xff]
    %v2206 = vld [vmem:[#allocation13 + $0x298] sm:$0xff]
    %v2207 = vld [vmem:[#allocation13 + $0x2a0] sm:$0xff]
    %v2208 = vld [vmem:[#allocation13 + $0x2a8] sm:$0xff]
    %v2209 = vld [vmem:[#allocation13 + $0x2b0] sm:$0xff]
    %v2210 = vld [vmem:[#allocation13 + $0x2b8] sm:$0xff]
    %v2211 = vld [vmem:[#allocation13 + $0x2c0] sm:$0xff]
    %v2212 = vld [vmem:[#allocation13 + $0x2c8] sm:$0xff]
    %v2213 = vld [vmem:[#allocation13 + $0x2d0] sm:$0xff]
    %v2214 = vld [vmem:[#allocation13 + $0x2d8] sm:$0xff]
    %v2215 = vld [vmem:[#allocation13 + $0x2e0] sm:$0xff]
    %v2216 = vld [vmem:[#allocation13 + $0x2e8] sm:$0xff]
    %v2217 = vld [vmem:[#allocation13 + $0x2f0] sm:$0xff]
    %v2218 = vld [vmem:[#allocation13 + $0x2f8] sm:$0xff]
    %v2219 = vld [vmem:[#allocation13 + $0x300] sm:$0xff]
    %v2220 = vld [vmem:[#allocation13 + $0x308] sm:$0xff]
    %v2221 = vld [vmem:[#allocation13 + $0x310] sm:$0xff]
    %v2222 = vld [vmem:[#allocation13 + $0x318] sm:$0xff]
    %v2223 = vld [vmem:[#allocation13 + $0x320] sm:$0xff]
    %v2224 = vld [vmem:[#allocation13 + $0x328] sm:$0xff]
    %v2225 = vld [vmem:[#allocation13 + $0x330] sm:$0xff]
    %v2226 = vld [vmem:[#allocation13 + $0x338] sm:$0xff]
    %v2227 = vld [vmem:[#allocation13 + $0x340] sm:$0xff]
    %v2228 = vld [vmem:[#allocation13 + $0x348] sm:$0xff]
    %v2229 = vld [vmem:[#allocation13 + $0x350] sm:$0xff]
    %v2230 = vld [vmem:[#allocation13 + $0x358] sm:$0xff]
    %v2231 = vld [vmem:[#allocation13 + $0x360] sm:$0xff]
    %v2232 = vld [vmem:[#allocation13 + $0x368] sm:$0xff]
    %v2233 = vld [vmem:[#allocation13 + $0x370] sm:$0xff]
    %v2234 = vld [vmem:[#allocation13 + $0x378] sm:$0xff]
    %v2235 = vld [vmem:[#allocation13 + $0x380] sm:$0xff]
    %v2236 = vld [vmem:[#allocation13 + $0x388] sm:$0xff]
    %v2237 = vld [vmem:[#allocation13 + $0x390] sm:$0xff]
    %v2238 = vld [vmem:[#allocation13 + $0x398] sm:$0xff]
    %v2239 = vld [vmem:[#allocation13 + $0x3a0] sm:$0xff]
    %v2240 = vld [vmem:[#allocation13 + $0x3a8] sm:$0xff]
    %v2241 = vld [vmem:[#allocation13 + $0x3b0] sm:$0xff]
    %v2242 = vld [vmem:[#allocation13 + $0x3b8] sm:$0xff]
    %v2243 = vld [vmem:[#allocation13 + $0x3c0] sm:$0xff]
    %v2244 = vld [vmem:[#allocation13 + $0x3c8] sm:$0xff]
    %v2245 = vld [vmem:[#allocation13 + $0x3d0] sm:$0xff]
    %v2246 = vld [vmem:[#allocation13 + $0x3d8] sm:$0xff]
    %v2247 = vld [vmem:[#allocation13 + $0x3e0] sm:$0xff]
    %v2248 = vld [vmem:[#allocation13 + $0x3e8] sm:$0xff]
    %v2249 = vld [vmem:[#allocation13 + $0x3f0] sm:$0xff]
    %v2250 = vld [vmem:[#allocation13 + $0x3f8] sm:$0xff]
    %v2252 = vperm.slane %v386, 0
    %v2253 = vperm.slane %v386, 1
    %v2254 = vperm.slane %v386, 2
    %v2255 = vperm.slane %v386, 3
    %v2388 = vunpack.c.l.b16 %v2123
    %v2389 = vunpack.c.h.b16 %v2123
    %v2390 = vunpack.c.l.b16 %v2124
    %v2391 = vunpack.c.h.b16 %v2124
    %v2392 = vunpack.c.l.b16 %v2125
    %v2393 = vunpack.c.h.b16 %v2125
    %v2394 = vunpack.c.l.b16 %v2126
    %v2395 = vunpack.c.h.b16 %v2126
    %v2396 = vunpack.c.l.b16 %v2127
    %v2397 = vunpack.c.h.b16 %v2127
    %v2398 = vunpack.c.l.b16 %v2128
    %v2399 = vunpack.c.h.b16 %v2128
    %v2400 = vunpack.c.l.b16 %v2129
    %v2401 = vunpack.c.h.b16 %v2129
    %v2402 = vunpack.c.l.b16 %v2130
    %v2403 = vunpack.c.h.b16 %v2130
    %v2404 = vunpack.c.l.b16 %v2131
    %v2405 = vunpack.c.h.b16 %v2131
    %v2406 = vunpack.c.l.b16 %v2132
    %v2407 = vunpack.c.h.b16 %v2132
    %v2408 = vunpack.c.l.b16 %v2133
    %v2409 = vunpack.c.h.b16 %v2133
    %v2410 = vunpack.c.l.b16 %v2134
    %v2411 = vunpack.c.h.b16 %v2134
    %v2412 = vunpack.c.l.b16 %v2135
    %v2413 = vunpack.c.h.b16 %v2135
    %v2414 = vunpack.c.l.b16 %v2136
    %v2415 = vunpack.c.h.b16 %v2136
    %v2416 = vunpack.c.l.b16 %v2137
    %v2417 = vunpack.c.h.b16 %v2137
    %v2418 = vunpack.c.l.b16 %v2138
    %v2419 = vunpack.c.h.b16 %v2138
    %v2420 = vunpack.c.l.b16 %v2139
    %v2421 = vunpack.c.h.b16 %v2139
    %v2422 = vunpack.c.l.b16 %v2140
    %v2423 = vunpack.c.h.b16 %v2140
    %v2424 = vunpack.c.l.b16 %v2141
    %v2425 = vunpack.c.h.b16 %v2141
    %v2426 = vunpack.c.l.b16 %v2142
    %v2427 = vunpack.c.h.b16 %v2142
    %v2428 = vunpack.c.l.b16 %v2143
    %v2429 = vunpack.c.h.b16 %v2143
    %v2430 = vunpack.c.l.b16 %v2144
    %v2431 = vunpack.c.h.b16 %v2144
    %v2432 = vunpack.c.l.b16 %v2145
    %v2433 = vunpack.c.h.b16 %v2145
    %v2434 = vunpack.c.l.b16 %v2146
    %v2435 = vunpack.c.h.b16 %v2146
    %v2436 = vunpack.c.l.b16 %v2147
    %v2437 = vunpack.c.h.b16 %v2147
    %v2438 = vunpack.c.l.b16 %v2148
    %v2439 = vunpack.c.h.b16 %v2148
    %v2440 = vunpack.c.l.b16 %v2149
    %v2441 = vunpack.c.h.b16 %v2149
    %v2442 = vunpack.c.l.b16 %v2150
    %v2443 = vunpack.c.h.b16 %v2150
    %v2444 = vunpack.c.l.b16 %v2151
    %v2445 = vunpack.c.h.b16 %v2151
    %v2446 = vunpack.c.l.b16 %v2152
    %v2447 = vunpack.c.h.b16 %v2152
    %v2448 = vunpack.c.l.b16 %v2153
    %v2449 = vunpack.c.h.b16 %v2153
    %v2450 = vunpack.c.l.b16 %v2154
    %v2451 = vunpack.c.h.b16 %v2154
    %v2452 = vunpack.c.l.b16 %v2155
    %v2453 = vunpack.c.h.b16 %v2155
    %v2454 = vunpack.c.l.b16 %v2156
    %v2455 = vunpack.c.h.b16 %v2156
    %v2456 = vunpack.c.l.b16 %v2157
    %v2457 = vunpack.c.h.b16 %v2157
    %v2458 = vunpack.c.l.b16 %v2158
    %v2459 = vunpack.c.h.b16 %v2158
    %v2460 = vunpack.c.l.b16 %v2159
    %v2461 = vunpack.c.h.b16 %v2159
    %v2462 = vunpack.c.l.b16 %v2160
    %v2463 = vunpack.c.h.b16 %v2160
    %v2464 = vunpack.c.l.b16 %v2161
    %v2465 = vunpack.c.h.b16 %v2161
    %v2466 = vunpack.c.l.b16 %v2162
    %v2467 = vunpack.c.h.b16 %v2162
    %v2468 = vunpack.c.l.b16 %v2163
    %v2469 = vunpack.c.h.b16 %v2163
    %v2470 = vunpack.c.l.b16 %v2164
    %v2471 = vunpack.c.h.b16 %v2164
    %v2472 = vunpack.c.l.b16 %v2165
    %v2473 = vunpack.c.h.b16 %v2165
    %v2474 = vunpack.c.l.b16 %v2166
    %v2475 = vunpack.c.h.b16 %v2166
    %v2476 = vunpack.c.l.b16 %v2167
    %v2477 = vunpack.c.h.b16 %v2167
    %v2478 = vunpack.c.l.b16 %v2168
    %v2479 = vunpack.c.h.b16 %v2168
    %v2480 = vunpack.c.l.b16 %v2169
    %v2481 = vunpack.c.h.b16 %v2169
    %v2482 = vunpack.c.l.b16 %v2170
    %v2483 = vunpack.c.h.b16 %v2170
    %v2484 = vunpack.c.l.b16 %v2171
    %v2485 = vunpack.c.h.b16 %v2171
    %v2486 = vunpack.c.l.b16 %v2172
    %v2487 = vunpack.c.h.b16 %v2172
    %v2488 = vunpack.c.l.b16 %v2173
    %v2489 = vunpack.c.h.b16 %v2173
    %v2490 = vunpack.c.l.b16 %v2174
    %v2491 = vunpack.c.h.b16 %v2174
    %v2492 = vunpack.c.l.b16 %v2175
    %v2493 = vunpack.c.h.b16 %v2175
    %v2494 = vunpack.c.l.b16 %v2176
    %v2495 = vunpack.c.h.b16 %v2176
    %v2496 = vunpack.c.l.b16 %v2177
    %v2497 = vunpack.c.h.b16 %v2177
    %v2498 = vunpack.c.l.b16 %v2178
    %v2499 = vunpack.c.h.b16 %v2178
    %v2500 = vunpack.c.l.b16 %v2179
    %v2501 = vunpack.c.h.b16 %v2179
    %v2502 = vunpack.c.l.b16 %v2180
    %v2503 = vunpack.c.h.b16 %v2180
    %v2504 = vunpack.c.l.b16 %v2181
    %v2505 = vunpack.c.h.b16 %v2181
    %v2506 = vunpack.c.l.b16 %v2182
    %v2507 = vunpack.c.h.b16 %v2182
    %v2508 = vunpack.c.l.b16 %v2183
    %v2509 = vunpack.c.h.b16 %v2183
    %v2510 = vunpack.c.l.b16 %v2184
    %v2511 = vunpack.c.h.b16 %v2184
    %v2512 = vunpack.c.l.b16 %v2185
    %v2513 = vunpack.c.h.b16 %v2185
    %v2514 = vunpack.c.l.b16 %v2186
    %v2515 = vunpack.c.h.b16 %v2186
    %v2516 = vunpack.c.l.b16 %v2187
    %v2517 = vunpack.c.h.b16 %v2187
    %v2518 = vunpack.c.l.b16 %v2188
    %v2519 = vunpack.c.h.b16 %v2188
    %v2520 = vunpack.c.l.b16 %v2189
    %v2521 = vunpack.c.h.b16 %v2189
    %v2522 = vunpack.c.l.b16 %v2190
    %v2523 = vunpack.c.h.b16 %v2190
    %v2524 = vunpack.c.l.b16 %v2191
    %v2525 = vunpack.c.h.b16 %v2191
    %v2526 = vunpack.c.l.b16 %v2192
    %v2527 = vunpack.c.h.b16 %v2192
    %v2528 = vunpack.c.l.b16 %v2193
    %v2529 = vunpack.c.h.b16 %v2193
    %v2530 = vunpack.c.l.b16 %v2194
    %v2531 = vunpack.c.h.b16 %v2194
    %v2532 = vunpack.c.l.b16 %v2195
    %v2533 = vunpack.c.h.b16 %v2195
    %v2534 = vunpack.c.l.b16 %v2196
    %v2535 = vunpack.c.h.b16 %v2196
    %v2536 = vunpack.c.l.b16 %v2197
    %v2537 = vunpack.c.h.b16 %v2197
    %v2538 = vunpack.c.l.b16 %v2198
    %v2539 = vunpack.c.h.b16 %v2198
    %v2540 = vunpack.c.l.b16 %v2199
    %v2541 = vunpack.c.h.b16 %v2199
    %v2542 = vunpack.c.l.b16 %v2200
    %v2543 = vunpack.c.h.b16 %v2200
    %v2544 = vunpack.c.l.b16 %v2201
    %v2545 = vunpack.c.h.b16 %v2201
    %v2546 = vunpack.c.l.b16 %v2202
    %v2547 = vunpack.c.h.b16 %v2202
    %v2548 = vunpack.c.l.b16 %v2203
    %v2549 = vunpack.c.h.b16 %v2203
    %v2550 = vunpack.c.l.b16 %v2204
    %v2551 = vunpack.c.h.b16 %v2204
    %v2552 = vunpack.c.l.b16 %v2205
    %v2553 = vunpack.c.h.b16 %v2205
    %v2554 = vunpack.c.l.b16 %v2206
    %v2555 = vunpack.c.h.b16 %v2206
    %v2556 = vunpack.c.l.b16 %v2207
    %v2557 = vunpack.c.h.b16 %v2207
    %v2558 = vunpack.c.l.b16 %v2208
    %v2559 = vunpack.c.h.b16 %v2208
    %v2560 = vunpack.c.l.b16 %v2209
    %v2561 = vunpack.c.h.b16 %v2209
    %v2562 = vunpack.c.l.b16 %v2210
    %v2563 = vunpack.c.h.b16 %v2210
    %v2564 = vunpack.c.l.b16 %v2211
    %v2565 = vunpack.c.h.b16 %v2211
    %v2566 = vunpack.c.l.b16 %v2212
    %v2567 = vunpack.c.h.b16 %v2212
    %v2568 = vunpack.c.l.b16 %v2213
    %v2569 = vunpack.c.h.b16 %v2213
    %v2570 = vunpack.c.l.b16 %v2214
    %v2571 = vunpack.c.h.b16 %v2214
    %v2572 = vunpack.c.l.b16 %v2215
    %v2573 = vunpack.c.h.b16 %v2215
    %v2574 = vunpack.c.l.b16 %v2216
    %v2575 = vunpack.c.h.b16 %v2216
    %v2576 = vunpack.c.l.b16 %v2217
    %v2577 = vunpack.c.h.b16 %v2217
    %v2578 = vunpack.c.l.b16 %v2218
    %v2579 = vunpack.c.h.b16 %v2218
    %v2580 = vunpack.c.l.b16 %v2219
    %v2581 = vunpack.c.h.b16 %v2219
    %v2582 = vunpack.c.l.b16 %v2220
    %v2583 = vunpack.c.h.b16 %v2220
    %v2584 = vunpack.c.l.b16 %v2221
    %v2585 = vunpack.c.h.b16 %v2221
    %v2586 = vunpack.c.l.b16 %v2222
    %v2587 = vunpack.c.h.b16 %v2222
    %v2588 = vunpack.c.l.b16 %v2223
    %v2589 = vunpack.c.h.b16 %v2223
    %v2590 = vunpack.c.l.b16 %v2224
    %v2591 = vunpack.c.h.b16 %v2224
    %v2592 = vunpack.c.l.b16 %v2225
    %v2593 = vunpack.c.h.b16 %v2225
    %v2594 = vunpack.c.l.b16 %v2226
    %v2595 = vunpack.c.h.b16 %v2226
    %v2596 = vunpack.c.l.b16 %v2227
    %v2597 = vunpack.c.h.b16 %v2227
    %v2598 = vunpack.c.l.b16 %v2228
    %v2599 = vunpack.c.h.b16 %v2228
    %v2600 = vunpack.c.l.b16 %v2229
    %v2601 = vunpack.c.h.b16 %v2229
    %v2602 = vunpack.c.l.b16 %v2230
    %v2603 = vunpack.c.h.b16 %v2230
    %v2604 = vunpack.c.l.b16 %v2231
    %v2605 = vunpack.c.h.b16 %v2231
    %v2606 = vunpack.c.l.b16 %v2232
    %v2607 = vunpack.c.h.b16 %v2232
    %v2608 = vunpack.c.l.b16 %v2233
    %v2609 = vunpack.c.h.b16 %v2233
    %v2610 = vunpack.c.l.b16 %v2234
    %v2611 = vunpack.c.h.b16 %v2234
    %v2612 = vunpack.c.l.b16 %v2235
    %v2613 = vunpack.c.h.b16 %v2235
    %v2614 = vunpack.c.l.b16 %v2236
    %v2615 = vunpack.c.h.b16 %v2236
    %v2616 = vunpack.c.l.b16 %v2237
    %v2617 = vunpack.c.h.b16 %v2237
    %v2618 = vunpack.c.l.b16 %v2238
    %v2619 = vunpack.c.h.b16 %v2238
    %v2620 = vunpack.c.l.b16 %v2239
    %v2621 = vunpack.c.h.b16 %v2239
    %v2622 = vunpack.c.l.b16 %v2240
    %v2623 = vunpack.c.h.b16 %v2240
    %v2624 = vunpack.c.l.b16 %v2241
    %v2625 = vunpack.c.h.b16 %v2241
    %v2626 = vunpack.c.l.b16 %v2242
    %v2627 = vunpack.c.h.b16 %v2242
    %v2628 = vunpack.c.l.b16 %v2243
    %v2629 = vunpack.c.h.b16 %v2243
    %v2630 = vunpack.c.l.b16 %v2244
    %v2631 = vunpack.c.h.b16 %v2244
    %v2632 = vunpack.c.l.b16 %v2245
    %v2633 = vunpack.c.h.b16 %v2245
    %v2634 = vunpack.c.l.b16 %v2246
    %v2635 = vunpack.c.h.b16 %v2246
    %v2636 = vunpack.c.l.b16 %v2247
    %v2637 = vunpack.c.h.b16 %v2247
    %v2638 = vunpack.c.l.b16 %v2248
    %v2639 = vunpack.c.h.b16 %v2248
    %v2640 = vunpack.c.l.b16 %v2249
    %v2641 = vunpack.c.h.b16 %v2249
    %v2642 = vunpack.c.l.b16 %v2250
    %v2643 = vunpack.c.h.b16 %v2250
    %v2644 = vpack.c.b16 %v2392, %v2388
    %v2645 = vpack.c.b16 %v2393, %v2389
    %v2646 = vpack.c.b16 %v2394, %v2390
    %v2647 = vpack.c.b16 %v2395, %v2391
    %v2648 = vpack.c.b16 %v2400, %v2396
    %v2649 = vpack.c.b16 %v2401, %v2397
    %v2650 = vpack.c.b16 %v2402, %v2398
    %v2651 = vpack.c.b16 %v2403, %v2399
    %v2652 = vpack.c.b16 %v2408, %v2404
    %v2653 = vpack.c.b16 %v2409, %v2405
    %v2654 = vpack.c.b16 %v2410, %v2406
    %v2655 = vpack.c.b16 %v2411, %v2407
    %v2656 = vpack.c.b16 %v2416, %v2412
    %v2657 = vpack.c.b16 %v2417, %v2413
    %v2658 = vpack.c.b16 %v2418, %v2414
    %v2659 = vpack.c.b16 %v2419, %v2415
    %v2660 = vpack.c.b16 %v2424, %v2420
    %v2661 = vpack.c.b16 %v2425, %v2421
    %v2662 = vpack.c.b16 %v2426, %v2422
    %v2663 = vpack.c.b16 %v2427, %v2423
    %v2664 = vpack.c.b16 %v2432, %v2428
    %v2665 = vpack.c.b16 %v2433, %v2429
    %v2666 = vpack.c.b16 %v2434, %v2430
    %v2667 = vpack.c.b16 %v2435, %v2431
    %v2668 = vpack.c.b16 %v2440, %v2436
    %v2669 = vpack.c.b16 %v2441, %v2437
    %v2670 = vpack.c.b16 %v2442, %v2438
    %v2671 = vpack.c.b16 %v2443, %v2439
    %v2672 = vpack.c.b16 %v2448, %v2444
    %v2673 = vpack.c.b16 %v2449, %v2445
    %v2674 = vpack.c.b16 %v2450, %v2446
    %v2675 = vpack.c.b16 %v2451, %v2447
    %v2676 = vpack.c.b16 %v2456, %v2452
    %v2677 = vpack.c.b16 %v2457, %v2453
    %v2678 = vpack.c.b16 %v2458, %v2454
    %v2679 = vpack.c.b16 %v2459, %v2455
    %v2680 = vpack.c.b16 %v2464, %v2460
    %v2681 = vpack.c.b16 %v2465, %v2461
    %v2682 = vpack.c.b16 %v2466, %v2462
    %v2683 = vpack.c.b16 %v2467, %v2463
    %v2684 = vpack.c.b16 %v2472, %v2468
    %v2685 = vpack.c.b16 %v2473, %v2469
    %v2686 = vpack.c.b16 %v2474, %v2470
    %v2687 = vpack.c.b16 %v2475, %v2471
    %v2688 = vpack.c.b16 %v2480, %v2476
    %v2689 = vpack.c.b16 %v2481, %v2477
    %v2690 = vpack.c.b16 %v2482, %v2478
    %v2691 = vpack.c.b16 %v2483, %v2479
    %v2692 = vpack.c.b16 %v2488, %v2484
    %v2693 = vpack.c.b16 %v2489, %v2485
    %v2694 = vpack.c.b16 %v2490, %v2486
    %v2695 = vpack.c.b16 %v2491, %v2487
    %v2696 = vpack.c.b16 %v2496, %v2492
    %v2697 = vpack.c.b16 %v2497, %v2493
    %v2698 = vpack.c.b16 %v2498, %v2494
    %v2699 = vpack.c.b16 %v2499, %v2495
    %v2700 = vpack.c.b16 %v2504, %v2500
    %v2701 = vpack.c.b16 %v2505, %v2501
    %v2702 = vpack.c.b16 %v2506, %v2502
    %v2703 = vpack.c.b16 %v2507, %v2503
    %v2704 = vpack.c.b16 %v2512, %v2508
    %v2705 = vpack.c.b16 %v2513, %v2509
    %v2706 = vpack.c.b16 %v2514, %v2510
    %v2707 = vpack.c.b16 %v2515, %v2511
    %v2708 = vpack.c.b16 %v2520, %v2516
    %v2709 = vpack.c.b16 %v2521, %v2517
    %v2710 = vpack.c.b16 %v2522, %v2518
    %v2711 = vpack.c.b16 %v2523, %v2519
    %v2712 = vpack.c.b16 %v2528, %v2524
    %v2713 = vpack.c.b16 %v2529, %v2525
    %v2714 = vpack.c.b16 %v2530, %v2526
    %v2715 = vpack.c.b16 %v2531, %v2527
    %v2716 = vpack.c.b16 %v2536, %v2532
    %v2717 = vpack.c.b16 %v2537, %v2533
    %v2718 = vpack.c.b16 %v2538, %v2534
    %v2719 = vpack.c.b16 %v2539, %v2535
    %v2720 = vpack.c.b16 %v2544, %v2540
    %v2721 = vpack.c.b16 %v2545, %v2541
    %v2722 = vpack.c.b16 %v2546, %v2542
    %v2723 = vpack.c.b16 %v2547, %v2543
    %v2724 = vpack.c.b16 %v2552, %v2548
    %v2725 = vpack.c.b16 %v2553, %v2549
    %v2726 = vpack.c.b16 %v2554, %v2550
    %v2727 = vpack.c.b16 %v2555, %v2551
    %v2728 = vpack.c.b16 %v2560, %v2556
    %v2729 = vpack.c.b16 %v2561, %v2557
    %v2730 = vpack.c.b16 %v2562, %v2558
    %v2731 = vpack.c.b16 %v2563, %v2559
    %v2732 = vpack.c.b16 %v2568, %v2564
    %v2733 = vpack.c.b16 %v2569, %v2565
    %v2734 = vpack.c.b16 %v2570, %v2566
    %v2735 = vpack.c.b16 %v2571, %v2567
    %v2736 = vpack.c.b16 %v2576, %v2572
    %v2737 = vpack.c.b16 %v2577, %v2573
    %v2738 = vpack.c.b16 %v2578, %v2574
    %v2739 = vpack.c.b16 %v2579, %v2575
    %v2740 = vpack.c.b16 %v2584, %v2580
    %v2741 = vpack.c.b16 %v2585, %v2581
    %v2742 = vpack.c.b16 %v2586, %v2582
    %v2743 = vpack.c.b16 %v2587, %v2583
    %v2744 = vpack.c.b16 %v2592, %v2588
    %v2745 = vpack.c.b16 %v2593, %v2589
    %v2746 = vpack.c.b16 %v2594, %v2590
    %v2747 = vpack.c.b16 %v2595, %v2591
    %v2748 = vpack.c.b16 %v2600, %v2596
    %v2749 = vpack.c.b16 %v2601, %v2597
    %v2750 = vpack.c.b16 %v2602, %v2598
    %v2751 = vpack.c.b16 %v2603, %v2599
    %v2752 = vpack.c.b16 %v2608, %v2604
    %v2753 = vpack.c.b16 %v2609, %v2605
    %v2754 = vpack.c.b16 %v2610, %v2606
    %v2755 = vpack.c.b16 %v2611, %v2607
    %v2756 = vpack.c.b16 %v2616, %v2612
    %v2757 = vpack.c.b16 %v2617, %v2613
    %v2758 = vpack.c.b16 %v2618, %v2614
    %v2759 = vpack.c.b16 %v2619, %v2615
    %v2760 = vpack.c.b16 %v2624, %v2620
    %v2761 = vpack.c.b16 %v2625, %v2621
    %v2762 = vpack.c.b16 %v2626, %v2622
    %v2763 = vpack.c.b16 %v2627, %v2623
    %v2764 = vpack.c.b16 %v2632, %v2628
    %v2765 = vpack.c.b16 %v2633, %v2629
    %v2766 = vpack.c.b16 %v2634, %v2630
    %v2767 = vpack.c.b16 %v2635, %v2631
    %v2768 = vpack.c.b16 %v2640, %v2636
    %v2769 = vpack.c.b16 %v2641, %v2637
    %v2770 = vpack.c.b16 %v2642, %v2638
    %v2771 = vpack.c.b16 %v2643, %v2639
    %2900 = vmatpush.bf16.msra.mxu0 %v2672
    %2901 = vmatpush.bf16.msra.mxu0 %v2668
    %2902 = vmatpush.bf16.msra.mxu0 %v2664
    %2903 = vmatpush.bf16.msra.mxu0 %v2660
    %2904 = vmatpush.bf16.msra.mxu0 %v2656
    %2905 = vmatpush.bf16.msra.mxu0 %v2652
    %2906 = vmatpush.bf16.msra.mxu0 %v2648
    %2907 = vmatpush.bf16.msra.mxu0 %v2644
    %2908 = vmatmul.bf16.gmra.mxu0 %v2119
    %v2909 = vpop.f32.mrf.mxu0
    %v2910 = vadd.f32 %v2252, %v2909
    %v2911 = vpop.f32.mrf.mxu0
    %v2912 = vadd.f32 %v2252, %v2911
    %2913 = vdwg.mxu0
    %2914 = vmatpush.bf16.msra.mxu0 %v2704
    %2915 = vmatpush.bf16.msra.mxu0 %v2700
    %2916 = vmatpush.bf16.msra.mxu0 %v2696
    %2917 = vmatpush.bf16.msra.mxu0 %v2692
    %2918 = vmatpush.bf16.msra.mxu0 %v2688
    %2919 = vmatpush.bf16.msra.mxu0 %v2684
    %2920 = vmatpush.bf16.msra.mxu0 %v2680
    %2921 = vmatpush.bf16.msra.mxu0 %v2676
    %2922 = vmatmul.bf16.gmra.mxu0 %v2120
    %v2923 = vpop.f32.mrf.mxu0
    %v2924 = vadd.f32 %v2910, %v2923
    %v2925 = vpop.f32.mrf.mxu0
    %v2926 = vadd.f32 %v2912, %v2925
    %2927 = vdwg.mxu0
    %2928 = vmatpush.bf16.msra.mxu0 %v2736
    %2929 = vmatpush.bf16.msra.mxu0 %v2732
    %2930 = vmatpush.bf16.msra.mxu0 %v2728
    %2931 = vmatpush.bf16.msra.mxu0 %v2724
    %2932 = vmatpush.bf16.msra.mxu0 %v2720
    %2933 = vmatpush.bf16.msra.mxu0 %v2716
    %2934 = vmatpush.bf16.msra.mxu0 %v2712
    %2935 = vmatpush.bf16.msra.mxu0 %v2708
    %2936 = vmatmul.bf16.gmra.mxu0 %v2121
    %v2937 = vpop.f32.mrf.mxu0
    %v2938 = vadd.f32 %v2924, %v2937
    %v2939 = vpop.f32.mrf.mxu0
    %v2940 = vadd.f32 %v2926, %v2939
    %2941 = vdwg.mxu0
    %2942 = vmatpush.bf16.msra.mxu0 %v2768
    %2943 = vmatpush.bf16.msra.mxu0 %v2764
    %2944 = vmatpush.bf16.msra.mxu0 %v2760
    %2945 = vmatpush.bf16.msra.mxu0 %v2756
    %2946 = vmatpush.bf16.msra.mxu0 %v2752
    %2947 = vmatpush.bf16.msra.mxu0 %v2748
    %2948 = vmatpush.bf16.msra.mxu0 %v2744
    %2949 = vmatpush.bf16.msra.mxu0 %v2740
    %2950 = vmatmul.bf16.gmra.mxu0 %v2122
    %v2951 = vpop.f32.mrf.mxu0
    %v2952 = vadd.f32 %v2938, %v2951
    %v2953 = vpop.f32.mrf.mxu0
    %v2954 = vadd.f32 %v2940, %v2953
    %2955 = vdwg.mxu0
    %2956 = vmatpush.bf16.msra.mxu0 %v2673
    %2957 = vmatpush.bf16.msra.mxu0 %v2669
    %2958 = vmatpush.bf16.msra.mxu0 %v2665
    %2959 = vmatpush.bf16.msra.mxu0 %v2661
    %2960 = vmatpush.bf16.msra.mxu0 %v2657
    %2961 = vmatpush.bf16.msra.mxu0 %v2653
    %2962 = vmatpush.bf16.msra.mxu0 %v2649
    %2963 = vmatpush.bf16.msra.mxu0 %v2645
    %2964 = vmatmul.bf16.gmra.mxu0 %v2119
    %v2965 = vpop.f32.mrf.mxu0
    %v2966 = vadd.f32 %v2253, %v2965
    %v2967 = vpop.f32.mrf.mxu0
    %v2968 = vadd.f32 %v2253, %v2967
    %2969 = vdwg.mxu0
    %2970 = vmatpush.bf16.msra.mxu0 %v2705
    %2971 = vmatpush.bf16.msra.mxu0 %v2701
    %2972 = vmatpush.bf16.msra.mxu0 %v2697
    %2973 = vmatpush.bf16.msra.mxu0 %v2693
    %2974 = vmatpush.bf16.msra.mxu0 %v2689
    %2975 = vmatpush.bf16.msra.mxu0 %v2685
    %2976 = vmatpush.bf16.msra.mxu0 %v2681
    %2977 = vmatpush.bf16.msra.mxu0 %v2677
    %2978 = vmatmul.bf16.gmra.mxu0 %v2120
    %v2979 = vpop.f32.mrf.mxu0
    %v2980 = vadd.f32 %v2966, %v2979
    %v2981 = vpop.f32.mrf.mxu0
    %v2982 = vadd.f32 %v2968, %v2981
    %2983 = vdwg.mxu0
    %2984 = vmatpush.bf16.msra.mxu0 %v2737
    %2985 = vmatpush.bf16.msra.mxu0 %v2733
    %2986 = vmatpush.bf16.msra.mxu0 %v2729
    %2987 = vmatpush.bf16.msra.mxu0 %v2725
    %2988 = vmatpush.bf16.msra.mxu0 %v2721
    %2989 = vmatpush.bf16.msra.mxu0 %v2717
    %2990 = vmatpush.bf16.msra.mxu0 %v2713
    %2991 = vmatpush.bf16.msra.mxu0 %v2709
    %2992 = vmatmul.bf16.gmra.mxu0 %v2121
    %v2993 = vpop.f32.mrf.mxu0
    %v2994 = vadd.f32 %v2980, %v2993
    %v2995 = vpop.f32.mrf.mxu0
    %v2996 = vadd.f32 %v2982, %v2995
    %2997 = vdwg.mxu0
    %2998 = vmatpush.bf16.msra.mxu0 %v2769
    %2999 = vmatpush.bf16.msra.mxu0 %v2765
    %3000 = vmatpush.bf16.msra.mxu0 %v2761
    %3001 = vmatpush.bf16.msra.mxu0 %v2757
    %3002 = vmatpush.bf16.msra.mxu0 %v2753
    %3003 = vmatpush.bf16.msra.mxu0 %v2749
    %3004 = vmatpush.bf16.msra.mxu0 %v2745
    %3005 = vmatpush.bf16.msra.mxu0 %v2741
    %3006 = vmatmul.bf16.gmra.mxu0 %v2122
    %v3007 = vpop.f32.mrf.mxu0
    %v3008 = vadd.f32 %v2994, %v3007
    %v3009 = vpop.f32.mrf.mxu0
    %v3010 = vadd.f32 %v2996, %v3009
    %3011 = vdwg.mxu0
    %3012 = vmatpush.bf16.msra.mxu0 %v2674
    %3013 = vmatpush.bf16.msra.mxu0 %v2670
    %3014 = vmatpush.bf16.msra.mxu0 %v2666
    %3015 = vmatpush.bf16.msra.mxu0 %v2662
    %3016 = vmatpush.bf16.msra.mxu0 %v2658
    %3017 = vmatpush.bf16.msra.mxu0 %v2654
    %3018 = vmatpush.bf16.msra.mxu0 %v2650
    %3019 = vmatpush.bf16.msra.mxu0 %v2646
    %3020 = vmatmul.bf16.gmra.mxu0 %v2119
    %v3021 = vpop.f32.mrf.mxu0
    %v3022 = vadd.f32 %v2254, %v3021
    %v3023 = vpop.f32.mrf.mxu0
    %v3024 = vadd.f32 %v2254, %v3023
    %3025 = vdwg.mxu0
    %3026 = vmatpush.bf16.msra.mxu0 %v2706
    %3027 = vmatpush.bf16.msra.mxu0 %v2702
    %3028 = vmatpush.bf16.msra.mxu0 %v2698
    %3029 = vmatpush.bf16.msra.mxu0 %v2694
    %3030 = vmatpush.bf16.msra.mxu0 %v2690
    %3031 = vmatpush.bf16.msra.mxu0 %v2686
    %3032 = vmatpush.bf16.msra.mxu0 %v2682
    %3033 = vmatpush.bf16.msra.mxu0 %v2678
    %3034 = vmatmul.bf16.gmra.mxu0 %v2120
    %v3035 = vpop.f32.mrf.mxu0
    %v3036 = vadd.f32 %v3022, %v3035
    %v3037 = vpop.f32.mrf.mxu0
    %v3038 = vadd.f32 %v3024, %v3037
    %3039 = vdwg.mxu0
    %3040 = vmatpush.bf16.msra.mxu0 %v2738
    %3041 = vmatpush.bf16.msra.mxu0 %v2734
    %3042 = vmatpush.bf16.msra.mxu0 %v2730
    %3043 = vmatpush.bf16.msra.mxu0 %v2726
    %3044 = vmatpush.bf16.msra.mxu0 %v2722
    %3045 = vmatpush.bf16.msra.mxu0 %v2718
    %3046 = vmatpush.bf16.msra.mxu0 %v2714
    %3047 = vmatpush.bf16.msra.mxu0 %v2710
    %3048 = vmatmul.bf16.gmra.mxu0 %v2121
    %v3049 = vpop.f32.mrf.mxu0
    %v3050 = vadd.f32 %v3036, %v3049
    %v3051 = vpop.f32.mrf.mxu0
    %v3052 = vadd.f32 %v3038, %v3051
    %3053 = vdwg.mxu0
    %3054 = vmatpush.bf16.msra.mxu0 %v2770
    %3055 = vmatpush.bf16.msra.mxu0 %v2766
    %3056 = vmatpush.bf16.msra.mxu0 %v2762
    %3057 = vmatpush.bf16.msra.mxu0 %v2758
    %3058 = vmatpush.bf16.msra.mxu0 %v2754
    %3059 = vmatpush.bf16.msra.mxu0 %v2750
    %3060 = vmatpush.bf16.msra.mxu0 %v2746
    %3061 = vmatpush.bf16.msra.mxu0 %v2742
    %3062 = vmatmul.bf16.gmra.mxu0 %v2122
    %v3063 = vpop.f32.mrf.mxu0
    %v3064 = vadd.f32 %v3050, %v3063
    %v3065 = vpop.f32.mrf.mxu0
    %v3066 = vadd.f32 %v3052, %v3065
    %3067 = vdwg.mxu0
    %3068 = vmatpush.bf16.msra.mxu0 %v2675
    %3069 = vmatpush.bf16.msra.mxu0 %v2671
    %3070 = vmatpush.bf16.msra.mxu0 %v2667
    %3071 = vmatpush.bf16.msra.mxu0 %v2663
    %3072 = vmatpush.bf16.msra.mxu0 %v2659
    %3073 = vmatpush.bf16.msra.mxu0 %v2655
    %3074 = vmatpush.bf16.msra.mxu0 %v2651
    %3075 = vmatpush.bf16.msra.mxu0 %v2647
    %3076 = vmatmul.bf16.gmra.mxu0 %v2119
    %v3077 = vpop.f32.mrf.mxu0
    %v3078 = vadd.f32 %v2255, %v3077
    %v3079 = vpop.f32.mrf.mxu0
    %v3080 = vadd.f32 %v2255, %v3079
    %3081 = vdwg.mxu0
    %3082 = vmatpush.bf16.msra.mxu0 %v2707
    %3083 = vmatpush.bf16.msra.mxu0 %v2703
    %3084 = vmatpush.bf16.msra.mxu0 %v2699
    %3085 = vmatpush.bf16.msra.mxu0 %v2695
    %3086 = vmatpush.bf16.msra.mxu0 %v2691
    %3087 = vmatpush.bf16.msra.mxu0 %v2687
    %3088 = vmatpush.bf16.msra.mxu0 %v2683
    %3089 = vmatpush.bf16.msra.mxu0 %v2679
    %3090 = vmatmul.bf16.gmra.mxu0 %v2120
    %v3091 = vpop.f32.mrf.mxu0
    %v3092 = vadd.f32 %v3078, %v3091
    %v3093 = vpop.f32.mrf.mxu0
    %v3094 = vadd.f32 %v3080, %v3093
    %3095 = vdwg.mxu0
    %3096 = vmatpush.bf16.msra.mxu0 %v2739
    %3097 = vmatpush.bf16.msra.mxu0 %v2735
    %3098 = vmatpush.bf16.msra.mxu0 %v2731
    %3099 = vmatpush.bf16.msra.mxu0 %v2727
    %3100 = vmatpush.bf16.msra.mxu0 %v2723
    %3101 = vmatpush.bf16.msra.mxu0 %v2719
    %3102 = vmatpush.bf16.msra.mxu0 %v2715
    %3103 = vmatpush.bf16.msra.mxu0 %v2711
    %3104 = vmatmul.bf16.gmra.mxu0 %v2121
    %v3105 = vpop.f32.mrf.mxu0
    %v3106 = vadd.f32 %v3092, %v3105
    %v3107 = vpop.f32.mrf.mxu0
    %v3108 = vadd.f32 %v3094, %v3107
    %3109 = vdwg.mxu0
    %3110 = vmatpush.bf16.msra.mxu0 %v2771
    %3111 = vmatpush.bf16.msra.mxu0 %v2767
    %3112 = vmatpush.bf16.msra.mxu0 %v2763
    %3113 = vmatpush.bf16.msra.mxu0 %v2759
    %3114 = vmatpush.bf16.msra.mxu0 %v2755
    %3115 = vmatpush.bf16.msra.mxu0 %v2751
    %3116 = vmatpush.bf16.msra.mxu0 %v2747
    %3117 = vmatpush.bf16.msra.mxu0 %v2743
    %3118 = vmatmul.bf16.gmra.mxu0 %v2122
    %v3119 = vpop.f32.mrf.mxu0
    %v3120 = vadd.f32 %v3106, %v3119
    %v3121 = vpop.f32.mrf.mxu0
    %v3122 = vadd.f32 %v3108, %v3121
    %3123 = vdwg.mxu0
    %vm3124 = vcmp.gt.f32.partialorder %v2952, 0.0
    %vm3125 = vcmp.gt.f32.partialorder %v3008, 0.0
    %vm3126 = vcmp.gt.f32.partialorder %v3064, 0.0
    %vm3127 = vcmp.gt.f32.partialorder %v3120, 0.0
    %vm3128 = vcmp.gt.f32.partialorder %v2954, 0.0
    %vm3129 = vcmp.gt.f32.partialorder %v3010, 0.0
    %vm3130 = vcmp.gt.f32.partialorder %v3066, 0.0
    %vm3131 = vcmp.gt.f32.partialorder %v3122, 0.0
    %v3132 = vmul.f32 %v2952, 0.01
    %v3133 = vmul.f32 %v3008, 0.01
    %v3134 = vmul.f32 %v3064, 0.01
    %v3135 = vmul.f32 %v3120, 0.01
    %v3136 = vmul.f32 %v2954, 0.01
    %v3137 = vmul.f32 %v3010, 0.01
    %v3138 = vmul.f32 %v3066, 0.01
    %v3139 = vmul.f32 %v3122, 0.01
    %v3140 = vsel %vm3124, %v2952, %v3132
    %v3141 = vsel %vm3125, %v3008, %v3133
    %v3142 = vsel %vm3126, %v3064, %v3134
    %v3143 = vsel %vm3127, %v3120, %v3135
    %v3144 = vsel %vm3128, %v2954, %v3136
    %v3145 = vsel %vm3129, %v3010, %v3137
    %v3146 = vsel %vm3130, %v3066, %v3138
    %v3147 = vsel %vm3131, %v3122, %v3139
    %v3148 = vpack.c.bf16 %v3144, %v3140
    %v3149 = vpack.c.bf16 %v3145, %v3141
    %v3150 = vpack.c.bf16 %v3146, %v3142
    %v3151 = vpack.c.bf16 %v3147, %v3143
    %v3152 = vld [vmem:[#allocation14] sm:$0xf]
    %v3153 = vld [vmem:[#allocation14 + $0x4] sm:$0xf]
    %v3154 = vld [vmem:[#allocation14 + $0x8] sm:$0xf]
    %v3155 = vld [vmem:[#allocation14 + $0xc] sm:$0xf]
    %v3156 = vld [vmem:[#allocation14 + $0x10] sm:$0xf]
    %v3157 = vld [vmem:[#allocation14 + $0x14] sm:$0xf]
    %v3158 = vld [vmem:[#allocation14 + $0x18] sm:$0xf]
    %v3159 = vld [vmem:[#allocation14 + $0x1c] sm:$0xf]
    %v3160 = vld [vmem:[#allocation14 + $0x20] sm:$0xf]
    %v3161 = vld [vmem:[#allocation14 + $0x24] sm:$0xf]
    %v3162 = vld [vmem:[#allocation14 + $0x28] sm:$0xf]
    %v3163 = vld [vmem:[#allocation14 + $0x2c] sm:$0xf]
    %v3164 = vld [vmem:[#allocation14 + $0x30] sm:$0xf]
    %v3165 = vld [vmem:[#allocation14 + $0x34] sm:$0xf]
    %v3166 = vld [vmem:[#allocation14 + $0x38] sm:$0xf]
    %v3167 = vld [vmem:[#allocation14 + $0x3c] sm:$0xf]
    %v3168 = vld [vmem:[#allocation14 + $0x40] sm:$0xf]
    %v3169 = vld [vmem:[#allocation14 + $0x44] sm:$0xf]
    %v3170 = vld [vmem:[#allocation14 + $0x48] sm:$0xf]
    %v3171 = vld [vmem:[#allocation14 + $0x4c] sm:$0xf]
    %v3172 = vld [vmem:[#allocation14 + $0x50] sm:$0xf]
    %v3173 = vld [vmem:[#allocation14 + $0x54] sm:$0xf]
    %v3174 = vld [vmem:[#allocation14 + $0x58] sm:$0xf]
    %v3175 = vld [vmem:[#allocation14 + $0x5c] sm:$0xf]
    %v3176 = vld [vmem:[#allocation14 + $0x60] sm:$0xf]
    %v3177 = vld [vmem:[#allocation14 + $0x64] sm:$0xf]
    %v3178 = vld [vmem:[#allocation14 + $0x68] sm:$0xf]
    %v3179 = vld [vmem:[#allocation14 + $0x6c] sm:$0xf]
    %v3180 = vld [vmem:[#allocation14 + $0x70] sm:$0xf]
    %v3181 = vld [vmem:[#allocation14 + $0x74] sm:$0xf]
    %v3182 = vld [vmem:[#allocation14 + $0x78] sm:$0xf]
    %v3183 = vld [vmem:[#allocation14 + $0x7c] sm:$0xf]
    %v3184 = vld [vmem:[#allocation14 + $0x80] sm:$0xf]
    %v3185 = vld [vmem:[#allocation14 + $0x84] sm:$0xf]
    %v3186 = vld [vmem:[#allocation14 + $0x88] sm:$0xf]
    %v3187 = vld [vmem:[#allocation14 + $0x8c] sm:$0xf]
    %v3188 = vld [vmem:[#allocation14 + $0x90] sm:$0xf]
    %v3189 = vld [vmem:[#allocation14 + $0x94] sm:$0xf]
    %v3190 = vld [vmem:[#allocation14 + $0x98] sm:$0xf]
    %v3191 = vld [vmem:[#allocation14 + $0x9c] sm:$0xf]
    %v3192 = vld [vmem:[#allocation14 + $0xa0] sm:$0xf]
    %v3193 = vld [vmem:[#allocation14 + $0xa4] sm:$0xf]
    %v3194 = vld [vmem:[#allocation14 + $0xa8] sm:$0xf]
    %v3195 = vld [vmem:[#allocation14 + $0xac] sm:$0xf]
    %v3196 = vld [vmem:[#allocation14 + $0xb0] sm:$0xf]
    %v3197 = vld [vmem:[#allocation14 + $0xb4] sm:$0xf]
    %v3198 = vld [vmem:[#allocation14 + $0xb8] sm:$0xf]
    %v3199 = vld [vmem:[#allocation14 + $0xbc] sm:$0xf]
    %v3200 = vld [vmem:[#allocation14 + $0xc0] sm:$0xf]
    %v3201 = vld [vmem:[#allocation14 + $0xc4] sm:$0xf]
    %v3202 = vld [vmem:[#allocation14 + $0xc8] sm:$0xf]
    %v3203 = vld [vmem:[#allocation14 + $0xcc] sm:$0xf]
    %v3204 = vld [vmem:[#allocation14 + $0xd0] sm:$0xf]
    %v3205 = vld [vmem:[#allocation14 + $0xd4] sm:$0xf]
    %v3206 = vld [vmem:[#allocation14 + $0xd8] sm:$0xf]
    %v3207 = vld [vmem:[#allocation14 + $0xdc] sm:$0xf]
    %v3208 = vld [vmem:[#allocation14 + $0xe0] sm:$0xf]
    %v3209 = vld [vmem:[#allocation14 + $0xe4] sm:$0xf]
    %v3210 = vld [vmem:[#allocation14 + $0xe8] sm:$0xf]
    %v3211 = vld [vmem:[#allocation14 + $0xec] sm:$0xf]
    %v3212 = vld [vmem:[#allocation14 + $0xf0] sm:$0xf]
    %v3213 = vld [vmem:[#allocation14 + $0xf4] sm:$0xf]
    %v3214 = vld [vmem:[#allocation14 + $0xf8] sm:$0xf]
    %v3215 = vld [vmem:[#allocation14 + $0xfc] sm:$0xf]
    %v3216 = vld [vmem:[%s8] sm:$0x1]
    %v3218 = vperm.slane %v3216, 0
    %v3284 = vunpack.c.l.b16 %v3152
    %v3285 = vunpack.c.l.b16 %v3153
    %v3286 = vunpack.c.l.b16 %v3154
    %v3287 = vunpack.c.l.b16 %v3155
    %v3288 = vunpack.c.l.b16 %v3156
    %v3289 = vunpack.c.l.b16 %v3157
    %v3290 = vunpack.c.l.b16 %v3158
    %v3291 = vunpack.c.l.b16 %v3159
    %v3292 = vunpack.c.l.b16 %v3160
    %v3293 = vunpack.c.l.b16 %v3161
    %v3294 = vunpack.c.l.b16 %v3162
    %v3295 = vunpack.c.l.b16 %v3163
    %v3296 = vunpack.c.l.b16 %v3164
    %v3297 = vunpack.c.l.b16 %v3165
    %v3298 = vunpack.c.l.b16 %v3166
    %v3299 = vunpack.c.l.b16 %v3167
    %v3300 = vunpack.c.l.b16 %v3168
    %v3301 = vunpack.c.l.b16 %v3169
    %v3302 = vunpack.c.l.b16 %v3170
    %v3303 = vunpack.c.l.b16 %v3171
    %v3304 = vunpack.c.l.b16 %v3172
    %v3305 = vunpack.c.l.b16 %v3173
    %v3306 = vunpack.c.l.b16 %v3174
    %v3307 = vunpack.c.l.b16 %v3175
    %v3308 = vunpack.c.l.b16 %v3176
    %v3309 = vunpack.c.l.b16 %v3177
    %v3310 = vunpack.c.l.b16 %v3178
    %v3311 = vunpack.c.l.b16 %v3179
    %v3312 = vunpack.c.l.b16 %v3180
    %v3313 = vunpack.c.l.b16 %v3181
    %v3314 = vunpack.c.l.b16 %v3182
    %v3315 = vunpack.c.l.b16 %v3183
    %v3316 = vunpack.c.l.b16 %v3184
    %v3317 = vunpack.c.l.b16 %v3185
    %v3318 = vunpack.c.l.b16 %v3186
    %v3319 = vunpack.c.l.b16 %v3187
    %v3320 = vunpack.c.l.b16 %v3188
    %v3321 = vunpack.c.l.b16 %v3189
    %v3322 = vunpack.c.l.b16 %v3190
    %v3323 = vunpack.c.l.b16 %v3191
    %v3324 = vunpack.c.l.b16 %v3192
    %v3325 = vunpack.c.l.b16 %v3193
    %v3326 = vunpack.c.l.b16 %v3194
    %v3327 = vunpack.c.l.b16 %v3195
    %v3328 = vunpack.c.l.b16 %v3196
    %v3329 = vunpack.c.l.b16 %v3197
    %v3330 = vunpack.c.l.b16 %v3198
    %v3331 = vunpack.c.l.b16 %v3199
    %v3332 = vunpack.c.l.b16 %v3200
    %v3333 = vunpack.c.l.b16 %v3201
    %v3334 = vunpack.c.l.b16 %v3202
    %v3335 = vunpack.c.l.b16 %v3203
    %v3336 = vunpack.c.l.b16 %v3204
    %v3337 = vunpack.c.l.b16 %v3205
    %v3338 = vunpack.c.l.b16 %v3206
    %v3339 = vunpack.c.l.b16 %v3207
    %v3340 = vunpack.c.l.b16 %v3208
    %v3341 = vunpack.c.l.b16 %v3209
    %v3342 = vunpack.c.l.b16 %v3210
    %v3343 = vunpack.c.l.b16 %v3211
    %v3344 = vunpack.c.l.b16 %v3212
    %v3345 = vunpack.c.l.b16 %v3213
    %v3346 = vunpack.c.l.b16 %v3214
    %v3347 = vunpack.c.l.b16 %v3215
    %v3348 = vpack.c.b16 %v3285, %v3284
    %v3349 = vpack.c.b16 %v3287, %v3286
    %v3350 = vpack.c.b16 %v3289, %v3288
    %v3351 = vpack.c.b16 %v3291, %v3290
    %v3352 = vpack.c.b16 %v3293, %v3292
    %v3353 = vpack.c.b16 %v3295, %v3294
    %v3354 = vpack.c.b16 %v3297, %v3296
    %v3355 = vpack.c.b16 %v3299, %v3298
    %v3356 = vpack.c.b16 %v3301, %v3300
    %v3357 = vpack.c.b16 %v3303, %v3302
    %v3358 = vpack.c.b16 %v3305, %v3304
    %v3359 = vpack.c.b16 %v3307, %v3306
    %v3360 = vpack.c.b16 %v3309, %v3308
    %v3361 = vpack.c.b16 %v3311, %v3310
    %v3362 = vpack.c.b16 %v3313, %v3312
    %v3363 = vpack.c.b16 %v3315, %v3314
    %v3364 = vpack.c.b16 %v3317, %v3316
    %v3365 = vpack.c.b16 %v3319, %v3318
    %v3366 = vpack.c.b16 %v3321, %v3320
    %v3367 = vpack.c.b16 %v3323, %v3322
    %v3368 = vpack.c.b16 %v3325, %v3324
    %v3369 = vpack.c.b16 %v3327, %v3326
    %v3370 = vpack.c.b16 %v3329, %v3328
    %v3371 = vpack.c.b16 %v3331, %v3330
    %v3372 = vpack.c.b16 %v3333, %v3332
    %v3373 = vpack.c.b16 %v3335, %v3334
    %v3374 = vpack.c.b16 %v3337, %v3336
    %v3375 = vpack.c.b16 %v3339, %v3338
    %v3376 = vpack.c.b16 %v3341, %v3340
    %v3377 = vpack.c.b16 %v3343, %v3342
    %v3378 = vpack.c.b16 %v3345, %v3344
    %v3379 = vpack.c.b16 %v3347, %v3346
    %3412 = vmatpush.bf16.msra.mxu0 %v3355
    %3413 = vmatpush.bf16.msra.mxu0 %v3354
    %3414 = vmatpush.bf16.msra.mxu0 %v3353
    %3415 = vmatpush.bf16.msra.mxu0 %v3352
    %3416 = vmatpush.bf16.msra.mxu0 %v3351
    %3417 = vmatpush.bf16.msra.mxu0 %v3350
    %3418 = vmatpush.bf16.msra.mxu0 %v3349
    %3419 = vmatpush.bf16.msra.mxu0 %v3348
    %3420 = vmatmul.bf16.gmra.mxu0 %v3148
    %v3421 = vpop.f32.mrf.mxu0
    %v3422 = vadd.f32 %v3218, %v3421
    %v3423 = vpop.f32.mrf.mxu0
    %v3424 = vadd.f32 %v3218, %v3423
    %3425 = vdwg.mxu0
    %3426 = vmatpush.bf16.msra.mxu0 %v3363
    %3427 = vmatpush.bf16.msra.mxu0 %v3362
    %3428 = vmatpush.bf16.msra.mxu0 %v3361
    %3429 = vmatpush.bf16.msra.mxu0 %v3360
    %3430 = vmatpush.bf16.msra.mxu0 %v3359
    %3431 = vmatpush.bf16.msra.mxu0 %v3358
    %3432 = vmatpush.bf16.msra.mxu0 %v3357
    %3433 = vmatpush.bf16.msra.mxu0 %v3356
    %3434 = vmatmul.bf16.gmra.mxu0 %v3149
    %v3435 = vpop.f32.mrf.mxu0
    %v3436 = vadd.f32 %v3422, %v3435
    %v3437 = vpop.f32.mrf.mxu0
    %v3438 = vadd.f32 %v3424, %v3437
    %3439 = vdwg.mxu0
    %3440 = vmatpush.bf16.msra.mxu0 %v3371
    %3441 = vmatpush.bf16.msra.mxu0 %v3370
    %3442 = vmatpush.bf16.msra.mxu0 %v3369
    %3443 = vmatpush.bf16.msra.mxu0 %v3368
    %3444 = vmatpush.bf16.msra.mxu0 %v3367
    %3445 = vmatpush.bf16.msra.mxu0 %v3366
    %3446 = vmatpush.bf16.msra.mxu0 %v3365
    %3447 = vmatpush.bf16.msra.mxu0 %v3364
    %3448 = vmatmul.bf16.gmra.mxu0 %v3150
    %v3449 = vpop.f32.mrf.mxu0
    %v3450 = vadd.f32 %v3436, %v3449
    %v3451 = vpop.f32.mrf.mxu0
    %v3452 = vadd.f32 %v3438, %v3451
    %3453 = vdwg.mxu0
    %3454 = vmatpush.bf16.msra.mxu0 %v3379
    %3455 = vmatpush.bf16.msra.mxu0 %v3378
    %3456 = vmatpush.bf16.msra.mxu0 %v3377
    %3457 = vmatpush.bf16.msra.mxu0 %v3376
    %3458 = vmatpush.bf16.msra.mxu0 %v3375
    %3459 = vmatpush.bf16.msra.mxu0 %v3374
    %3460 = vmatpush.bf16.msra.mxu0 %v3373
    %3461 = vmatpush.bf16.msra.mxu0 %v3372
    %3462 = vmatmul.bf16.gmra.mxu0 %v3151
    %v3463 = vpop.f32.mrf.mxu0
    %v3464 = vadd.f32 %v3450, %v3463
    %v3465 = vpop.f32.mrf.mxu0
    %v3466 = vadd.f32 %v3452, %v3465
    %3467 = vdwg.mxu0
    %3468 = vst [vmem:[#allocation16] sm:$0xff] %v3464
    %3469 = vst [vmem:[#allocation16 + $0x8] sm:$0xff] %v3466
    // Predicated region
    $region70: #{tpu_custom_call.1} parent=1 // pred_check
      _
    $region71: #{tpu_custom_call.1} parent=1 // pred_check_branch
      %3471 = sbr.rel (0) target = $region73
    $region72: #{tpu_custom_call.1} parent=1 // pred_region
      %3473 = vsyncadd [#allocation4], 0
      %s3474 = sshll.u32 [#allocation16], 4
      %s3475 = int_to_ptr.vmem [resolvable:$true] %s3474
      %s3476 = sshll.u32 %s9, 4
      %s3477 = int_to_ptr.hbm [resolvable:$true] %s3476
      %3482 = dma.vmem_to_hbm [thread:$0]  %s3475, 256, %s3477, [#allocation4], 128, 128, 8
    $region73: #{tpu_custom_call.1} parent=1 // pred_fallthru
      _
    // Predicated region
    $region74: #{tpu_custom_call.1} parent=1 // pred_check
      _
    $region75: #{tpu_custom_call.1} parent=1 // pred_check_branch
      %3484 = sbr.rel (0) target = $region77
    $region76: #{tpu_custom_call.1} parent=1 // pred_region
      %3486 = dma.done [#allocation4], 256
    $region77: #{tpu_custom_call.1} parent=1 // pred_fallthru
      _
    %3487 = vsyncpa [#allocation3], 1
    %3488 = vsyncpa [#allocation6], 1
    %3489 = vsyncpa [#allocation9], 1
    %3490 = vsyncpa [#allocation12], 1
    %3491 = vsyncpa [#allocation15], 1
    %3492 = vsyncpa [#allocation4], 1

</llo_original>
